<compile_context>
chip_gen: v6e
topology: v6e:2x2x1
jax: 0.10.0
libtpu: 0.0.40
codegen_flags: <defaults>
</compile_context>

<pallas_src>
import functools
import math

import jax
import jax.numpy as jnp
from jax.experimental import pallas as pl
from jax.experimental.pallas import tpu as pltpu

# ---------------- small deterministic config (stand-in for bert-base) -------
VOCAB = 100
TYPE_VOCAB = 2
MAX_POS = 32
HIDDEN = 32
N_LAYERS = 2
N_HEADS = 2
HEAD_DIM = HIDDEN // N_HEADS
INTERMEDIATE = 64
NUM_LABELS = 2
LN_EPS = 1e-12


# ---------------- single fused Pallas kernel ---------------------------------
def _bert_kernel(
    emb_ref, emb_g_ref, emb_b_ref,
    wqkv_ref, bqkv_ref, wo_ref, bo_ref, ln1g_ref, ln1b_ref,
    wff1_ref, bff1_ref, wff2_ref, bff2_ref, ln2g_ref, ln2b_ref,
    poolw_ref, poolb_ref, clsw_ref, clsb_ref,
    labels_ref,
    loss_ref, logits_ref,
    *, batch, seq,
):
    f32 = jnp.float32
    bf16 = jnp.bfloat16

    def ln(x, g, b):
        mu = jnp.mean(x, axis=-1, keepdims=True)
        var = jnp.mean((x - mu) ** 2, axis=-1, keepdims=True)
        return (x - mu) * jax.lax.rsqrt(var + LN_EPS) * g + b

    def mm(x, w_bf16):
        # bf16 MXU inputs, f32 accumulation.
        return jnp.dot(x.astype(bf16), w_bf16, preferred_element_type=f32)

    def gelu(x):
        # tanh-approx GELU  # TODO(synk): HF bert-base uses exact erf-GELU
        return 0.5 * x * (1.0 + jnp.tanh(
            0.7978845608028654 * (x + 0.044715 * x * x * x)))

    # ---- embeddings LayerNorm (emb sum is computed in JAX glue) -------------
    h = ln(emb_ref[...], emb_g_ref[...], emb_b_ref[...])        # [B*S, H] f32

    scale = 1.0 / math.sqrt(HEAD_DIM)

    # ---- encoder layers (static Python loop, unrolled at trace time) --------
    for l in range(N_LAYERS):
        # fused Q/K/V projection: one [H, 3H] matmul
        qkv = mm(h, wqkv_ref[l]) + bqkv_ref[l]                  # [B*S, 3H]

        batch_rows = []
        for b in range(batch):
            r0 = b * seq
            q_b = qkv[r0:r0 + seq, 0 * HIDDEN:1 * HIDDEN]       # [S, H]
            k_b = qkv[r0:r0 + seq, 1 * HIDDEN:2 * HIDDEN]
            v_b = qkv[r0:r0 + seq, 2 * HIDDEN:3 * HIDDEN]
            head_outs = []
            for hd in range(N_HEADS):
                c0 = hd * HEAD_DIM
                qh = q_b[:, c0:c0 + HEAD_DIM] * scale           # fold 1/sqrt(dh) into q
                kh = k_b[:, c0:c0 + HEAD_DIM]
                vh = v_b[:, c0:c0 + HEAD_DIM]
                s = jnp.dot(qh, kh.T, preferred_element_type=f32)   # [S, S]
                s = s - jnp.max(s, axis=-1, keepdims=True)
                p = jnp.exp(s)
                p = p * pl.reciprocal(jnp.sum(p, axis=-1, keepdims=True),
                                      approx=True)
                head_outs.append(jnp.dot(p, vh, preferred_element_type=f32))
            batch_rows.append(jnp.concatenate(head_outs, axis=-1))   # [S, H]
        ctx = jnp.concatenate(batch_rows, axis=0)                    # [B*S, H]

        # attention output projection + residual + LN
        h = ln(mm(ctx, wo_ref[l]) + bo_ref[l] + h, ln1g_ref[l], ln1b_ref[l])

        # FFN (GELU) + residual + LN
        ff = gelu(mm(h, wff1_ref[l]) + bff1_ref[l])                  # [B*S, I]
        h = ln(mm(ff, wff2_ref[l]) + bff2_ref[l] + h, ln2g_ref[l], ln2b_ref[l])

    # ---- pooler ([CLS] token) + classifier ----------------------------------
    cls_rows = jnp.concatenate(
        [h[b * seq:b * seq + 1, :] for b in range(batch)], axis=0)   # [B, H]
    pooled = jnp.tanh(mm(cls_rows, poolw_ref[...]) + poolb_ref[...])
    logits = jnp.dot(pooled, clsw_ref[...],
                     preferred_element_type=f32) + clsb_ref[...]     # [B, NL]
    logits_ref[...] = logits

    # ---- mean cross-entropy; labels read scalar-wise from SMEM --------------
    lane_iota = jax.lax.broadcasted_iota(jnp.int32, (1, NUM_LABELS), 1)
    total = jnp.zeros((1, 1), f32)
    for b in range(batch):
        row = logits[b:b + 1, :]                                     # [1, NL]
        m = jnp.max(row, axis=-1, keepdims=True)
        lse = jnp.log(jnp.sum(jnp.exp(row - m), axis=-1, keepdims=True)) + m
        onehot = (lane_iota == labels_ref[b]).astype(f32)
        correct = jnp.sum(row * onehot, axis=-1, keepdims=True)
        total = total + (lse - correct)
    loss_ref[...] = total * (1.0 / batch)


# ---------------- parameter packing (JAX glue, fused by XLA) ------------------
def _pack_params(params):
    layers = params["layers"]

    def stack(fn, dtype=None):
        x = jnp.stack([fn(l) for l in layers])
        return x.astype(dtype) if dtype is not None else x

    return dict(
        emb_g=params["emb_ln_g"].reshape(1, HIDDEN),
        emb_b=params["emb_ln_b"].reshape(1, HIDDEN),
        # fused QKV weights: [L, H, 3H] (bf16 halves weight DMA, MXU-friendly)
        wqkv=stack(lambda l: jnp.concatenate(
            [l["q"]["w"], l["k"]["w"], l["v"]["w"]], axis=1), jnp.bfloat16),
        bqkv=stack(lambda l: jnp.concatenate(
            [l["q"]["b"], l["k"]["b"], l["v"]["b"]])[None, :]),
        wo=stack(lambda l: l["attn_out"]["w"], jnp.bfloat16),
        bo=stack(lambda l: l["attn_out"]["b"][None, :]),
        ln1g=stack(lambda l: l["attn_ln_g"][None, :]),
        ln1b=stack(lambda l: l["attn_ln_b"][None, :]),
        wff1=stack(lambda l: l["ffn_in"]["w"], jnp.bfloat16),
        bff1=stack(lambda l: l["ffn_in"]["b"][None, :]),
        wff2=stack(lambda l: l["ffn_out"]["w"], jnp.bfloat16),
        bff2=stack(lambda l: l["ffn_out"]["b"][None, :]),
        ln2g=stack(lambda l: l["ffn_ln_g"][None, :]),
        ln2b=stack(lambda l: l["ffn_ln_b"][None, :]),
        poolw=params["pooler"]["w"].astype(jnp.bfloat16),
        poolb=params["pooler"]["b"].reshape(1, HIDDEN),
        clsw=params["cls"]["w"],
        clsb=params["cls"]["b"].reshape(1, NUM_LABELS),
    )


# ---------------- deterministic parameter init --------------------------------
def init_params(key):
    keys = iter(jax.random.split(key, 256))

    def dense(i, o):
        return {"w": jax.random.normal(next(keys), (i, o), jnp.float32) * 0.02,
                "b": jnp.zeros((o,), jnp.float32)}

    params = {
        "word_emb": jax.random.normal(next(keys), (VOCAB, HIDDEN), jnp.float32) * 0.02,
        "pos_emb": jax.random.normal(next(keys), (MAX_POS, HIDDEN), jnp.float32) * 0.02,
        "type_emb": jax.random.normal(next(keys), (TYPE_VOCAB, HIDDEN), jnp.float32) * 0.02,
        "emb_ln_g": jnp.ones((HIDDEN,), jnp.float32),
        "emb_ln_b": jnp.zeros((HIDDEN,), jnp.float32),
        "layers": [],
        "pooler": dense(HIDDEN, HIDDEN),
        "cls": dense(HIDDEN, NUM_LABELS),
    }
    for _ in range(N_LAYERS):
        params["layers"].append({
            "q": dense(HIDDEN, HIDDEN),
            "k": dense(HIDDEN, HIDDEN),
            "v": dense(HIDDEN, HIDDEN),
            "attn_out": dense(HIDDEN, HIDDEN),
            "attn_ln_g": jnp.ones((HIDDEN,), jnp.float32),
            "attn_ln_b": jnp.zeros((HIDDEN,), jnp.float32),
            "ffn_in": dense(HIDDEN, INTERMEDIATE),
            "ffn_out": dense(INTERMEDIATE, HIDDEN),
            "ffn_ln_g": jnp.ones((HIDDEN,), jnp.float32),
            "ffn_ln_b": jnp.zeros((HIDDEN,), jnp.float32),
        })
    return params


# ---------------- forward pass (== BERT.forward(text, label)) -----------------
def bert_forward(params, text, label):
    B, S = text.shape
    p = _pack_params(params)

    # embeddings: gathers + sums are XLA glue; everything else is in-kernel
    tok = jnp.take(params["word_emb"], text, axis=0)            # [B, S, H]
    pos = params["pos_emb"][:S][None, :, :]                     # [1, S, H]
    typ = params["type_emb"][0][None, None, :]                  # token_type_ids = 0
    emb = (tok + pos + typ).reshape(B * S, HIDDEN)              # [B*S, H]
    # TODO(synk): attention_mask is ignored (no padding, single segment).

    vmem = pl.BlockSpec(memory_space=pltpu.MemorySpace.VMEM)
    smem = pl.BlockSpec(memory_space=pltpu.MemorySpace.SMEM)

    loss, logits = pl.pallas_call(
        functools.partial(_bert_kernel, batch=B, seq=S),
        out_shape=(jax.ShapeDtypeStruct((1, 1), jnp.float32),
                   jax.ShapeDtypeStruct((B, NUM_LABELS), jnp.float32)),
        in_specs=[vmem] * 19 + [smem],
        out_specs=(vmem, vmem),
    )(emb, p["emb_g"], p["emb_b"],
      p["wqkv"], p["bqkv"], p["wo"], p["bo"], p["ln1g"], p["ln1b"],
      p["wff1"], p["bff1"], p["wff2"], p["bff2"], p["ln2g"], p["ln2b"],
      p["poolw"], p["poolb"], p["clsw"], p["clsb"],
      label.astype(jnp.int32))
    return loss[0, 0], logits


if __name__ == "__main__":
    key = jax.random.PRNGKey(0)
    pkey, tkey, lkey = jax.random.split(key, 3)
    params = init_params(pkey)

    B, S = 2, 8
    text = jax.random.randint(tkey, (B, S), 0, VOCAB, dtype=jnp.int32)
    label = jax.random.randint(lkey, (B,), 0, NUM_LABELS, dtype=jnp.int32)

    loss, logits = jax.jit(bert_forward)(params, text, label)
    jax.block_until_ready((loss, logits))
    assert logits.shape == (B, NUM_LABELS) and loss.shape == ()
    print("KERNEL_OK")
</pallas_src>

<mosaic_0001>
module attributes {stable_mosaic.version = 11 : i64} {
  func.func @_bert_kernel(%arg0: memref<16x32xf32, #tpu.memory_space<vmem>>, %arg1: memref<1x32xf32, #tpu.memory_space<vmem>>, %arg2: memref<1x32xf32, #tpu.memory_space<vmem>>, %arg3: memref<2x32x96xbf16, #tpu.memory_space<vmem>>, %arg4: memref<2x1x96xf32, #tpu.memory_space<vmem>>, %arg5: memref<2x32x32xbf16, #tpu.memory_space<vmem>>, %arg6: memref<2x1x32xf32, #tpu.memory_space<vmem>>, %arg7: memref<2x1x32xf32, #tpu.memory_space<vmem>>, %arg8: memref<2x1x32xf32, #tpu.memory_space<vmem>>, %arg9: memref<2x32x64xbf16, #tpu.memory_space<vmem>>, %arg10: memref<2x1x64xf32, #tpu.memory_space<vmem>>, %arg11: memref<2x64x32xbf16, #tpu.memory_space<vmem>>, %arg12: memref<2x1x32xf32, #tpu.memory_space<vmem>>, %arg13: memref<2x1x32xf32, #tpu.memory_space<vmem>>, %arg14: memref<2x1x32xf32, #tpu.memory_space<vmem>>, %arg15: memref<32x32xbf16, #tpu.memory_space<vmem>>, %arg16: memref<1x32xf32, #tpu.memory_space<vmem>>, %arg17: memref<32x2xf32, #tpu.memory_space<vmem>>, %arg18: memref<1x2xf32, #tpu.memory_space<vmem>>, %arg19: memref<2xi32, #tpu.memory_space<smem>>, %arg20: memref<1x1xf32, #tpu.memory_space<vmem>>, %arg21: memref<2x2xf32, #tpu.memory_space<vmem>>) attributes {dimension_semantics = [], scalar_prefetch = 0 : i64, scratch_operands = 0 : i64, tpu.core_type = #tpu.core_type<tc>} {
    %c0 = arith.constant 0 : index
    %c0_0 = arith.constant 0 : index
    %0 = vector.load %arg0[%c0, %c0_0] : memref<16x32xf32, #tpu.memory_space<vmem>>, vector<16x32xf32>
    %c0_1 = arith.constant 0 : index
    %c0_2 = arith.constant 0 : index
    %1 = vector.load %arg1[%c0_1, %c0_2] : memref<1x32xf32, #tpu.memory_space<vmem>>, vector<1x32xf32>
    %c0_3 = arith.constant 0 : index
    %c0_4 = arith.constant 0 : index
    %2 = vector.load %arg2[%c0_3, %c0_4] : memref<1x32xf32, #tpu.memory_space<vmem>>, vector<1x32xf32>
    %cst = arith.constant dense<0.000000e+00> : vector<16xf32>
    %3 = vector.multi_reduction <add>, %0, %cst [1] : vector<16x32xf32> to vector<16xf32>
    %4 = vector.shape_cast %3 : vector<16xf32> to vector<16x1xf32>
    %cst_5 = arith.constant 3.200000e+01 : f32
    %5 = vector.broadcast %cst_5 : f32 to vector<16x1xf32>
    %6 = arith.divf %4, %5 : vector<16x1xf32>
    %7 = vector.broadcast %6 : vector<16x1xf32> to vector<16x32xf32>
    %8 = arith.subf %0, %7 : vector<16x32xf32>
    %9 = arith.mulf %8, %8 : vector<16x32xf32>
    %cst_6 = arith.constant dense<0.000000e+00> : vector<16xf32>
    %10 = vector.multi_reduction <add>, %9, %cst_6 [1] : vector<16x32xf32> to vector<16xf32>
    %11 = vector.shape_cast %10 : vector<16xf32> to vector<16x1xf32>
    %cst_7 = arith.constant 3.200000e+01 : f32
    %12 = vector.broadcast %cst_7 : f32 to vector<16x1xf32>
    %13 = arith.divf %11, %12 : vector<16x1xf32>
    %14 = vector.broadcast %6 : vector<16x1xf32> to vector<16x32xf32>
    %15 = arith.subf %0, %14 : vector<16x32xf32>
    %cst_8 = arith.constant 9.99999996E-13 : f32
    %16 = vector.broadcast %cst_8 : f32 to vector<16x1xf32>
    %17 = arith.addf %13, %16 : vector<16x1xf32>
    %18 = math.rsqrt %17 : vector<16x1xf32>
    %19 = vector.broadcast %18 : vector<16x1xf32> to vector<16x32xf32>
    %20 = arith.mulf %15, %19 : vector<16x32xf32>
    %21 = vector.broadcast %1 : vector<1x32xf32> to vector<16x32xf32>
    %22 = arith.mulf %20, %21 : vector<16x32xf32>
    %23 = vector.broadcast %2 : vector<1x32xf32> to vector<16x32xf32>
    %24 = arith.addf %22, %23 : vector<16x32xf32>
    %c0_9 = arith.constant 0 : index
    %c0_10 = arith.constant 0 : index
    %c0_11 = arith.constant 0 : index
    %25 = vector.load %arg3[%c0_9, %c0_10, %c0_11] : memref<2x32x96xbf16, #tpu.memory_space<vmem>>, vector<1x32x96xbf16>
    %26 = vector.shape_cast %25 : vector<1x32x96xbf16> to vector<32x96xbf16>
    %27 = arith.truncf %24 : vector<16x32xf32> to vector<16x32xbf16>
    %cst_12 = arith.constant dense<0.000000e+00> : vector<16x96xf32>
    %28 = tpu.matmul %27, %26, %cst_12 {dimension_numbers = #tpu.dot_dimension_numbers<[1], [0], [0], [1], [0, 0, 1, 1], [], []>} : vector<16x32xbf16>, vector<32x96xbf16>, vector<16x96xf32> -> vector<16x96xf32>
    %c0_13 = arith.constant 0 : index
    %c0_14 = arith.constant 0 : index
    %c0_15 = arith.constant 0 : index
    %29 = vector.load %arg4[%c0_13, %c0_14, %c0_15] : memref<2x1x96xf32, #tpu.memory_space<vmem>>, vector<1x1x96xf32>
    %30 = vector.shape_cast %29 : vector<1x1x96xf32> to vector<1x96xf32>
    %31 = vector.broadcast %30 : vector<1x96xf32> to vector<16x96xf32>
    %32 = arith.addf %28, %31 : vector<16x96xf32>
    %33 = vector.extract_strided_slice %32 {offsets = [0, 0], sizes = [8, 32], strides = [1, 1]} : vector<16x96xf32> to vector<8x32xf32>
    %34 = vector.extract_strided_slice %32 {offsets = [0, 32], sizes = [8, 32], strides = [1, 1]} : vector<16x96xf32> to vector<8x32xf32>
    %35 = vector.extract_strided_slice %32 {offsets = [0, 64], sizes = [8, 32], strides = [1, 1]} : vector<16x96xf32> to vector<8x32xf32>
    %36 = vector.extract_strided_slice %33 {offsets = [0, 0], sizes = [8, 16], strides = [1, 1]} : vector<8x32xf32> to vector<8x16xf32>
    %cst_16 = arith.constant 2.500000e-01 : f32
    %37 = vector.broadcast %cst_16 : f32 to vector<8x16xf32>
    %38 = arith.mulf %36, %37 : vector<8x16xf32>
    %39 = vector.extract_strided_slice %34 {offsets = [0, 0], sizes = [8, 16], strides = [1, 1]} : vector<8x32xf32> to vector<8x16xf32>
    %40 = vector.extract_strided_slice %35 {offsets = [0, 0], sizes = [8, 16], strides = [1, 1]} : vector<8x32xf32> to vector<8x16xf32>
    %41 = tpu.transpose %39, [1, 0] : vector<8x16xf32> -> vector<16x8xf32>
    %cst_17 = arith.constant dense<0.000000e+00> : vector<8x8xf32>
    %42 = tpu.matmul %38, %41, %cst_17 {dimension_numbers = #tpu.dot_dimension_numbers<[1], [0], [0], [1], [0, 0, 1, 1], [], []>} : vector<8x16xf32>, vector<16x8xf32>, vector<8x8xf32> -> vector<8x8xf32>
    %cst_18 = arith.constant dense<0xFF800000> : vector<8xf32>
    %43 = vector.multi_reduction <maximumf>, %42, %cst_18 [1] : vector<8x8xf32> to vector<8xf32>
    %44 = vector.shape_cast %43 : vector<8xf32> to vector<8x1xf32>
    %45 = vector.broadcast %44 : vector<8x1xf32> to vector<8x8xf32>
    %46 = arith.subf %42, %45 : vector<8x8xf32>
    %47 = math.exp %46 : vector<8x8xf32>
    %cst_19 = arith.constant dense<0.000000e+00> : vector<8xf32>
    %48 = vector.multi_reduction <add>, %47, %cst_19 [1] : vector<8x8xf32> to vector<8xf32>
    %49 = vector.shape_cast %48 : vector<8xf32> to vector<8x1xf32>
    %50 = tpu.reciprocal %49 {approx = true} : vector<8x1xf32> -> vector<8x1xf32>
    %51 = vector.broadcast %50 : vector<8x1xf32> to vector<8x8xf32>
    %52 = arith.mulf %47, %51 : vector<8x8xf32>
    %cst_20 = arith.constant dense<0.000000e+00> : vector<8x16xf32>
    %53 = tpu.matmul %52, %40, %cst_20 {dimension_numbers = #tpu.dot_dimension_numbers<[1], [0], [0], [1], [0, 0, 1, 1], [], []>} : vector<8x8xf32>, vector<8x16xf32>, vector<8x16xf32> -> vector<8x16xf32>
    %54 = vector.extract_strided_slice %33 {offsets = [0, 16], sizes = [8, 16], strides = [1, 1]} : vector<8x32xf32> to vector<8x16xf32>
    %cst_21 = arith.constant 2.500000e-01 : f32
    %55 = vector.broadcast %cst_21 : f32 to vector<8x16xf32>
    %56 = arith.mulf %54, %55 : vector<8x16xf32>
    %57 = vector.extract_strided_slice %34 {offsets = [0, 16], sizes = [8, 16], strides = [1, 1]} : vector<8x32xf32> to vector<8x16xf32>
    %58 = vector.extract_strided_slice %35 {offsets = [0, 16], sizes = [8, 16], strides = [1, 1]} : vector<8x32xf32> to vector<8x16xf32>
    %59 = tpu.transpose %57, [1, 0] : vector<8x16xf32> -> vector<16x8xf32>
    %cst_22 = arith.constant dense<0.000000e+00> : vector<8x8xf32>
    %60 = tpu.matmul %56, %59, %cst_22 {dimension_numbers = #tpu.dot_dimension_numbers<[1], [0], [0], [1], [0, 0, 1, 1], [], []>} : vector<8x16xf32>, vector<16x8xf32>, vector<8x8xf32> -> vector<8x8xf32>
    %cst_23 = arith.constant dense<0xFF800000> : vector<8xf32>
    %61 = vector.multi_reduction <maximumf>, %60, %cst_23 [1] : vector<8x8xf32> to vector<8xf32>
    %62 = vector.shape_cast %61 : vector<8xf32> to vector<8x1xf32>
    %63 = vector.broadcast %62 : vector<8x1xf32> to vector<8x8xf32>
    %64 = arith.subf %60, %63 : vector<8x8xf32>
    %65 = math.exp %64 : vector<8x8xf32>
    %cst_24 = arith.constant dense<0.000000e+00> : vector<8xf32>
    %66 = vector.multi_reduction <add>, %65, %cst_24 [1] : vector<8x8xf32> to vector<8xf32>
    %67 = vector.shape_cast %66 : vector<8xf32> to vector<8x1xf32>
    %68 = tpu.reciprocal %67 {approx = true} : vector<8x1xf32> -> vector<8x1xf32>
    %69 = vector.broadcast %68 : vector<8x1xf32> to vector<8x8xf32>
    %70 = arith.mulf %65, %69 : vector<8x8xf32>
    %cst_25 = arith.constant dense<0.000000e+00> : vector<8x16xf32>
    %71 = tpu.matmul %70, %58, %cst_25 {dimension_numbers = #tpu.dot_dimension_numbers<[1], [0], [0], [1], [0, 0, 1, 1], [], []>} : vector<8x8xf32>, vector<8x16xf32>, vector<8x16xf32> -> vector<8x16xf32>
    %72 = tpu.concatenate %53, %71 in 1 : vector<8x16xf32>, vector<8x16xf32> -> vector<8x32xf32>
    %73 = vector.extract_strided_slice %32 {offsets = [8, 0], sizes = [8, 32], strides = [1, 1]} : vector<16x96xf32> to vector<8x32xf32>
    %74 = vector.extract_strided_slice %32 {offsets = [8, 32], sizes = [8, 32], strides = [1, 1]} : vector<16x96xf32> to vector<8x32xf32>
    %75 = vector.extract_strided_slice %32 {offsets = [8, 64], sizes = [8, 32], strides = [1, 1]} : vector<16x96xf32> to vector<8x32xf32>
    %76 = vector.extract_strided_slice %73 {offsets = [0, 0], sizes = [8, 16], strides = [1, 1]} : vector<8x32xf32> to vector<8x16xf32>
    %cst_26 = arith.constant 2.500000e-01 : f32
    %77 = vector.broadcast %cst_26 : f32 to vector<8x16xf32>
    %78 = arith.mulf %76, %77 : vector<8x16xf32>
    %79 = vector.extract_strided_slice %74 {offsets = [0, 0], sizes = [8, 16], strides = [1, 1]} : vector<8x32xf32> to vector<8x16xf32>
    %80 = vector.extract_strided_slice %75 {offsets = [0, 0], sizes = [8, 16], strides = [1, 1]} : vector<8x32xf32> to vector<8x16xf32>
    %81 = tpu.transpose %79, [1, 0] : vector<8x16xf32> -> vector<16x8xf32>
    %cst_27 = arith.constant dense<0.000000e+00> : vector<8x8xf32>
    %82 = tpu.matmul %78, %81, %cst_27 {dimension_numbers = #tpu.dot_dimension_numbers<[1], [0], [0], [1], [0, 0, 1, 1], [], []>} : vector<8x16xf32>, vector<16x8xf32>, vector<8x8xf32> -> vector<8x8xf32>
    %cst_28 = arith.constant dense<0xFF800000> : vector<8xf32>
    %83 = vector.multi_reduction <maximumf>, %82, %cst_28 [1] : vector<8x8xf32> to vector<8xf32>
    %84 = vector.shape_cast %83 : vector<8xf32> to vector<8x1xf32>
    %85 = vector.broadcast %84 : vector<8x1xf32> to vector<8x8xf32>
    %86 = arith.subf %82, %85 : vector<8x8xf32>
    %87 = math.exp %86 : vector<8x8xf32>
    %cst_29 = arith.constant dense<0.000000e+00> : vector<8xf32>
    %88 = vector.multi_reduction <add>, %87, %cst_29 [1] : vector<8x8xf32> to vector<8xf32>
    %89 = vector.shape_cast %88 : vector<8xf32> to vector<8x1xf32>
    %90 = tpu.reciprocal %89 {approx = true} : vector<8x1xf32> -> vector<8x1xf32>
    %91 = vector.broadcast %90 : vector<8x1xf32> to vector<8x8xf32>
    %92 = arith.mulf %87, %91 : vector<8x8xf32>
    %cst_30 = arith.constant dense<0.000000e+00> : vector<8x16xf32>
    %93 = tpu.matmul %92, %80, %cst_30 {dimension_numbers = #tpu.dot_dimension_numbers<[1], [0], [0], [1], [0, 0, 1, 1], [], []>} : vector<8x8xf32>, vector<8x16xf32>, vector<8x16xf32> -> vector<8x16xf32>
    %94 = vector.extract_strided_slice %73 {offsets = [0, 16], sizes = [8, 16], strides = [1, 1]} : vector<8x32xf32> to vector<8x16xf32>
    %cst_31 = arith.constant 2.500000e-01 : f32
    %95 = vector.broadcast %cst_31 : f32 to vector<8x16xf32>
    %96 = arith.mulf %94, %95 : vector<8x16xf32>
    %97 = vector.extract_strided_slice %74 {offsets = [0, 16], sizes = [8, 16], strides = [1, 1]} : vector<8x32xf32> to vector<8x16xf32>
    %98 = vector.extract_strided_slice %75 {offsets = [0, 16], sizes = [8, 16], strides = [1, 1]} : vector<8x32xf32> to vector<8x16xf32>
    %99 = tpu.transpose %97, [1, 0] : vector<8x16xf32> -> vector<16x8xf32>
    %cst_32 = arith.constant dense<0.000000e+00> : vector<8x8xf32>
    %100 = tpu.matmul %96, %99, %cst_32 {dimension_numbers = #tpu.dot_dimension_numbers<[1], [0], [0], [1], [0, 0, 1, 1], [], []>} : vector<8x16xf32>, vector<16x8xf32>, vector<8x8xf32> -> vector<8x8xf32>
    %cst_33 = arith.constant dense<0xFF800000> : vector<8xf32>
    %101 = vector.multi_reduction <maximumf>, %100, %cst_33 [1] : vector<8x8xf32> to vector<8xf32>
    %102 = vector.shape_cast %101 : vector<8xf32> to vector<8x1xf32>
    %103 = vector.broadcast %102 : vector<8x1xf32> to vector<8x8xf32>
    %104 = arith.subf %100, %103 : vector<8x8xf32>
    %105 = math.exp %104 : vector<8x8xf32>
    %cst_34 = arith.constant dense<0.000000e+00> : vector<8xf32>
    %106 = vector.multi_reduction <add>, %105, %cst_34 [1] : vector<8x8xf32> to vector<8xf32>
    %107 = vector.shape_cast %106 : vector<8xf32> to vector<8x1xf32>
    %108 = tpu.reciprocal %107 {approx = true} : vector<8x1xf32> -> vector<8x1xf32>
    %109 = vector.broadcast %108 : vector<8x1xf32> to vector<8x8xf32>
    %110 = arith.mulf %105, %109 : vector<8x8xf32>
    %cst_35 = arith.constant dense<0.000000e+00> : vector<8x16xf32>
    %111 = tpu.matmul %110, %98, %cst_35 {dimension_numbers = #tpu.dot_dimension_numbers<[1], [0], [0], [1], [0, 0, 1, 1], [], []>} : vector<8x8xf32>, vector<8x16xf32>, vector<8x16xf32> -> vector<8x16xf32>
    %112 = tpu.concatenate %93, %111 in 1 : vector<8x16xf32>, vector<8x16xf32> -> vector<8x32xf32>
    %113 = tpu.concatenate %72, %112 in 0 : vector<8x32xf32>, vector<8x32xf32> -> vector<16x32xf32>
    %c0_36 = arith.constant 0 : index
    %c0_37 = arith.constant 0 : index
    %c0_38 = arith.constant 0 : index
    %114 = vector.load %arg5[%c0_36, %c0_37, %c0_38] : memref<2x32x32xbf16, #tpu.memory_space<vmem>>, vector<1x32x32xbf16>
    %115 = vector.shape_cast %114 : vector<1x32x32xbf16> to vector<32x32xbf16>
    %116 = arith.truncf %113 : vector<16x32xf32> to vector<16x32xbf16>
    %cst_39 = arith.constant dense<0.000000e+00> : vector<16x32xf32>
    %117 = tpu.matmul %116, %115, %cst_39 {dimension_numbers = #tpu.dot_dimension_numbers<[1], [0], [0], [1], [0, 0, 1, 1], [], []>} : vector<16x32xbf16>, vector<32x32xbf16>, vector<16x32xf32> -> vector<16x32xf32>
    %c0_40 = arith.constant 0 : index
    %c0_41 = arith.constant 0 : index
    %c0_42 = arith.constant 0 : index
    %118 = vector.load %arg6[%c0_40, %c0_41, %c0_42] : memref<2x1x32xf32, #tpu.memory_space<vmem>>, vector<1x1x32xf32>
    %119 = vector.shape_cast %118 : vector<1x1x32xf32> to vector<1x32xf32>
    %120 = vector.broadcast %119 : vector<1x32xf32> to vector<16x32xf32>
    %121 = arith.addf %117, %120 : vector<16x32xf32>
    %122 = arith.addf %121, %24 : vector<16x32xf32>
    %c0_43 = arith.constant 0 : index
    %c0_44 = arith.constant 0 : index
    %c0_45 = arith.constant 0 : index
    %123 = vector.load %arg7[%c0_43, %c0_44, %c0_45] : memref<2x1x32xf32, #tpu.memory_space<vmem>>, vector<1x1x32xf32>
    %124 = vector.shape_cast %123 : vector<1x1x32xf32> to vector<1x32xf32>
    %c0_46 = arith.constant 0 : index
    %c0_47 = arith.constant 0 : index
    %c0_48 = arith.constant 0 : index
    %125 = vector.load %arg8[%c0_46, %c0_47, %c0_48] : memref<2x1x32xf32, #tpu.memory_space<vmem>>, vector<1x1x32xf32>
    %126 = vector.shape_cast %125 : vector<1x1x32xf32> to vector<1x32xf32>
    %cst_49 = arith.constant dense<0.000000e+00> : vector<16xf32>
    %127 = vector.multi_reduction <add>, %122, %cst_49 [1] : vector<16x32xf32> to vector<16xf32>
    %128 = vector.shape_cast %127 : vector<16xf32> to vector<16x1xf32>
    %cst_50 = arith.constant 3.200000e+01 : f32
    %129 = vector.broadcast %cst_50 : f32 to vector<16x1xf32>
    %130 = arith.divf %128, %129 : vector<16x1xf32>
    %131 = vector.broadcast %130 : vector<16x1xf32> to vector<16x32xf32>
    %132 = arith.subf %122, %131 : vector<16x32xf32>
    %133 = arith.mulf %132, %132 : vector<16x32xf32>
    %cst_51 = arith.constant dense<0.000000e+00> : vector<16xf32>
    %134 = vector.multi_reduction <add>, %133, %cst_51 [1] : vector<16x32xf32> to vector<16xf32>
    %135 = vector.shape_cast %134 : vector<16xf32> to vector<16x1xf32>
    %cst_52 = arith.constant 3.200000e+01 : f32
    %136 = vector.broadcast %cst_52 : f32 to vector<16x1xf32>
    %137 = arith.divf %135, %136 : vector<16x1xf32>
    %138 = vector.broadcast %130 : vector<16x1xf32> to vector<16x32xf32>
    %139 = arith.subf %122, %138 : vector<16x32xf32>
    %cst_53 = arith.constant 9.99999996E-13 : f32
    %140 = vector.broadcast %cst_53 : f32 to vector<16x1xf32>
    %141 = arith.addf %137, %140 : vector<16x1xf32>
    %142 = math.rsqrt %141 : vector<16x1xf32>
    %143 = vector.broadcast %142 : vector<16x1xf32> to vector<16x32xf32>
    %144 = arith.mulf %139, %143 : vector<16x32xf32>
    %145 = vector.broadcast %124 : vector<1x32xf32> to vector<16x32xf32>
    %146 = arith.mulf %144, %145 : vector<16x32xf32>
    %147 = vector.broadcast %126 : vector<1x32xf32> to vector<16x32xf32>
    %148 = arith.addf %146, %147 : vector<16x32xf32>
    %c0_54 = arith.constant 0 : index
    %c0_55 = arith.constant 0 : index
    %c0_56 = arith.constant 0 : index
    %149 = vector.load %arg9[%c0_54, %c0_55, %c0_56] : memref<2x32x64xbf16, #tpu.memory_space<vmem>>, vector<1x32x64xbf16>
    %150 = vector.shape_cast %149 : vector<1x32x64xbf16> to vector<32x64xbf16>
    %151 = arith.truncf %148 : vector<16x32xf32> to vector<16x32xbf16>
    %cst_57 = arith.constant dense<0.000000e+00> : vector<16x64xf32>
    %152 = tpu.matmul %151, %150, %cst_57 {dimension_numbers = #tpu.dot_dimension_numbers<[1], [0], [0], [1], [0, 0, 1, 1], [], []>} : vector<16x32xbf16>, vector<32x64xbf16>, vector<16x64xf32> -> vector<16x64xf32>
    %c0_58 = arith.constant 0 : index
    %c0_59 = arith.constant 0 : index
    %c0_60 = arith.constant 0 : index
    %153 = vector.load %arg10[%c0_58, %c0_59, %c0_60] : memref<2x1x64xf32, #tpu.memory_space<vmem>>, vector<1x1x64xf32>
    %154 = vector.shape_cast %153 : vector<1x1x64xf32> to vector<1x64xf32>
    %155 = vector.broadcast %154 : vector<1x64xf32> to vector<16x64xf32>
    %156 = arith.addf %152, %155 : vector<16x64xf32>
    %cst_61 = arith.constant 5.000000e-01 : f32
    %157 = vector.broadcast %cst_61 : f32 to vector<16x64xf32>
    %158 = arith.mulf %157, %156 : vector<16x64xf32>
    %cst_62 = arith.constant 4.471500e-02 : f32
    %159 = vector.broadcast %cst_62 : f32 to vector<16x64xf32>
    %160 = arith.mulf %159, %156 : vector<16x64xf32>
    %161 = arith.mulf %160, %156 : vector<16x64xf32>
    %162 = arith.mulf %161, %156 : vector<16x64xf32>
    %163 = arith.addf %156, %162 : vector<16x64xf32>
    %cst_63 = arith.constant 0.797884583 : f32
    %164 = vector.broadcast %cst_63 : f32 to vector<16x64xf32>
    %165 = arith.mulf %164, %163 : vector<16x64xf32>
    %166 = math.tanh %165 : vector<16x64xf32>
    %cst_64 = arith.constant 1.000000e+00 : f32
    %167 = vector.broadcast %cst_64 : f32 to vector<16x64xf32>
    %168 = arith.addf %167, %166 : vector<16x64xf32>
    %169 = arith.mulf %158, %168 : vector<16x64xf32>
    %c0_65 = arith.constant 0 : index
    %c0_66 = arith.constant 0 : index
    %c0_67 = arith.constant 0 : index
    %170 = vector.load %arg11[%c0_65, %c0_66, %c0_67] : memref<2x64x32xbf16, #tpu.memory_space<vmem>>, vector<1x64x32xbf16>
    %171 = vector.shape_cast %170 : vector<1x64x32xbf16> to vector<64x32xbf16>
    %172 = arith.truncf %169 : vector<16x64xf32> to vector<16x64xbf16>
    %cst_68 = arith.constant dense<0.000000e+00> : vector<16x32xf32>
    %173 = tpu.matmul %172, %171, %cst_68 {dimension_numbers = #tpu.dot_dimension_numbers<[1], [0], [0], [1], [0, 0, 1, 1], [], []>} : vector<16x64xbf16>, vector<64x32xbf16>, vector<16x32xf32> -> vector<16x32xf32>
    %c0_69 = arith.constant 0 : index
    %c0_70 = arith.constant 0 : index
    %c0_71 = arith.constant 0 : index
    %174 = vector.load %arg12[%c0_69, %c0_70, %c0_71] : memref<2x1x32xf32, #tpu.memory_space<vmem>>, vector<1x1x32xf32>
    %175 = vector.shape_cast %174 : vector<1x1x32xf32> to vector<1x32xf32>
    %176 = vector.broadcast %175 : vector<1x32xf32> to vector<16x32xf32>
    %177 = arith.addf %173, %176 : vector<16x32xf32>
    %178 = arith.addf %177, %148 : vector<16x32xf32>
    %c0_72 = arith.constant 0 : index
    %c0_73 = arith.constant 0 : index
    %c0_74 = arith.constant 0 : index
    %179 = vector.load %arg13[%c0_72, %c0_73, %c0_74] : memref<2x1x32xf32, #tpu.memory_space<vmem>>, vector<1x1x32xf32>
    %180 = vector.shape_cast %179 : vector<1x1x32xf32> to vector<1x32xf32>
    %c0_75 = arith.constant 0 : index
    %c0_76 = arith.constant 0 : index
    %c0_77 = arith.constant 0 : index
    %181 = vector.load %arg14[%c0_75, %c0_76, %c0_77] : memref<2x1x32xf32, #tpu.memory_space<vmem>>, vector<1x1x32xf32>
    %182 = vector.shape_cast %181 : vector<1x1x32xf32> to vector<1x32xf32>
    %cst_78 = arith.constant dense<0.000000e+00> : vector<16xf32>
    %183 = vector.multi_reduction <add>, %178, %cst_78 [1] : vector<16x32xf32> to vector<16xf32>
    %184 = vector.shape_cast %183 : vector<16xf32> to vector<16x1xf32>
    %cst_79 = arith.constant 3.200000e+01 : f32
    %185 = vector.broadcast %cst_79 : f32 to vector<16x1xf32>
    %186 = arith.divf %184, %185 : vector<16x1xf32>
    %187 = vector.broadcast %186 : vector<16x1xf32> to vector<16x32xf32>
    %188 = arith.subf %178, %187 : vector<16x32xf32>
    %189 = arith.mulf %188, %188 : vector<16x32xf32>
    %cst_80 = arith.constant dense<0.000000e+00> : vector<16xf32>
    %190 = vector.multi_reduction <add>, %189, %cst_80 [1] : vector<16x32xf32> to vector<16xf32>
    %191 = vector.shape_cast %190 : vector<16xf32> to vector<16x1xf32>
    %cst_81 = arith.constant 3.200000e+01 : f32
    %192 = vector.broadcast %cst_81 : f32 to vector<16x1xf32>
    %193 = arith.divf %191, %192 : vector<16x1xf32>
    %194 = vector.broadcast %186 : vector<16x1xf32> to vector<16x32xf32>
    %195 = arith.subf %178, %194 : vector<16x32xf32>
    %cst_82 = arith.constant 9.99999996E-13 : f32
    %196 = vector.broadcast %cst_82 : f32 to vector<16x1xf32>
    %197 = arith.addf %193, %196 : vector<16x1xf32>
    %198 = math.rsqrt %197 : vector<16x1xf32>
    %199 = vector.broadcast %198 : vector<16x1xf32> to vector<16x32xf32>
    %200 = arith.mulf %195, %199 : vector<16x32xf32>
    %201 = vector.broadcast %180 : vector<1x32xf32> to vector<16x32xf32>
    %202 = arith.mulf %200, %201 : vector<16x32xf32>
    %203 = vector.broadcast %182 : vector<1x32xf32> to vector<16x32xf32>
    %204 = arith.addf %202, %203 : vector<16x32xf32>
    %c1 = arith.constant 1 : index
    %c0_83 = arith.constant 0 : index
    %c0_84 = arith.constant 0 : index
    %205 = vector.load %arg3[%c1, %c0_83, %c0_84] : memref<2x32x96xbf16, #tpu.memory_space<vmem>>, vector<1x32x96xbf16>
    %206 = vector.shape_cast %205 : vector<1x32x96xbf16> to vector<32x96xbf16>
    %207 = arith.truncf %204 : vector<16x32xf32> to vector<16x32xbf16>
    %cst_85 = arith.constant dense<0.000000e+00> : vector<16x96xf32>
    %208 = tpu.matmul %207, %206, %cst_85 {dimension_numbers = #tpu.dot_dimension_numbers<[1], [0], [0], [1], [0, 0, 1, 1], [], []>} : vector<16x32xbf16>, vector<32x96xbf16>, vector<16x96xf32> -> vector<16x96xf32>
    %c1_86 = arith.constant 1 : index
    %c0_87 = arith.constant 0 : index
    %c0_88 = arith.constant 0 : index
    %209 = vector.load %arg4[%c1_86, %c0_87, %c0_88] : memref<2x1x96xf32, #tpu.memory_space<vmem>>, vector<1x1x96xf32>
    %210 = vector.shape_cast %209 : vector<1x1x96xf32> to vector<1x96xf32>
    %211 = vector.broadcast %210 : vector<1x96xf32> to vector<16x96xf32>
    %212 = arith.addf %208, %211 : vector<16x96xf32>
    %213 = vector.extract_strided_slice %212 {offsets = [0, 0], sizes = [8, 32], strides = [1, 1]} : vector<16x96xf32> to vector<8x32xf32>
    %214 = vector.extract_strided_slice %212 {offsets = [0, 32], sizes = [8, 32], strides = [1, 1]} : vector<16x96xf32> to vector<8x32xf32>
    %215 = vector.extract_strided_slice %212 {offsets = [0, 64], sizes = [8, 32], strides = [1, 1]} : vector<16x96xf32> to vector<8x32xf32>
    %216 = vector.extract_strided_slice %213 {offsets = [0, 0], sizes = [8, 16], strides = [1, 1]} : vector<8x32xf32> to vector<8x16xf32>
    %cst_89 = arith.constant 2.500000e-01 : f32
    %217 = vector.broadcast %cst_89 : f32 to vector<8x16xf32>
    %218 = arith.mulf %216, %217 : vector<8x16xf32>
    %219 = vector.extract_strided_slice %214 {offsets = [0, 0], sizes = [8, 16], strides = [1, 1]} : vector<8x32xf32> to vector<8x16xf32>
    %220 = vector.extract_strided_slice %215 {offsets = [0, 0], sizes = [8, 16], strides = [1, 1]} : vector<8x32xf32> to vector<8x16xf32>
    %221 = tpu.transpose %219, [1, 0] : vector<8x16xf32> -> vector<16x8xf32>
    %cst_90 = arith.constant dense<0.000000e+00> : vector<8x8xf32>
    %222 = tpu.matmul %218, %221, %cst_90 {dimension_numbers = #tpu.dot_dimension_numbers<[1], [0], [0], [1], [0, 0, 1, 1], [], []>} : vector<8x16xf32>, vector<16x8xf32>, vector<8x8xf32> -> vector<8x8xf32>
    %cst_91 = arith.constant dense<0xFF800000> : vector<8xf32>
    %223 = vector.multi_reduction <maximumf>, %222, %cst_91 [1] : vector<8x8xf32> to vector<8xf32>
    %224 = vector.shape_cast %223 : vector<8xf32> to vector<8x1xf32>
    %225 = vector.broadcast %224 : vector<8x1xf32> to vector<8x8xf32>
    %226 = arith.subf %222, %225 : vector<8x8xf32>
    %227 = math.exp %226 : vector<8x8xf32>
    %cst_92 = arith.constant dense<0.000000e+00> : vector<8xf32>
    %228 = vector.multi_reduction <add>, %227, %cst_92 [1] : vector<8x8xf32> to vector<8xf32>
    %229 = vector.shape_cast %228 : vector<8xf32> to vector<8x1xf32>
    %230 = tpu.reciprocal %229 {approx = true} : vector<8x1xf32> -> vector<8x1xf32>
    %231 = vector.broadcast %230 : vector<8x1xf32> to vector<8x8xf32>
    %232 = arith.mulf %227, %231 : vector<8x8xf32>
    %cst_93 = arith.constant dense<0.000000e+00> : vector<8x16xf32>
    %233 = tpu.matmul %232, %220, %cst_93 {dimension_numbers = #tpu.dot_dimension_numbers<[1], [0], [0], [1], [0, 0, 1, 1], [], []>} : vector<8x8xf32>, vector<8x16xf32>, vector<8x16xf32> -> vector<8x16xf32>
    %234 = vector.extract_strided_slice %213 {offsets = [0, 16], sizes = [8, 16], strides = [1, 1]} : vector<8x32xf32> to vector<8x16xf32>
    %cst_94 = arith.constant 2.500000e-01 : f32
    %235 = vector.broadcast %cst_94 : f32 to vector<8x16xf32>
    %236 = arith.mulf %234, %235 : vector<8x16xf32>
    %237 = vector.extract_strided_slice %214 {offsets = [0, 16], sizes = [8, 16], strides = [1, 1]} : vector<8x32xf32> to vector<8x16xf32>
    %238 = vector.extract_strided_slice %215 {offsets = [0, 16], sizes = [8, 16], strides = [1, 1]} : vector<8x32xf32> to vector<8x16xf32>
    %239 = tpu.transpose %237, [1, 0] : vector<8x16xf32> -> vector<16x8xf32>
    %cst_95 = arith.constant dense<0.000000e+00> : vector<8x8xf32>
    %240 = tpu.matmul %236, %239, %cst_95 {dimension_numbers = #tpu.dot_dimension_numbers<[1], [0], [0], [1], [0, 0, 1, 1], [], []>} : vector<8x16xf32>, vector<16x8xf32>, vector<8x8xf32> -> vector<8x8xf32>
    %cst_96 = arith.constant dense<0xFF800000> : vector<8xf32>
    %241 = vector.multi_reduction <maximumf>, %240, %cst_96 [1] : vector<8x8xf32> to vector<8xf32>
    %242 = vector.shape_cast %241 : vector<8xf32> to vector<8x1xf32>
    %243 = vector.broadcast %242 : vector<8x1xf32> to vector<8x8xf32>
    %244 = arith.subf %240, %243 : vector<8x8xf32>
    %245 = math.exp %244 : vector<8x8xf32>
    %cst_97 = arith.constant dense<0.000000e+00> : vector<8xf32>
    %246 = vector.multi_reduction <add>, %245, %cst_97 [1] : vector<8x8xf32> to vector<8xf32>
    %247 = vector.shape_cast %246 : vector<8xf32> to vector<8x1xf32>
    %248 = tpu.reciprocal %247 {approx = true} : vector<8x1xf32> -> vector<8x1xf32>
    %249 = vector.broadcast %248 : vector<8x1xf32> to vector<8x8xf32>
    %250 = arith.mulf %245, %249 : vector<8x8xf32>
    %cst_98 = arith.constant dense<0.000000e+00> : vector<8x16xf32>
    %251 = tpu.matmul %250, %238, %cst_98 {dimension_numbers = #tpu.dot_dimension_numbers<[1], [0], [0], [1], [0, 0, 1, 1], [], []>} : vector<8x8xf32>, vector<8x16xf32>, vector<8x16xf32> -> vector<8x16xf32>
    %252 = tpu.concatenate %233, %251 in 1 : vector<8x16xf32>, vector<8x16xf32> -> vector<8x32xf32>
    %253 = vector.extract_strided_slice %212 {offsets = [8, 0], sizes = [8, 32], strides = [1, 1]} : vector<16x96xf32> to vector<8x32xf32>
    %254 = vector.extract_strided_slice %212 {offsets = [8, 32], sizes = [8, 32], strides = [1, 1]} : vector<16x96xf32> to vector<8x32xf32>
    %255 = vector.extract_strided_slice %212 {offsets = [8, 64], sizes = [8, 32], strides = [1, 1]} : vector<16x96xf32> to vector<8x32xf32>
    %256 = vector.extract_strided_slice %253 {offsets = [0, 0], sizes = [8, 16], strides = [1, 1]} : vector<8x32xf32> to vector<8x16xf32>
    %cst_99 = arith.constant 2.500000e-01 : f32
    %257 = vector.broadcast %cst_99 : f32 to vector<8x16xf32>
    %258 = arith.mulf %256, %257 : vector<8x16xf32>
    %259 = vector.extract_strided_slice %254 {offsets = [0, 0], sizes = [8, 16], strides = [1, 1]} : vector<8x32xf32> to vector<8x16xf32>
    %260 = vector.extract_strided_slice %255 {offsets = [0, 0], sizes = [8, 16], strides = [1, 1]} : vector<8x32xf32> to vector<8x16xf32>
    %261 = tpu.transpose %259, [1, 0] : vector<8x16xf32> -> vector<16x8xf32>
    %cst_100 = arith.constant dense<0.000000e+00> : vector<8x8xf32>
    %262 = tpu.matmul %258, %261, %cst_100 {dimension_numbers = #tpu.dot_dimension_numbers<[1], [0], [0], [1], [0, 0, 1, 1], [], []>} : vector<8x16xf32>, vector<16x8xf32>, vector<8x8xf32> -> vector<8x8xf32>
    %cst_101 = arith.constant dense<0xFF800000> : vector<8xf32>
    %263 = vector.multi_reduction <maximumf>, %262, %cst_101 [1] : vector<8x8xf32> to vector<8xf32>
    %264 = vector.shape_cast %263 : vector<8xf32> to vector<8x1xf32>
    %265 = vector.broadcast %264 : vector<8x1xf32> to vector<8x8xf32>
    %266 = arith.subf %262, %265 : vector<8x8xf32>
    %267 = math.exp %266 : vector<8x8xf32>
    %cst_102 = arith.constant dense<0.000000e+00> : vector<8xf32>
    %268 = vector.multi_reduction <add>, %267, %cst_102 [1] : vector<8x8xf32> to vector<8xf32>
    %269 = vector.shape_cast %268 : vector<8xf32> to vector<8x1xf32>
    %270 = tpu.reciprocal %269 {approx = true} : vector<8x1xf32> -> vector<8x1xf32>
    %271 = vector.broadcast %270 : vector<8x1xf32> to vector<8x8xf32>
    %272 = arith.mulf %267, %271 : vector<8x8xf32>
    %cst_103 = arith.constant dense<0.000000e+00> : vector<8x16xf32>
    %273 = tpu.matmul %272, %260, %cst_103 {dimension_numbers = #tpu.dot_dimension_numbers<[1], [0], [0], [1], [0, 0, 1, 1], [], []>} : vector<8x8xf32>, vector<8x16xf32>, vector<8x16xf32> -> vector<8x16xf32>
    %274 = vector.extract_strided_slice %253 {offsets = [0, 16], sizes = [8, 16], strides = [1, 1]} : vector<8x32xf32> to vector<8x16xf32>
    %cst_104 = arith.constant 2.500000e-01 : f32
    %275 = vector.broadcast %cst_104 : f32 to vector<8x16xf32>
    %276 = arith.mulf %274, %275 : vector<8x16xf32>
    %277 = vector.extract_strided_slice %254 {offsets = [0, 16], sizes = [8, 16], strides = [1, 1]} : vector<8x32xf32> to vector<8x16xf32>
    %278 = vector.extract_strided_slice %255 {offsets = [0, 16], sizes = [8, 16], strides = [1, 1]} : vector<8x32xf32> to vector<8x16xf32>
    %279 = tpu.transpose %277, [1, 0] : vector<8x16xf32> -> vector<16x8xf32>
    %cst_105 = arith.constant dense<0.000000e+00> : vector<8x8xf32>
    %280 = tpu.matmul %276, %279, %cst_105 {dimension_numbers = #tpu.dot_dimension_numbers<[1], [0], [0], [1], [0, 0, 1, 1], [], []>} : vector<8x16xf32>, vector<16x8xf32>, vector<8x8xf32> -> vector<8x8xf32>
    %cst_106 = arith.constant dense<0xFF800000> : vector<8xf32>
    %281 = vector.multi_reduction <maximumf>, %280, %cst_106 [1] : vector<8x8xf32> to vector<8xf32>
    %282 = vector.shape_cast %281 : vector<8xf32> to vector<8x1xf32>
    %283 = vector.broadcast %282 : vector<8x1xf32> to vector<8x8xf32>
    %284 = arith.subf %280, %283 : vector<8x8xf32>
    %285 = math.exp %284 : vector<8x8xf32>
    %cst_107 = arith.constant dense<0.000000e+00> : vector<8xf32>
    %286 = vector.multi_reduction <add>, %285, %cst_107 [1] : vector<8x8xf32> to vector<8xf32>
    %287 = vector.shape_cast %286 : vector<8xf32> to vector<8x1xf32>
    %288 = tpu.reciprocal %287 {approx = true} : vector<8x1xf32> -> vector<8x1xf32>
    %289 = vector.broadcast %288 : vector<8x1xf32> to vector<8x8xf32>
    %290 = arith.mulf %285, %289 : vector<8x8xf32>
    %cst_108 = arith.constant dense<0.000000e+00> : vector<8x16xf32>
    %291 = tpu.matmul %290, %278, %cst_108 {dimension_numbers = #tpu.dot_dimension_numbers<[1], [0], [0], [1], [0, 0, 1, 1], [], []>} : vector<8x8xf32>, vector<8x16xf32>, vector<8x16xf32> -> vector<8x16xf32>
    %292 = tpu.concatenate %273, %291 in 1 : vector<8x16xf32>, vector<8x16xf32> -> vector<8x32xf32>
    %293 = tpu.concatenate %252, %292 in 0 : vector<8x32xf32>, vector<8x32xf32> -> vector<16x32xf32>
    %c1_109 = arith.constant 1 : index
    %c0_110 = arith.constant 0 : index
    %c0_111 = arith.constant 0 : index
    %294 = vector.load %arg5[%c1_109, %c0_110, %c0_111] : memref<2x32x32xbf16, #tpu.memory_space<vmem>>, vector<1x32x32xbf16>
    %295 = vector.shape_cast %294 : vector<1x32x32xbf16> to vector<32x32xbf16>
    %296 = arith.truncf %293 : vector<16x32xf32> to vector<16x32xbf16>
    %cst_112 = arith.constant dense<0.000000e+00> : vector<16x32xf32>
    %297 = tpu.matmul %296, %295, %cst_112 {dimension_numbers = #tpu.dot_dimension_numbers<[1], [0], [0], [1], [0, 0, 1, 1], [], []>} : vector<16x32xbf16>, vector<32x32xbf16>, vector<16x32xf32> -> vector<16x32xf32>
    %c1_113 = arith.constant 1 : index
    %c0_114 = arith.constant 0 : index
    %c0_115 = arith.constant 0 : index
    %298 = vector.load %arg6[%c1_113, %c0_114, %c0_115] : memref<2x1x32xf32, #tpu.memory_space<vmem>>, vector<1x1x32xf32>
    %299 = vector.shape_cast %298 : vector<1x1x32xf32> to vector<1x32xf32>
    %300 = vector.broadcast %299 : vector<1x32xf32> to vector<16x32xf32>
    %301 = arith.addf %297, %300 : vector<16x32xf32>
    %302 = arith.addf %301, %204 : vector<16x32xf32>
    %c1_116 = arith.constant 1 : index
    %c0_117 = arith.constant 0 : index
    %c0_118 = arith.constant 0 : index
    %303 = vector.load %arg7[%c1_116, %c0_117, %c0_118] : memref<2x1x32xf32, #tpu.memory_space<vmem>>, vector<1x1x32xf32>
    %304 = vector.shape_cast %303 : vector<1x1x32xf32> to vector<1x32xf32>
    %c1_119 = arith.constant 1 : index
    %c0_120 = arith.constant 0 : index
    %c0_121 = arith.constant 0 : index
    %305 = vector.load %arg8[%c1_119, %c0_120, %c0_121] : memref<2x1x32xf32, #tpu.memory_space<vmem>>, vector<1x1x32xf32>
    %306 = vector.shape_cast %305 : vector<1x1x32xf32> to vector<1x32xf32>
    %cst_122 = arith.constant dense<0.000000e+00> : vector<16xf32>
    %307 = vector.multi_reduction <add>, %302, %cst_122 [1] : vector<16x32xf32> to vector<16xf32>
    %308 = vector.shape_cast %307 : vector<16xf32> to vector<16x1xf32>
    %cst_123 = arith.constant 3.200000e+01 : f32
    %309 = vector.broadcast %cst_123 : f32 to vector<16x1xf32>
    %310 = arith.divf %308, %309 : vector<16x1xf32>
    %311 = vector.broadcast %310 : vector<16x1xf32> to vector<16x32xf32>
    %312 = arith.subf %302, %311 : vector<16x32xf32>
    %313 = arith.mulf %312, %312 : vector<16x32xf32>
    %cst_124 = arith.constant dense<0.000000e+00> : vector<16xf32>
    %314 = vector.multi_reduction <add>, %313, %cst_124 [1] : vector<16x32xf32> to vector<16xf32>
    %315 = vector.shape_cast %314 : vector<16xf32> to vector<16x1xf32>
    %cst_125 = arith.constant 3.200000e+01 : f32
    %316 = vector.broadcast %cst_125 : f32 to vector<16x1xf32>
    %317 = arith.divf %315, %316 : vector<16x1xf32>
    %318 = vector.broadcast %310 : vector<16x1xf32> to vector<16x32xf32>
    %319 = arith.subf %302, %318 : vector<16x32xf32>
    %cst_126 = arith.constant 9.99999996E-13 : f32
    %320 = vector.broadcast %cst_126 : f32 to vector<16x1xf32>
    %321 = arith.addf %317, %320 : vector<16x1xf32>
    %322 = math.rsqrt %321 : vector<16x1xf32>
    %323 = vector.broadcast %322 : vector<16x1xf32> to vector<16x32xf32>
    %324 = arith.mulf %319, %323 : vector<16x32xf32>
    %325 = vector.broadcast %304 : vector<1x32xf32> to vector<16x32xf32>
    %326 = arith.mulf %324, %325 : vector<16x32xf32>
    %327 = vector.broadcast %306 : vector<1x32xf32> to vector<16x32xf32>
    %328 = arith.addf %326, %327 : vector<16x32xf32>
    %c1_127 = arith.constant 1 : index
    %c0_128 = arith.constant 0 : index
    %c0_129 = arith.constant 0 : index
    %329 = vector.load %arg9[%c1_127, %c0_128, %c0_129] : memref<2x32x64xbf16, #tpu.memory_space<vmem>>, vector<1x32x64xbf16>
    %330 = vector.shape_cast %329 : vector<1x32x64xbf16> to vector<32x64xbf16>
    %331 = arith.truncf %328 : vector<16x32xf32> to vector<16x32xbf16>
    %cst_130 = arith.constant dense<0.000000e+00> : vector<16x64xf32>
    %332 = tpu.matmul %331, %330, %cst_130 {dimension_numbers = #tpu.dot_dimension_numbers<[1], [0], [0], [1], [0, 0, 1, 1], [], []>} : vector<16x32xbf16>, vector<32x64xbf16>, vector<16x64xf32> -> vector<16x64xf32>
    %c1_131 = arith.constant 1 : index
    %c0_132 = arith.constant 0 : index
    %c0_133 = arith.constant 0 : index
    %333 = vector.load %arg10[%c1_131, %c0_132, %c0_133] : memref<2x1x64xf32, #tpu.memory_space<vmem>>, vector<1x1x64xf32>
    %334 = vector.shape_cast %333 : vector<1x1x64xf32> to vector<1x64xf32>
    %335 = vector.broadcast %334 : vector<1x64xf32> to vector<16x64xf32>
    %336 = arith.addf %332, %335 : vector<16x64xf32>
    %cst_134 = arith.constant 5.000000e-01 : f32
    %337 = vector.broadcast %cst_134 : f32 to vector<16x64xf32>
    %338 = arith.mulf %337, %336 : vector<16x64xf32>
    %cst_135 = arith.constant 4.471500e-02 : f32
    %339 = vector.broadcast %cst_135 : f32 to vector<16x64xf32>
    %340 = arith.mulf %339, %336 : vector<16x64xf32>
    %341 = arith.mulf %340, %336 : vector<16x64xf32>
    %342 = arith.mulf %341, %336 : vector<16x64xf32>
    %343 = arith.addf %336, %342 : vector<16x64xf32>
    %cst_136 = arith.constant 0.797884583 : f32
    %344 = vector.broadcast %cst_136 : f32 to vector<16x64xf32>
    %345 = arith.mulf %344, %343 : vector<16x64xf32>
    %346 = math.tanh %345 : vector<16x64xf32>
    %cst_137 = arith.constant 1.000000e+00 : f32
    %347 = vector.broadcast %cst_137 : f32 to vector<16x64xf32>
    %348 = arith.addf %347, %346 : vector<16x64xf32>
    %349 = arith.mulf %338, %348 : vector<16x64xf32>
    %c1_138 = arith.constant 1 : index
    %c0_139 = arith.constant 0 : index
    %c0_140 = arith.constant 0 : index
    %350 = vector.load %arg11[%c1_138, %c0_139, %c0_140] : memref<2x64x32xbf16, #tpu.memory_space<vmem>>, vector<1x64x32xbf16>
    %351 = vector.shape_cast %350 : vector<1x64x32xbf16> to vector<64x32xbf16>
    %352 = arith.truncf %349 : vector<16x64xf32> to vector<16x64xbf16>
    %cst_141 = arith.constant dense<0.000000e+00> : vector<16x32xf32>
    %353 = tpu.matmul %352, %351, %cst_141 {dimension_numbers = #tpu.dot_dimension_numbers<[1], [0], [0], [1], [0, 0, 1, 1], [], []>} : vector<16x64xbf16>, vector<64x32xbf16>, vector<16x32xf32> -> vector<16x32xf32>
    %c1_142 = arith.constant 1 : index
    %c0_143 = arith.constant 0 : index
    %c0_144 = arith.constant 0 : index
    %354 = vector.load %arg12[%c1_142, %c0_143, %c0_144] : memref<2x1x32xf32, #tpu.memory_space<vmem>>, vector<1x1x32xf32>
    %355 = vector.shape_cast %354 : vector<1x1x32xf32> to vector<1x32xf32>
    %356 = vector.broadcast %355 : vector<1x32xf32> to vector<16x32xf32>
    %357 = arith.addf %353, %356 : vector<16x32xf32>
    %358 = arith.addf %357, %328 : vector<16x32xf32>
    %c1_145 = arith.constant 1 : index
    %c0_146 = arith.constant 0 : index
    %c0_147 = arith.constant 0 : index
    %359 = vector.load %arg13[%c1_145, %c0_146, %c0_147] : memref<2x1x32xf32, #tpu.memory_space<vmem>>, vector<1x1x32xf32>
    %360 = vector.shape_cast %359 : vector<1x1x32xf32> to vector<1x32xf32>
    %c1_148 = arith.constant 1 : index
    %c0_149 = arith.constant 0 : index
    %c0_150 = arith.constant 0 : index
    %361 = vector.load %arg14[%c1_148, %c0_149, %c0_150] : memref<2x1x32xf32, #tpu.memory_space<vmem>>, vector<1x1x32xf32>
    %362 = vector.shape_cast %361 : vector<1x1x32xf32> to vector<1x32xf32>
    %cst_151 = arith.constant dense<0.000000e+00> : vector<16xf32>
    %363 = vector.multi_reduction <add>, %358, %cst_151 [1] : vector<16x32xf32> to vector<16xf32>
    %364 = vector.shape_cast %363 : vector<16xf32> to vector<16x1xf32>
    %cst_152 = arith.constant 3.200000e+01 : f32
    %365 = vector.broadcast %cst_152 : f32 to vector<16x1xf32>
    %366 = arith.divf %364, %365 : vector<16x1xf32>
    %367 = vector.broadcast %366 : vector<16x1xf32> to vector<16x32xf32>
    %368 = arith.subf %358, %367 : vector<16x32xf32>
    %369 = arith.mulf %368, %368 : vector<16x32xf32>
    %cst_153 = arith.constant dense<0.000000e+00> : vector<16xf32>
    %370 = vector.multi_reduction <add>, %369, %cst_153 [1] : vector<16x32xf32> to vector<16xf32>
    %371 = vector.shape_cast %370 : vector<16xf32> to vector<16x1xf32>
    %cst_154 = arith.constant 3.200000e+01 : f32
    %372 = vector.broadcast %cst_154 : f32 to vector<16x1xf32>
    %373 = arith.divf %371, %372 : vector<16x1xf32>
    %374 = vector.broadcast %366 : vector<16x1xf32> to vector<16x32xf32>
    %375 = arith.subf %358, %374 : vector<16x32xf32>
    %cst_155 = arith.constant 9.99999996E-13 : f32
    %376 = vector.broadcast %cst_155 : f32 to vector<16x1xf32>
    %377 = arith.addf %373, %376 : vector<16x1xf32>
    %378 = math.rsqrt %377 : vector<16x1xf32>
    %379 = vector.broadcast %378 : vector<16x1xf32> to vector<16x32xf32>
    %380 = arith.mulf %375, %379 : vector<16x32xf32>
    %381 = vector.broadcast %360 : vector<1x32xf32> to vector<16x32xf32>
    %382 = arith.mulf %380, %381 : vector<16x32xf32>
    %383 = vector.broadcast %362 : vector<1x32xf32> to vector<16x32xf32>
    %384 = arith.addf %382, %383 : vector<16x32xf32>
    %385 = vector.extract_strided_slice %384 {offsets = [0, 0], sizes = [1, 32], strides = [1, 1]} : vector<16x32xf32> to vector<1x32xf32>
    %386 = vector.extract_strided_slice %384 {offsets = [8, 0], sizes = [1, 32], strides = [1, 1]} : vector<16x32xf32> to vector<1x32xf32>
    %387 = tpu.concatenate %385, %386 in 0 : vector<1x32xf32>, vector<1x32xf32> -> vector<2x32xf32>
    %c0_156 = arith.constant 0 : index
    %c0_157 = arith.constant 0 : index
    %388 = vector.load %arg15[%c0_156, %c0_157] : memref<32x32xbf16, #tpu.memory_space<vmem>>, vector<32x32xbf16>
    %389 = arith.truncf %387 : vector<2x32xf32> to vector<2x32xbf16>
    %cst_158 = arith.constant dense<0.000000e+00> : vector<2x32xf32>
    %390 = tpu.matmul %389, %388, %cst_158 {dimension_numbers = #tpu.dot_dimension_numbers<[1], [0], [0], [1], [0, 0, 1, 1], [], []>} : vector<2x32xbf16>, vector<32x32xbf16>, vector<2x32xf32> -> vector<2x32xf32>
    %c0_159 = arith.constant 0 : index
    %c0_160 = arith.constant 0 : index
    %391 = vector.load %arg16[%c0_159, %c0_160] : memref<1x32xf32, #tpu.memory_space<vmem>>, vector<1x32xf32>
    %392 = vector.broadcast %391 : vector<1x32xf32> to vector<2x32xf32>
    %393 = arith.addf %390, %392 : vector<2x32xf32>
    %394 = math.tanh %393 : vector<2x32xf32>
    %c0_161 = arith.constant 0 : index
    %c0_162 = arith.constant 0 : index
    %395 = vector.load %arg17[%c0_161, %c0_162] : memref<32x2xf32, #tpu.memory_space<vmem>>, vector<32x2xf32>
    %cst_163 = arith.constant dense<0.000000e+00> : vector<2x2xf32>
    %396 = tpu.matmul %394, %395, %cst_163 {dimension_numbers = #tpu.dot_dimension_numbers<[1], [0], [0], [1], [0, 0, 1, 1], [], []>} : vector<2x32xf32>, vector<32x2xf32>, vector<2x2xf32> -> vector<2x2xf32>
    %c0_164 = arith.constant 0 : index
    %c0_165 = arith.constant 0 : index
    %397 = vector.load %arg18[%c0_164, %c0_165] : memref<1x2xf32, #tpu.memory_space<vmem>>, vector<1x2xf32>
    %398 = vector.broadcast %397 : vector<1x2xf32> to vector<2x2xf32>
    %399 = arith.addf %396, %398 : vector<2x2xf32>
    %c0_166 = arith.constant 0 : index
    %c0_167 = arith.constant 0 : index
    %400 = vector.load %arg21[%c0_166, %c0_167] : memref<2x2xf32, #tpu.memory_space<vmem>>, vector<2x2xf32>
    tpu.vector_store %arg21[%c0_166, %c0_167], %399 {strides = array<i32>} : memref<2x2xf32, #tpu.memory_space<vmem>>, vector<2x2xf32>,
    %401 = tpu.iota {dimensions = array<i32: 1>} : vector<1x2xi32>
    %cst_168 = arith.constant 0.000000e+00 : f32
    %402 = vector.broadcast %cst_168 : f32 to vector<1x1xf32>
    %403 = vector.extract_strided_slice %399 {offsets = [0, 0], sizes = [1, 2], strides = [1, 1]} : vector<2x2xf32> to vector<1x2xf32>
    %cst_169 = arith.constant dense<0xFF800000> : vector<1xf32>
    %404 = vector.multi_reduction <maximumf>, %403, %cst_169 [1] : vector<1x2xf32> to vector<1xf32>
    %405 = vector.shape_cast %404 : vector<1xf32> to vector<1x1xf32>
    %406 = vector.broadcast %405 : vector<1x1xf32> to vector<1x2xf32>
    %407 = arith.subf %403, %406 : vector<1x2xf32>
    %408 = math.exp %407 : vector<1x2xf32>
    %cst_170 = arith.constant dense<0.000000e+00> : vector<1xf32>
    %409 = vector.multi_reduction <add>, %408, %cst_170 [1] : vector<1x2xf32> to vector<1xf32>
    %410 = vector.shape_cast %409 : vector<1xf32> to vector<1x1xf32>
    %411 = math.log %410 : vector<1x1xf32>
    %412 = arith.addf %411, %405 : vector<1x1xf32>
    %c0_171 = arith.constant 0 : index
    %413 = memref.load %arg19[%c0_171] : memref<2xi32, #tpu.memory_space<smem>>
    %414 = vector.broadcast %413 : i32 to vector<1x2xi32>
    %415 = arith.cmpi eq, %401, %414 : vector<1x2xi32>
    %416 = arith.extui %415 : vector<1x2xi1> to vector<1x2xi32>
    %417 = arith.sitofp %416 : vector<1x2xi32> to vector<1x2xf32>
    %418 = arith.mulf %403, %417 : vector<1x2xf32>
    %cst_172 = arith.constant dense<0.000000e+00> : vector<1xf32>
    %419 = vector.multi_reduction <add>, %418, %cst_172 [1] : vector<1x2xf32> to vector<1xf32>
    %420 = vector.shape_cast %419 : vector<1xf32> to vector<1x1xf32>
    %421 = arith.subf %412, %420 : vector<1x1xf32>
    %422 = arith.addf %402, %421 : vector<1x1xf32>
    %423 = vector.extract_strided_slice %399 {offsets = [1, 0], sizes = [1, 2], strides = [1, 1]} : vector<2x2xf32> to vector<1x2xf32>
    %cst_173 = arith.constant dense<0xFF800000> : vector<1xf32>
    %424 = vector.multi_reduction <maximumf>, %423, %cst_173 [1] : vector<1x2xf32> to vector<1xf32>
    %425 = vector.shape_cast %424 : vector<1xf32> to vector<1x1xf32>
    %426 = vector.broadcast %425 : vector<1x1xf32> to vector<1x2xf32>
    %427 = arith.subf %423, %426 : vector<1x2xf32>
    %428 = math.exp %427 : vector<1x2xf32>
    %cst_174 = arith.constant dense<0.000000e+00> : vector<1xf32>
    %429 = vector.multi_reduction <add>, %428, %cst_174 [1] : vector<1x2xf32> to vector<1xf32>
    %430 = vector.shape_cast %429 : vector<1xf32> to vector<1x1xf32>
    %431 = math.log %430 : vector<1x1xf32>
    %432 = arith.addf %431, %425 : vector<1x1xf32>
    %c1_175 = arith.constant 1 : index
    %433 = memref.load %arg19[%c1_175] : memref<2xi32, #tpu.memory_space<smem>>
    %434 = vector.broadcast %433 : i32 to vector<1x2xi32>
    %435 = arith.cmpi eq, %401, %434 : vector<1x2xi32>
    %436 = arith.extui %435 : vector<1x2xi1> to vector<1x2xi32>
    %437 = arith.sitofp %436 : vector<1x2xi32> to vector<1x2xf32>
    %438 = arith.mulf %423, %437 : vector<1x2xf32>
    %cst_176 = arith.constant dense<0.000000e+00> : vector<1xf32>
    %439 = vector.multi_reduction <add>, %438, %cst_176 [1] : vector<1x2xf32> to vector<1xf32>
    %440 = vector.shape_cast %439 : vector<1xf32> to vector<1x1xf32>
    %441 = arith.subf %432, %440 : vector<1x1xf32>
    %442 = arith.addf %422, %441 : vector<1x1xf32>
    %cst_177 = arith.constant 5.000000e-01 : f32
    %443 = vector.broadcast %cst_177 : f32 to vector<1x1xf32>
    %444 = arith.mulf %442, %443 : vector<1x1xf32>
    %c0_178 = arith.constant 0 : index
    %c0_179 = arith.constant 0 : index
    %445 = vector.load %arg20[%c0_178, %c0_179] : memref<1x1xf32, #tpu.memory_space<vmem>>, vector<1x1xf32>
    tpu.vector_store %arg20[%c0_178, %c0_179], %444 {strides = array<i32>} : memref<1x1xf32, #tpu.memory_space<vmem>>, vector<1x1xf32>,
    return
  }
}

</mosaic_0001>

<llo_original>
// kernel: bert_forward.1
$region0: #{bert_forward.1}
  #allocation0 [shape = 'u32[]', space=smem, size = 0x4, offset = 0x4, fixed_abs, tag = 'smem constant byte address 0x4 - core index']
  #allocation1 [shape = 'u32[144,128]{1,0:T(1,128)}', space=vmem, size = 0x12000, scoped, tag = 'internal scratch']
  %s0 = inlined_call_operand.vmem [shape: f32[16,32], index: 0, kind: input, shape index: {}]
  %s1 = inlined_call_operand.vmem [shape: f32[1,32], index: 1, kind: input, shape index: {}]
  %s2 = inlined_call_operand.vmem [shape: f32[1,32], index: 2, kind: input, shape index: {}]
  %s3 = inlined_call_operand.vmem [shape: bf16[2,32,96], index: 3, kind: input, shape index: {}]
  %s4 = inlined_call_operand.vmem [shape: f32[2,1,96], index: 4, kind: input, shape index: {}]
  %s5 = inlined_call_operand.vmem [shape: bf16[2,32,32], index: 5, kind: input, shape index: {}]
  %s6 = inlined_call_operand.vmem [shape: f32[2,1,32], index: 6, kind: input, shape index: {}]
  %s7 = inlined_call_operand.vmem [shape: f32[2,1,32], index: 7, kind: input, shape index: {}]
  %s8 = inlined_call_operand.vmem [shape: f32[2,1,32], index: 8, kind: input, shape index: {}]
  %s9 = inlined_call_operand.vmem [shape: bf16[2,32,64], index: 9, kind: input, shape index: {}]
  %s10 = inlined_call_operand.vmem [shape: f32[2,1,64], index: 10, kind: input, shape index: {}]
  %s11 = inlined_call_operand.vmem [shape: bf16[2,64,32], index: 11, kind: input, shape index: {}]
  %s12 = inlined_call_operand.vmem [shape: f32[2,1,32], index: 12, kind: input, shape index: {}]
  %s13 = inlined_call_operand.vmem [shape: f32[2,1,32], index: 13, kind: input, shape index: {}]
  %s14 = inlined_call_operand.vmem [shape: f32[2,1,32], index: 14, kind: input, shape index: {}]
  %s15 = inlined_call_operand.vmem [shape: bf16[32,32], index: 15, kind: input, shape index: {}]
  %s16 = inlined_call_operand.vmem [shape: f32[1,32], index: 16, kind: input, shape index: {}]
  %s17 = inlined_call_operand.vmem [shape: f32[32,2], index: 17, kind: input, shape index: {}]
  %s18 = inlined_call_operand.vmem [shape: f32[1,2], index: 18, kind: input, shape index: {}]
  %s19 = inlined_call_operand.vmem [shape: s32[2], index: 19, kind: input, shape index: {}]
  %s20 = inlined_call_operand.hbm [shape: f32[1,1], index: 20, kind: output, shape index: {0}]
  %s21 = inlined_call_operand.hbm [shape: f32[2,2], index: 21, kind: output, shape index: {1}]
  %22 = xla_tuple %s20, %s21
  %s23 = sld [smem:[#allocation0]]
  $region102: #{bert_forward.1} parent=0
    _
  %s25 = ssub.s32 1, %s23
  %s26 = scalar_select 0, %s25, %s23
  $region1: #{bert_forward.1} parent=0
    #allocation2 [shape = 'u8[512]{0}', space=smem, size = 0x200, scoped, tag = 'input window, operand 19, single buffered']
    #allocation3 [shape = 's32[1]{0}', space=sflag, size = 0x4, scoped, tag = 'scoped memory for bert_forward.1']
    #allocation4 [shape = 's32[1]{0}', space=sflag, size = 0x4, scoped, tag = 'scoped memory for bert_forward.1']
    #allocation5 [shape = 'u8[512]{0}', space=vmem, size = 0x400, scoped, tag = 'output window, operand 0, single buffered']
    #allocation6 [shape = 'u8[1024]{0}', space=vmem, size = 0x400, scoped, tag = 'output window, operand 1, single buffered']
    #allocation7 [shape = 's32[1]{0}', space=sflag, size = 0x4, scoped, tag = 'scoped memory for bert_forward.1']
    %27 = vsyncpa [#allocation4], 0
    %28 = vsyncpa [#allocation3], 0
    %29 = vsyncpa [#allocation7], 0
    // Predicated region
    $region2: #{bert_forward.1} parent=1 // pred_check
      _
    $region3: #{bert_forward.1} parent=1 // pred_check_branch
      %31 = sbr.rel (0) target = $region5
    $region4: #{bert_forward.1} parent=1 // pred_region
      _
    $region5: #{bert_forward.1} parent=1 // pred_fallthru
      _
    // Predicated region
    $region6: #{bert_forward.1} parent=1 // pred_check
      _
    $region7: #{bert_forward.1} parent=1 // pred_check_branch
      %33 = sbr.rel (0) target = $region9
    $region8: #{bert_forward.1} parent=1 // pred_region
      _
    $region9: #{bert_forward.1} parent=1 // pred_fallthru
      _
    // Predicated region
    $region10: #{bert_forward.1} parent=1 // pred_check
      _
    $region11: #{bert_forward.1} parent=1 // pred_check_branch
      %35 = sbr.rel (0) target = $region13
    $region12: #{bert_forward.1} parent=1 // pred_region
      _
    $region13: #{bert_forward.1} parent=1 // pred_fallthru
      _
    // Predicated region
    $region14: #{bert_forward.1} parent=1 // pred_check
      _
    $region15: #{bert_forward.1} parent=1 // pred_check_branch
      %37 = sbr.rel (0) target = $region17
    $region16: #{bert_forward.1} parent=1 // pred_region
      _
    $region17: #{bert_forward.1} parent=1 // pred_fallthru
      _
    // Predicated region
    $region18: #{bert_forward.1} parent=1 // pred_check
      _
    $region19: #{bert_forward.1} parent=1 // pred_check_branch
      %39 = sbr.rel (0) target = $region21
    $region20: #{bert_forward.1} parent=1 // pred_region
      _
    $region21: #{bert_forward.1} parent=1 // pred_fallthru
      _
    // Predicated region
    $region22: #{bert_forward.1} parent=1 // pred_check
      _
    $region23: #{bert_forward.1} parent=1 // pred_check_branch
      %41 = sbr.rel (0) target = $region25
    $region24: #{bert_forward.1} parent=1 // pred_region
      _
    $region25: #{bert_forward.1} parent=1 // pred_fallthru
      _
    // Predicated region
    $region26: #{bert_forward.1} parent=1 // pred_check
      _
    $region27: #{bert_forward.1} parent=1 // pred_check_branch
      %43 = sbr.rel (0) target = $region29
    $region28: #{bert_forward.1} parent=1 // pred_region
      _
    $region29: #{bert_forward.1} parent=1 // pred_fallthru
      _
    // Predicated region
    $region30: #{bert_forward.1} parent=1 // pred_check
      _
    $region31: #{bert_forward.1} parent=1 // pred_check_branch
      %45 = sbr.rel (0) target = $region33
    $region32: #{bert_forward.1} parent=1 // pred_region
      _
    $region33: #{bert_forward.1} parent=1 // pred_fallthru
      _
    // Predicated region
    $region34: #{bert_forward.1} parent=1 // pred_check
      _
    $region35: #{bert_forward.1} parent=1 // pred_check_branch
      %47 = sbr.rel (0) target = $region37
    $region36: #{bert_forward.1} parent=1 // pred_region
      _
    $region37: #{bert_forward.1} parent=1 // pred_fallthru
      _
    // Predicated region
    $region38: #{bert_forward.1} parent=1 // pred_check
      _
    $region39: #{bert_forward.1} parent=1 // pred_check_branch
      %49 = sbr.rel (0) target = $region41
    $region40: #{bert_forward.1} parent=1 // pred_region
      _
    $region41: #{bert_forward.1} parent=1 // pred_fallthru
      _
    // Predicated region
    $region42: #{bert_forward.1} parent=1 // pred_check
      _
    $region43: #{bert_forward.1} parent=1 // pred_check_branch
      %51 = sbr.rel (0) target = $region45
    $region44: #{bert_forward.1} parent=1 // pred_region
      _
    $region45: #{bert_forward.1} parent=1 // pred_fallthru
      _
    // Predicated region
    $region46: #{bert_forward.1} parent=1 // pred_check
      _
    $region47: #{bert_forward.1} parent=1 // pred_check_branch
      %53 = sbr.rel (0) target = $region49
    $region48: #{bert_forward.1} parent=1 // pred_region
      _
    $region49: #{bert_forward.1} parent=1 // pred_fallthru
      _
    // Predicated region
    $region50: #{bert_forward.1} parent=1 // pred_check
      _
    $region51: #{bert_forward.1} parent=1 // pred_check_branch
      %55 = sbr.rel (0) target = $region53
    $region52: #{bert_forward.1} parent=1 // pred_region
      _
    $region53: #{bert_forward.1} parent=1 // pred_fallthru
      _
    // Predicated region
    $region54: #{bert_forward.1} parent=1 // pred_check
      _
    $region55: #{bert_forward.1} parent=1 // pred_check_branch
      %57 = sbr.rel (0) target = $region57
    $region56: #{bert_forward.1} parent=1 // pred_region
      _
    $region57: #{bert_forward.1} parent=1 // pred_fallthru
      _
    // Predicated region
    $region58: #{bert_forward.1} parent=1 // pred_check
      _
    $region59: #{bert_forward.1} parent=1 // pred_check_branch
      %59 = sbr.rel (0) target = $region61
    $region60: #{bert_forward.1} parent=1 // pred_region
      _
    $region61: #{bert_forward.1} parent=1 // pred_fallthru
      _
    // Predicated region
    $region62: #{bert_forward.1} parent=1 // pred_check
      _
    $region63: #{bert_forward.1} parent=1 // pred_check_branch
      %61 = sbr.rel (0) target = $region65
    $region64: #{bert_forward.1} parent=1 // pred_region
      _
    $region65: #{bert_forward.1} parent=1 // pred_fallthru
      _
    // Predicated region
    $region66: #{bert_forward.1} parent=1 // pred_check
      _
    $region67: #{bert_forward.1} parent=1 // pred_check_branch
      %63 = sbr.rel (0) target = $region69
    $region68: #{bert_forward.1} parent=1 // pred_region
      _
    $region69: #{bert_forward.1} parent=1 // pred_fallthru
      _
    // Predicated region
    $region70: #{bert_forward.1} parent=1 // pred_check
      _
    $region71: #{bert_forward.1} parent=1 // pred_check_branch
      %65 = sbr.rel (0) target = $region73
    $region72: #{bert_forward.1} parent=1 // pred_region
      _
    $region73: #{bert_forward.1} parent=1 // pred_fallthru
      _
    // Predicated region
    $region74: #{bert_forward.1} parent=1 // pred_check
      _
    $region75: #{bert_forward.1} parent=1 // pred_check_branch
      %67 = sbr.rel (0) target = $region77
    $region76: #{bert_forward.1} parent=1 // pred_region
      _
    $region77: #{bert_forward.1} parent=1 // pred_fallthru
      _
    // Predicated region
    $region78: #{bert_forward.1} parent=1 // pred_check
      _
    $region79: #{bert_forward.1} parent=1 // pred_check_branch
      %69 = sbr.rel (0) target = $region81
    $region80: #{bert_forward.1} parent=1 // pred_region
      %s71 = ssub.s32 16, 16
      %72 = vsyncadd [#allocation4], %s71
      %s74 = sshll.u32 %s19, 4
      %s75 = int_to_ptr.vmem [resolvable:$true] %s74
      %77 = dma.vmem_to_smem %s75, 16, [#allocation2], [#allocation4]
    $region81: #{bert_forward.1} parent=1 // pred_fallthru
      _
    // Predicated region
    $region82: #{bert_forward.1} parent=1 // pred_check
      _
    $region83: #{bert_forward.1} parent=1 // pred_check_branch
      %79 = sbr.rel (0) target = $region85
    $region84: #{bert_forward.1} parent=1 // pred_region
      %80 = dma.done [#allocation4], 16
    $region85: #{bert_forward.1} parent=1 // pred_fallthru
      _
    %81 = sfence
    %v83 = vld [vmem:[%s0] sm:$0xff]
    %v84 = vld [vmem:[%s0 + $0x8] sm:$0xff]
    %v85 = vld [vmem:[%s1] sm:$0x1]
    %v86 = vld [vmem:[%s2] sm:$0x1]
    %vm87 = vcmask 261120
    %v88 = vsel %vm87, %v83, 0.0
    %89 = vadd.xlane.f32.xlu0 %v88
    %v90 = vpop.xlane.xlu0 %89
    %v91 = vsel %vm87, %v84, 0.0
    %92 = vadd.xlane.f32.xlu0 %v91
    %v93 = vpop.xlane.xlu0 %92
    %v94 = vrcp.pop 32.0
    %v95 = vmul.f32 %v90, %v94
    %v96 = vmul.f32 %v93, %v94
    %v97 = vsub.f32 %v83, %v95
    %v98 = vsub.f32 %v84, %v96
    %v99 = vmul.f32 %v97, %v97
    %v100 = vmul.f32 %v98, %v98
    %v101 = vsel %vm87, %v99, 0.0
    %102 = vadd.xlane.f32.xlu0 %v101
    %v103 = vpop.xlane.xlu0 %102
    %v104 = vsel %vm87, %v100, 0.0
    %105 = vadd.xlane.f32.xlu0 %v104
    %v106 = vpop.xlane.xlu0 %105
    %v107 = vmul.f32 %v103, %v94
    %v108 = vmul.f32 %v106, %v94
    %v109 = vadd.f32 %v107, 1e-12
    %v110 = vadd.f32 %v108, 1e-12
    %v111 = vrsqrt.pop %v109
    %v112 = vrsqrt.pop %v110
    %v113 = vmul.f32 %v97, %v111
    %v114 = vmul.f32 %v98, %v112
    %v116 = vlaneseq
    %v117 = vshrl.u32 %v116, 7
    %v118 = vsub.s32 0, %v117
    %v119 = vrot.slane %v85, %v118
    %v121 = vmul.f32 %v113, %v119
    %v122 = vmul.f32 %v114, %v119
    %v124 = vlaneseq
    %v125 = vshrl.u32 %v124, 7
    %v126 = vsub.s32 0, %v125
    %v127 = vrot.slane %v86, %v126
    %v129 = vadd.f32 %v121, %v127
    %v130 = vadd.f32 %v122, %v127
    %v131 = vld [vmem:[%s3] sm:$0xf]
    %v132 = vld [vmem:[%s3 + $0x4] sm:$0xf]
    %v133 = vld [vmem:[%s3 + $0x8] sm:$0xf]
    %v134 = vld [vmem:[%s3 + $0xc] sm:$0xf]
    %v135 = vpack.c.bf16 %v130, %v129
    %v136 = vld [vmem:[%s4] sm:$0x1]
    %v138 = vlaneseq
    %v139 = vshrl.u32 %v138, 7
    %v140 = vsub.s32 0, %v139
    %v141 = vrot.slane %v136, %v140
    %v147 = vunpack.c.l.b16 %v131
    %v148 = vunpack.c.l.b16 %v132
    %v149 = vunpack.c.l.b16 %v133
    %v150 = vunpack.c.l.b16 %v134
    %v151 = vpack.c.b16 %v148, %v147
    %v152 = vpack.c.b16 %v150, %v149
    %v156 = vsel %vm87, %v135, 0
    %158 = vmatprep.subr.bf16.mxu0 0
    %159 = vmatpush1.bf16.msra.mxu0 0
    %160 = vmatprep.subr.bf16.mxu0 0
    %161 = vmatpush1.bf16.msra.mxu0 0
    %162 = vmatprep.subr.bf16.mxu0 0
    %163 = vmatpush1.bf16.msra.mxu0 0
    %164 = vmatprep.subr.bf16.mxu0 0
    %165 = vmatpush1.bf16.msra.mxu0 0
    %166 = vmatprep.subr.bf16.mxu0 0
    %167 = vmatpush1.bf16.msra.mxu0 0
    %168 = vmatprep.subr.bf16.mxu0 0
    %169 = vmatpush1.bf16.msra.mxu0 0
    %170 = vmatprep.subr.bf16.mxu0 0
    %171 = vmatpush1.bf16.msra.mxu0 %v152
    %172 = vmatprep.subr.bf16.mxu0 0
    %173 = vmatpush1.bf16.msra.mxu0 %v151
    %174 = vmatprep.subr.bf16.mxu0 0
    %175 = vmatpush2.bf16.msra.mxu0 0
    %176 = vmatprep.subr.bf16.mxu0 0
    %177 = vmatpush2.bf16.msra.mxu0 0
    %178 = vmatprep.subr.bf16.mxu0 0
    %179 = vmatpush2.bf16.msra.mxu0 0
    %180 = vmatprep.subr.bf16.mxu0 0
    %181 = vmatpush2.bf16.msra.mxu0 0
    %182 = vmatprep.subr.bf16.mxu0 0
    %183 = vmatpush2.bf16.msra.mxu0 0
    %184 = vmatprep.subr.bf16.mxu0 0
    %185 = vmatpush2.bf16.msra.mxu0 0
    %186 = vmatprep.subr.bf16.mxu0 0
    %187 = vmatpush2.bf16.msra.mxu0 0
    %188 = vmatprep.subr.bf16.mxu0 0
    %189 = vmatpush2.bf16.msra.mxu0 0
    %190 = vmatprep.mubr.bf16.mxu0 0
    %191 = vmatmul.mubr.bf16.gmra.mxu0 %v156
    %v192 = vpop.f32.mrf.mxu0
    %v193 = vadd.f32 %v141, %v192
    %v194 = vpop.f32.mrf.mxu0
    %v195 = vpop.f32.mrf.mxu0
    %v196 = vadd.f32 %v141, %v195
    %v197 = vpop.f32.mrf.mxu0
    %198 = vdwg.mxu0
    %v199 = vmul.f32 %v193, 0.25
    %201 = vrot.lane.b32.xlu0 %v193, 96
    %v202 = vpop.permute.xlu0 %201
    %vm203 = vcmask 130048
    %v205 = vsel %vm203, %v199, 0
    %v207 = vsel %vm203, %v202, 0
    %209 = vmatprep.subr.mxu0 0.0
    %210 = vmatpush1.xpose.msra.mxu0 0.0
    %211 = vmatprep.subr.mxu0 0.0
    %212 = vmatpush1.xpose.msra.mxu0 0.0
    %213 = vmatprep.subr.mxu0 0.0
    %214 = vmatpush1.xpose.msra.mxu0 0.0
    %215 = vmatprep.subr.mxu0 0.0
    %216 = vmatpush1.xpose.msra.mxu0 0.0
    %217 = vmatprep.subr.mxu0 0.0
    %218 = vmatpush1.xpose.msra.mxu0 0.0
    %219 = vmatprep.subr.mxu0 0.0
    %220 = vmatpush1.xpose.msra.mxu0 0.0
    %221 = vmatprep.subr.mxu0 0.0
    %222 = vmatpush1.xpose.msra.mxu0 0.0
    %223 = vmatprep.subr.mxu0 0.0
    %224 = vmatpush1.xpose.msra.mxu0 0.0
    %225 = vmatprep.subr.mxu0 0.0
    %226 = vmatpush1.xpose.msra.mxu0 0.0
    %227 = vmatprep.subr.mxu0 0.0
    %228 = vmatpush1.xpose.msra.mxu0 0.0
    %229 = vmatprep.subr.mxu0 0.0
    %230 = vmatpush1.xpose.msra.mxu0 0.0
    %231 = vmatprep.subr.mxu0 0.0
    %232 = vmatpush1.xpose.msra.mxu0 0.0
    %233 = vmatprep.subr.mxu0 0.0
    %234 = vmatpush1.xpose.msra.mxu0 0.0
    %235 = vmatprep.subr.mxu0 0.0
    %236 = vmatpush1.xpose.msra.mxu0 0.0
    %237 = vmatprep.subr.mxu0 0.0
    %238 = vmatpush1.xpose.msra.mxu0 0.0
    %239 = vmatprep.subr.mxu0 0.0
    %240 = vmatpush1.xpose.msra.mxu0 %v207
    %241 = vmatprep.subr.mxu0 0.0
    %242 = vmatpush2.xpose.msra.mxu0 0.0
    %243 = vmatprep.subr.mxu0 0.0
    %244 = vmatpush2.xpose.msra.mxu0 0.0
    %245 = vmatprep.subr.mxu0 0.0
    %246 = vmatpush2.xpose.msra.mxu0 0.0
    %247 = vmatprep.subr.mxu0 0.0
    %248 = vmatpush2.xpose.msra.mxu0 0.0
    %249 = vmatprep.subr.mxu0 0.0
    %250 = vmatpush2.xpose.msra.mxu0 0.0
    %251 = vmatprep.subr.mxu0 0.0
    %252 = vmatpush2.xpose.msra.mxu0 0.0
    %253 = vmatprep.subr.mxu0 0.0
    %254 = vmatpush2.xpose.msra.mxu0 0.0
    %255 = vmatprep.subr.mxu0 0.0
    %256 = vmatpush2.xpose.msra.mxu0 0.0
    %257 = vmatprep.subr.mxu0 0.0
    %258 = vmatpush2.xpose.msra.mxu0 0.0
    %259 = vmatprep.subr.mxu0 0.0
    %260 = vmatpush2.xpose.msra.mxu0 0.0
    %261 = vmatprep.subr.mxu0 0.0
    %262 = vmatpush2.xpose.msra.mxu0 0.0
    %263 = vmatprep.subr.mxu0 0.0
    %264 = vmatpush2.xpose.msra.mxu0 0.0
    %265 = vmatprep.subr.mxu0 0.0
    %266 = vmatpush2.xpose.msra.mxu0 0.0
    %267 = vmatprep.subr.mxu0 0.0
    %268 = vmatpush2.xpose.msra.mxu0 0.0
    %269 = vmatprep.subr.mxu0 0.0
    %270 = vmatpush2.xpose.msra.mxu0 0.0
    %271 = vmatprep.subr.mxu0 0.0
    %272 = vmatpush2.xpose.msra.mxu0 0.0
    %273 = vmatprep.mubr.f32.mxu0 0.0
    %274 = vmatmul.mubr.f32.gmra.mxu0 %v205
    %v275 = vpop.f32.mrf.mxu0
    %v276 = vadd.f32 0.0, %v275
    %v277 = vpop.f32.mrf.mxu0
    %278 = vdwg.mxu0
    %vm279 = vcmask 64512
    %v280 = vsel %vm279, %v276, -inf
    %281 = vmax.xlane.f32.xlu0 %v280
    %v282 = vpop.xlane.xlu0 %281
    %v283 = vsub.f32 %v276, %v282
    %v284 = vmul.f32 %v283, 1.442695
    %v285 = vpow.pop %v284
    %v286 = vsel %vm279, %v285, 0.0
    %287 = vadd.xlane.f32.xlu0 %v286
    %v288 = vpop.xlane.xlu0 %287
    %v289 = vrcp.pop %v288
    %v290 = vmul.f32 %v285, %v289
    %291 = vrot.lane.b32.xlu0 %v193, 64
    %v292 = vpop.permute.xlu0 %291
    %v295 = vsel %vm279, %v290, 0
    %297 = vmatprep.subr.mxu0 0.0
    %298 = vmatpush1.msra.mxu0 0.0
    %299 = vmatprep.subr.mxu0 0.0
    %300 = vmatpush1.msra.mxu0 0.0
    %301 = vmatprep.subr.mxu0 0.0
    %302 = vmatpush1.msra.mxu0 0.0
    %303 = vmatprep.subr.mxu0 0.0
    %304 = vmatpush1.msra.mxu0 0.0
    %305 = vmatprep.subr.mxu0 0.0
    %306 = vmatpush1.msra.mxu0 0.0
    %307 = vmatprep.subr.mxu0 0.0
    %308 = vmatpush1.msra.mxu0 0.0
    %309 = vmatprep.subr.mxu0 0.0
    %310 = vmatpush1.msra.mxu0 0.0
    %311 = vmatprep.subr.mxu0 0.0
    %312 = vmatpush1.msra.mxu0 0.0
    %313 = vmatprep.subr.mxu0 0.0
    %314 = vmatpush1.msra.mxu0 0.0
    %315 = vmatprep.subr.mxu0 0.0
    %316 = vmatpush1.msra.mxu0 0.0
    %317 = vmatprep.subr.mxu0 0.0
    %318 = vmatpush1.msra.mxu0 0.0
    %319 = vmatprep.subr.mxu0 0.0
    %320 = vmatpush1.msra.mxu0 0.0
    %321 = vmatprep.subr.mxu0 0.0
    %322 = vmatpush1.msra.mxu0 0.0
    %323 = vmatprep.subr.mxu0 0.0
    %324 = vmatpush1.msra.mxu0 0.0
    %325 = vmatprep.subr.mxu0 0.0
    %326 = vmatpush1.msra.mxu0 0.0
    %327 = vmatprep.subr.mxu0 0.0
    %328 = vmatpush1.msra.mxu0 %v292
    %329 = vmatprep.subr.mxu0 0.0
    %330 = vmatpush2.msra.mxu0 0.0
    %331 = vmatprep.subr.mxu0 0.0
    %332 = vmatpush2.msra.mxu0 0.0
    %333 = vmatprep.subr.mxu0 0.0
    %334 = vmatpush2.msra.mxu0 0.0
    %335 = vmatprep.subr.mxu0 0.0
    %336 = vmatpush2.msra.mxu0 0.0
    %337 = vmatprep.subr.mxu0 0.0
    %338 = vmatpush2.msra.mxu0 0.0
    %339 = vmatprep.subr.mxu0 0.0
    %340 = vmatpush2.msra.mxu0 0.0
    %341 = vmatprep.subr.mxu0 0.0
    %342 = vmatpush2.msra.mxu0 0.0
    %343 = vmatprep.subr.mxu0 0.0
    %344 = vmatpush2.msra.mxu0 0.0
    %345 = vmatprep.subr.mxu0 0.0
    %346 = vmatpush2.msra.mxu0 0.0
    %347 = vmatprep.subr.mxu0 0.0
    %348 = vmatpush2.msra.mxu0 0.0
    %349 = vmatprep.subr.mxu0 0.0
    %350 = vmatpush2.msra.mxu0 0.0
    %351 = vmatprep.subr.mxu0 0.0
    %352 = vmatpush2.msra.mxu0 0.0
    %353 = vmatprep.subr.mxu0 0.0
    %354 = vmatpush2.msra.mxu0 0.0
    %355 = vmatprep.subr.mxu0 0.0
    %356 = vmatpush2.msra.mxu0 0.0
    %357 = vmatprep.subr.mxu0 0.0
    %358 = vmatpush2.msra.mxu0 0.0
    %359 = vmatprep.subr.mxu0 0.0
    %360 = vmatpush2.msra.mxu0 0.0
    %361 = vmatprep.mubr.f32.mxu0 0.0
    %362 = vmatmul.mubr.f32.gmra.mxu0 %v295
    %v363 = vpop.f32.mrf.mxu0
    %v364 = vadd.f32 0.0, %v363
    %v365 = vpop.f32.mrf.mxu0
    %366 = vdwg.mxu0
    %367 = vrot.lane.b32.xlu0 %v199, 112
    %v368 = vpop.permute.xlu0 %367
    %369 = vrot.lane.b32.xlu0 %v193, 80
    %v370 = vpop.permute.xlu0 %369
    %v371 = vsel %vm203, %v368, 0
    %v373 = vsel %vm203, %v370, 0
    %375 = vmatprep.subr.mxu0 0.0
    %376 = vmatpush1.xpose.msra.mxu0 0.0
    %377 = vmatprep.subr.mxu0 0.0
    %378 = vmatpush1.xpose.msra.mxu0 0.0
    %379 = vmatprep.subr.mxu0 0.0
    %380 = vmatpush1.xpose.msra.mxu0 0.0
    %381 = vmatprep.subr.mxu0 0.0
    %382 = vmatpush1.xpose.msra.mxu0 0.0
    %383 = vmatprep.subr.mxu0 0.0
    %384 = vmatpush1.xpose.msra.mxu0 0.0
    %385 = vmatprep.subr.mxu0 0.0
    %386 = vmatpush1.xpose.msra.mxu0 0.0
    %387 = vmatprep.subr.mxu0 0.0
    %388 = vmatpush1.xpose.msra.mxu0 0.0
    %389 = vmatprep.subr.mxu0 0.0
    %390 = vmatpush1.xpose.msra.mxu0 0.0
    %391 = vmatprep.subr.mxu0 0.0
    %392 = vmatpush1.xpose.msra.mxu0 0.0
    %393 = vmatprep.subr.mxu0 0.0
    %394 = vmatpush1.xpose.msra.mxu0 0.0
    %395 = vmatprep.subr.mxu0 0.0
    %396 = vmatpush1.xpose.msra.mxu0 0.0
    %397 = vmatprep.subr.mxu0 0.0
    %398 = vmatpush1.xpose.msra.mxu0 0.0
    %399 = vmatprep.subr.mxu0 0.0
    %400 = vmatpush1.xpose.msra.mxu0 0.0
    %401 = vmatprep.subr.mxu0 0.0
    %402 = vmatpush1.xpose.msra.mxu0 0.0
    %403 = vmatprep.subr.mxu0 0.0
    %404 = vmatpush1.xpose.msra.mxu0 0.0
    %405 = vmatprep.subr.mxu0 0.0
    %406 = vmatpush1.xpose.msra.mxu0 %v373
    %407 = vmatprep.subr.mxu0 0.0
    %408 = vmatpush2.xpose.msra.mxu0 0.0
    %409 = vmatprep.subr.mxu0 0.0
    %410 = vmatpush2.xpose.msra.mxu0 0.0
    %411 = vmatprep.subr.mxu0 0.0
    %412 = vmatpush2.xpose.msra.mxu0 0.0
    %413 = vmatprep.subr.mxu0 0.0
    %414 = vmatpush2.xpose.msra.mxu0 0.0
    %415 = vmatprep.subr.mxu0 0.0
    %416 = vmatpush2.xpose.msra.mxu0 0.0
    %417 = vmatprep.subr.mxu0 0.0
    %418 = vmatpush2.xpose.msra.mxu0 0.0
    %419 = vmatprep.subr.mxu0 0.0
    %420 = vmatpush2.xpose.msra.mxu0 0.0
    %421 = vmatprep.subr.mxu0 0.0
    %422 = vmatpush2.xpose.msra.mxu0 0.0
    %423 = vmatprep.subr.mxu0 0.0
    %424 = vmatpush2.xpose.msra.mxu0 0.0
    %425 = vmatprep.subr.mxu0 0.0
    %426 = vmatpush2.xpose.msra.mxu0 0.0
    %427 = vmatprep.subr.mxu0 0.0
    %428 = vmatpush2.xpose.msra.mxu0 0.0
    %429 = vmatprep.subr.mxu0 0.0
    %430 = vmatpush2.xpose.msra.mxu0 0.0
    %431 = vmatprep.subr.mxu0 0.0
    %432 = vmatpush2.xpose.msra.mxu0 0.0
    %433 = vmatprep.subr.mxu0 0.0
    %434 = vmatpush2.xpose.msra.mxu0 0.0
    %435 = vmatprep.subr.mxu0 0.0
    %436 = vmatpush2.xpose.msra.mxu0 0.0
    %437 = vmatprep.subr.mxu0 0.0
    %438 = vmatpush2.xpose.msra.mxu0 0.0
    %439 = vmatprep.mubr.f32.mxu0 0.0
    %440 = vmatmul.mubr.f32.gmra.mxu0 %v371
    %v441 = vpop.f32.mrf.mxu0
    %v442 = vadd.f32 0.0, %v441
    %v443 = vpop.f32.mrf.mxu0
    %444 = vdwg.mxu0
    %v445 = vsel %vm279, %v442, -inf
    %446 = vmax.xlane.f32.xlu0 %v445
    %v447 = vpop.xlane.xlu0 %446
    %v448 = vsub.f32 %v442, %v447
    %v449 = vmul.f32 %v448, 1.442695
    %v450 = vpow.pop %v449
    %v451 = vsel %vm279, %v450, 0.0
    %452 = vadd.xlane.f32.xlu0 %v451
    %v453 = vpop.xlane.xlu0 %452
    %v454 = vrcp.pop %v453
    %v455 = vmul.f32 %v450, %v454
    %456 = vrot.lane.b32.xlu0 %v193, 48
    %v457 = vpop.permute.xlu0 %456
    %v460 = vsel %vm279, %v455, 0
    %462 = vmatprep.subr.mxu0 0.0
    %463 = vmatpush1.msra.mxu0 0.0
    %464 = vmatprep.subr.mxu0 0.0
    %465 = vmatpush1.msra.mxu0 0.0
    %466 = vmatprep.subr.mxu0 0.0
    %467 = vmatpush1.msra.mxu0 0.0
    %468 = vmatprep.subr.mxu0 0.0
    %469 = vmatpush1.msra.mxu0 0.0
    %470 = vmatprep.subr.mxu0 0.0
    %471 = vmatpush1.msra.mxu0 0.0
    %472 = vmatprep.subr.mxu0 0.0
    %473 = vmatpush1.msra.mxu0 0.0
    %474 = vmatprep.subr.mxu0 0.0
    %475 = vmatpush1.msra.mxu0 0.0
    %476 = vmatprep.subr.mxu0 0.0
    %477 = vmatpush1.msra.mxu0 0.0
    %478 = vmatprep.subr.mxu0 0.0
    %479 = vmatpush1.msra.mxu0 0.0
    %480 = vmatprep.subr.mxu0 0.0
    %481 = vmatpush1.msra.mxu0 0.0
    %482 = vmatprep.subr.mxu0 0.0
    %483 = vmatpush1.msra.mxu0 0.0
    %484 = vmatprep.subr.mxu0 0.0
    %485 = vmatpush1.msra.mxu0 0.0
    %486 = vmatprep.subr.mxu0 0.0
    %487 = vmatpush1.msra.mxu0 0.0
    %488 = vmatprep.subr.mxu0 0.0
    %489 = vmatpush1.msra.mxu0 0.0
    %490 = vmatprep.subr.mxu0 0.0
    %491 = vmatpush1.msra.mxu0 0.0
    %492 = vmatprep.subr.mxu0 0.0
    %493 = vmatpush1.msra.mxu0 %v457
    %494 = vmatprep.subr.mxu0 0.0
    %495 = vmatpush2.msra.mxu0 0.0
    %496 = vmatprep.subr.mxu0 0.0
    %497 = vmatpush2.msra.mxu0 0.0
    %498 = vmatprep.subr.mxu0 0.0
    %499 = vmatpush2.msra.mxu0 0.0
    %500 = vmatprep.subr.mxu0 0.0
    %501 = vmatpush2.msra.mxu0 0.0
    %502 = vmatprep.subr.mxu0 0.0
    %503 = vmatpush2.msra.mxu0 0.0
    %504 = vmatprep.subr.mxu0 0.0
    %505 = vmatpush2.msra.mxu0 0.0
    %506 = vmatprep.subr.mxu0 0.0
    %507 = vmatpush2.msra.mxu0 0.0
    %508 = vmatprep.subr.mxu0 0.0
    %509 = vmatpush2.msra.mxu0 0.0
    %510 = vmatprep.subr.mxu0 0.0
    %511 = vmatpush2.msra.mxu0 0.0
    %512 = vmatprep.subr.mxu0 0.0
    %513 = vmatpush2.msra.mxu0 0.0
    %514 = vmatprep.subr.mxu0 0.0
    %515 = vmatpush2.msra.mxu0 0.0
    %516 = vmatprep.subr.mxu0 0.0
    %517 = vmatpush2.msra.mxu0 0.0
    %518 = vmatprep.subr.mxu0 0.0
    %519 = vmatpush2.msra.mxu0 0.0
    %520 = vmatprep.subr.mxu0 0.0
    %521 = vmatpush2.msra.mxu0 0.0
    %522 = vmatprep.subr.mxu0 0.0
    %523 = vmatpush2.msra.mxu0 0.0
    %524 = vmatprep.subr.mxu0 0.0
    %525 = vmatpush2.msra.mxu0 0.0
    %526 = vmatprep.mubr.f32.mxu0 0.0
    %527 = vmatmul.mubr.f32.gmra.mxu0 %v460
    %v528 = vpop.f32.mrf.mxu0
    %v529 = vadd.f32 0.0, %v528
    %v530 = vpop.f32.mrf.mxu0
    %531 = vdwg.mxu0
    %533 = vrot.lane.b32.xlu0 %v529, 16
    %v534 = vpop.permute.xlu0 %533
    %v536 = vsel %vm203, %v364, %v534
    %v537 = vmul.f32 %v196, 0.25
    %539 = vrot.lane.b32.xlu0 %v196, 96
    %v540 = vpop.permute.xlu0 %539
    %v542 = vsel %vm203, %v537, 0
    %v544 = vsel %vm203, %v540, 0
    %546 = vmatprep.subr.mxu0 0.0
    %547 = vmatpush1.xpose.msra.mxu0 0.0
    %548 = vmatprep.subr.mxu0 0.0
    %549 = vmatpush1.xpose.msra.mxu0 0.0
    %550 = vmatprep.subr.mxu0 0.0
    %551 = vmatpush1.xpose.msra.mxu0 0.0
    %552 = vmatprep.subr.mxu0 0.0
    %553 = vmatpush1.xpose.msra.mxu0 0.0
    %554 = vmatprep.subr.mxu0 0.0
    %555 = vmatpush1.xpose.msra.mxu0 0.0
    %556 = vmatprep.subr.mxu0 0.0
    %557 = vmatpush1.xpose.msra.mxu0 0.0
    %558 = vmatprep.subr.mxu0 0.0
    %559 = vmatpush1.xpose.msra.mxu0 0.0
    %560 = vmatprep.subr.mxu0 0.0
    %561 = vmatpush1.xpose.msra.mxu0 0.0
    %562 = vmatprep.subr.mxu0 0.0
    %563 = vmatpush1.xpose.msra.mxu0 0.0
    %564 = vmatprep.subr.mxu0 0.0
    %565 = vmatpush1.xpose.msra.mxu0 0.0
    %566 = vmatprep.subr.mxu0 0.0
    %567 = vmatpush1.xpose.msra.mxu0 0.0
    %568 = vmatprep.subr.mxu0 0.0
    %569 = vmatpush1.xpose.msra.mxu0 0.0
    %570 = vmatprep.subr.mxu0 0.0
    %571 = vmatpush1.xpose.msra.mxu0 0.0
    %572 = vmatprep.subr.mxu0 0.0
    %573 = vmatpush1.xpose.msra.mxu0 0.0
    %574 = vmatprep.subr.mxu0 0.0
    %575 = vmatpush1.xpose.msra.mxu0 0.0
    %576 = vmatprep.subr.mxu0 0.0
    %577 = vmatpush1.xpose.msra.mxu0 %v544
    %578 = vmatprep.subr.mxu0 0.0
    %579 = vmatpush2.xpose.msra.mxu0 0.0
    %580 = vmatprep.subr.mxu0 0.0
    %581 = vmatpush2.xpose.msra.mxu0 0.0
    %582 = vmatprep.subr.mxu0 0.0
    %583 = vmatpush2.xpose.msra.mxu0 0.0
    %584 = vmatprep.subr.mxu0 0.0
    %585 = vmatpush2.xpose.msra.mxu0 0.0
    %586 = vmatprep.subr.mxu0 0.0
    %587 = vmatpush2.xpose.msra.mxu0 0.0
    %588 = vmatprep.subr.mxu0 0.0
    %589 = vmatpush2.xpose.msra.mxu0 0.0
    %590 = vmatprep.subr.mxu0 0.0
    %591 = vmatpush2.xpose.msra.mxu0 0.0
    %592 = vmatprep.subr.mxu0 0.0
    %593 = vmatpush2.xpose.msra.mxu0 0.0
    %594 = vmatprep.subr.mxu0 0.0
    %595 = vmatpush2.xpose.msra.mxu0 0.0
    %596 = vmatprep.subr.mxu0 0.0
    %597 = vmatpush2.xpose.msra.mxu0 0.0
    %598 = vmatprep.subr.mxu0 0.0
    %599 = vmatpush2.xpose.msra.mxu0 0.0
    %600 = vmatprep.subr.mxu0 0.0
    %601 = vmatpush2.xpose.msra.mxu0 0.0
    %602 = vmatprep.subr.mxu0 0.0
    %603 = vmatpush2.xpose.msra.mxu0 0.0
    %604 = vmatprep.subr.mxu0 0.0
    %605 = vmatpush2.xpose.msra.mxu0 0.0
    %606 = vmatprep.subr.mxu0 0.0
    %607 = vmatpush2.xpose.msra.mxu0 0.0
    %608 = vmatprep.subr.mxu0 0.0
    %609 = vmatpush2.xpose.msra.mxu0 0.0
    %610 = vmatprep.mubr.f32.mxu0 0.0
    %611 = vmatmul.mubr.f32.gmra.mxu0 %v542
    %v612 = vpop.f32.mrf.mxu0
    %v613 = vadd.f32 0.0, %v612
    %v614 = vpop.f32.mrf.mxu0
    %615 = vdwg.mxu0
    %v616 = vsel %vm279, %v613, -inf
    %617 = vmax.xlane.f32.xlu0 %v616
    %v618 = vpop.xlane.xlu0 %617
    %v619 = vsub.f32 %v613, %v618
    %v620 = vmul.f32 %v619, 1.442695
    %v621 = vpow.pop %v620
    %v622 = vsel %vm279, %v621, 0.0
    %623 = vadd.xlane.f32.xlu0 %v622
    %v624 = vpop.xlane.xlu0 %623
    %v625 = vrcp.pop %v624
    %v626 = vmul.f32 %v621, %v625
    %627 = vrot.lane.b32.xlu0 %v196, 64
    %v628 = vpop.permute.xlu0 %627
    %v631 = vsel %vm279, %v626, 0
    %633 = vmatprep.subr.mxu0 0.0
    %634 = vmatpush1.msra.mxu0 0.0
    %635 = vmatprep.subr.mxu0 0.0
    %636 = vmatpush1.msra.mxu0 0.0
    %637 = vmatprep.subr.mxu0 0.0
    %638 = vmatpush1.msra.mxu0 0.0
    %639 = vmatprep.subr.mxu0 0.0
    %640 = vmatpush1.msra.mxu0 0.0
    %641 = vmatprep.subr.mxu0 0.0
    %642 = vmatpush1.msra.mxu0 0.0
    %643 = vmatprep.subr.mxu0 0.0
    %644 = vmatpush1.msra.mxu0 0.0
    %645 = vmatprep.subr.mxu0 0.0
    %646 = vmatpush1.msra.mxu0 0.0
    %647 = vmatprep.subr.mxu0 0.0
    %648 = vmatpush1.msra.mxu0 0.0
    %649 = vmatprep.subr.mxu0 0.0
    %650 = vmatpush1.msra.mxu0 0.0
    %651 = vmatprep.subr.mxu0 0.0
    %652 = vmatpush1.msra.mxu0 0.0
    %653 = vmatprep.subr.mxu0 0.0
    %654 = vmatpush1.msra.mxu0 0.0
    %655 = vmatprep.subr.mxu0 0.0
    %656 = vmatpush1.msra.mxu0 0.0
    %657 = vmatprep.subr.mxu0 0.0
    %658 = vmatpush1.msra.mxu0 0.0
    %659 = vmatprep.subr.mxu0 0.0
    %660 = vmatpush1.msra.mxu0 0.0
    %661 = vmatprep.subr.mxu0 0.0
    %662 = vmatpush1.msra.mxu0 0.0
    %663 = vmatprep.subr.mxu0 0.0
    %664 = vmatpush1.msra.mxu0 %v628
    %665 = vmatprep.subr.mxu0 0.0
    %666 = vmatpush2.msra.mxu0 0.0
    %667 = vmatprep.subr.mxu0 0.0
    %668 = vmatpush2.msra.mxu0 0.0
    %669 = vmatprep.subr.mxu0 0.0
    %670 = vmatpush2.msra.mxu0 0.0
    %671 = vmatprep.subr.mxu0 0.0
    %672 = vmatpush2.msra.mxu0 0.0
    %673 = vmatprep.subr.mxu0 0.0
    %674 = vmatpush2.msra.mxu0 0.0
    %675 = vmatprep.subr.mxu0 0.0
    %676 = vmatpush2.msra.mxu0 0.0
    %677 = vmatprep.subr.mxu0 0.0
    %678 = vmatpush2.msra.mxu0 0.0
    %679 = vmatprep.subr.mxu0 0.0
    %680 = vmatpush2.msra.mxu0 0.0
    %681 = vmatprep.subr.mxu0 0.0
    %682 = vmatpush2.msra.mxu0 0.0
    %683 = vmatprep.subr.mxu0 0.0
    %684 = vmatpush2.msra.mxu0 0.0
    %685 = vmatprep.subr.mxu0 0.0
    %686 = vmatpush2.msra.mxu0 0.0
    %687 = vmatprep.subr.mxu0 0.0
    %688 = vmatpush2.msra.mxu0 0.0
    %689 = vmatprep.subr.mxu0 0.0
    %690 = vmatpush2.msra.mxu0 0.0
    %691 = vmatprep.subr.mxu0 0.0
    %692 = vmatpush2.msra.mxu0 0.0
    %693 = vmatprep.subr.mxu0 0.0
    %694 = vmatpush2.msra.mxu0 0.0
    %695 = vmatprep.subr.mxu0 0.0
    %696 = vmatpush2.msra.mxu0 0.0
    %697 = vmatprep.mubr.f32.mxu0 0.0
    %698 = vmatmul.mubr.f32.gmra.mxu0 %v631
    %v699 = vpop.f32.mrf.mxu0
    %v700 = vadd.f32 0.0, %v699
    %v701 = vpop.f32.mrf.mxu0
    %702 = vdwg.mxu0
    %703 = vrot.lane.b32.xlu0 %v537, 112
    %v704 = vpop.permute.xlu0 %703
    %705 = vrot.lane.b32.xlu0 %v196, 80
    %v706 = vpop.permute.xlu0 %705
    %v707 = vsel %vm203, %v704, 0
    %v709 = vsel %vm203, %v706, 0
    %711 = vmatprep.subr.mxu0 0.0
    %712 = vmatpush1.xpose.msra.mxu0 0.0
    %713 = vmatprep.subr.mxu0 0.0
    %714 = vmatpush1.xpose.msra.mxu0 0.0
    %715 = vmatprep.subr.mxu0 0.0
    %716 = vmatpush1.xpose.msra.mxu0 0.0
    %717 = vmatprep.subr.mxu0 0.0
    %718 = vmatpush1.xpose.msra.mxu0 0.0
    %719 = vmatprep.subr.mxu0 0.0
    %720 = vmatpush1.xpose.msra.mxu0 0.0
    %721 = vmatprep.subr.mxu0 0.0
    %722 = vmatpush1.xpose.msra.mxu0 0.0
    %723 = vmatprep.subr.mxu0 0.0
    %724 = vmatpush1.xpose.msra.mxu0 0.0
    %725 = vmatprep.subr.mxu0 0.0
    %726 = vmatpush1.xpose.msra.mxu0 0.0
    %727 = vmatprep.subr.mxu0 0.0
    %728 = vmatpush1.xpose.msra.mxu0 0.0
    %729 = vmatprep.subr.mxu0 0.0
    %730 = vmatpush1.xpose.msra.mxu0 0.0
    %731 = vmatprep.subr.mxu0 0.0
    %732 = vmatpush1.xpose.msra.mxu0 0.0
    %733 = vmatprep.subr.mxu0 0.0
    %734 = vmatpush1.xpose.msra.mxu0 0.0
    %735 = vmatprep.subr.mxu0 0.0
    %736 = vmatpush1.xpose.msra.mxu0 0.0
    %737 = vmatprep.subr.mxu0 0.0
    %738 = vmatpush1.xpose.msra.mxu0 0.0
    %739 = vmatprep.subr.mxu0 0.0
    %740 = vmatpush1.xpose.msra.mxu0 0.0
    %741 = vmatprep.subr.mxu0 0.0
    %742 = vmatpush1.xpose.msra.mxu0 %v709
    %743 = vmatprep.subr.mxu0 0.0
    %744 = vmatpush2.xpose.msra.mxu0 0.0
    %745 = vmatprep.subr.mxu0 0.0
    %746 = vmatpush2.xpose.msra.mxu0 0.0
    %747 = vmatprep.subr.mxu0 0.0
    %748 = vmatpush2.xpose.msra.mxu0 0.0
    %749 = vmatprep.subr.mxu0 0.0
    %750 = vmatpush2.xpose.msra.mxu0 0.0
    %751 = vmatprep.subr.mxu0 0.0
    %752 = vmatpush2.xpose.msra.mxu0 0.0
    %753 = vmatprep.subr.mxu0 0.0
    %754 = vmatpush2.xpose.msra.mxu0 0.0
    %755 = vmatprep.subr.mxu0 0.0
    %756 = vmatpush2.xpose.msra.mxu0 0.0
    %757 = vmatprep.subr.mxu0 0.0
    %758 = vmatpush2.xpose.msra.mxu0 0.0
    %759 = vmatprep.subr.mxu0 0.0
    %760 = vmatpush2.xpose.msra.mxu0 0.0
    %761 = vmatprep.subr.mxu0 0.0
    %762 = vmatpush2.xpose.msra.mxu0 0.0
    %763 = vmatprep.subr.mxu0 0.0
    %764 = vmatpush2.xpose.msra.mxu0 0.0
    %765 = vmatprep.subr.mxu0 0.0
    %766 = vmatpush2.xpose.msra.mxu0 0.0
    %767 = vmatprep.subr.mxu0 0.0
    %768 = vmatpush2.xpose.msra.mxu0 0.0
    %769 = vmatprep.subr.mxu0 0.0
    %770 = vmatpush2.xpose.msra.mxu0 0.0
    %771 = vmatprep.subr.mxu0 0.0
    %772 = vmatpush2.xpose.msra.mxu0 0.0
    %773 = vmatprep.subr.mxu0 0.0
    %774 = vmatpush2.xpose.msra.mxu0 0.0
    %775 = vmatprep.mubr.f32.mxu0 0.0
    %776 = vmatmul.mubr.f32.gmra.mxu0 %v707
    %v777 = vpop.f32.mrf.mxu0
    %v778 = vadd.f32 0.0, %v777
    %v779 = vpop.f32.mrf.mxu0
    %780 = vdwg.mxu0
    %v781 = vsel %vm279, %v778, -inf
    %782 = vmax.xlane.f32.xlu0 %v781
    %v783 = vpop.xlane.xlu0 %782
    %v784 = vsub.f32 %v778, %v783
    %v785 = vmul.f32 %v784, 1.442695
    %v786 = vpow.pop %v785
    %v787 = vsel %vm279, %v786, 0.0
    %788 = vadd.xlane.f32.xlu0 %v787
    %v789 = vpop.xlane.xlu0 %788
    %v790 = vrcp.pop %v789
    %v791 = vmul.f32 %v786, %v790
    %792 = vrot.lane.b32.xlu0 %v196, 48
    %v793 = vpop.permute.xlu0 %792
    %v796 = vsel %vm279, %v791, 0
    %798 = vmatprep.subr.mxu0 0.0
    %799 = vmatpush1.msra.mxu0 0.0
    %800 = vmatprep.subr.mxu0 0.0
    %801 = vmatpush1.msra.mxu0 0.0
    %802 = vmatprep.subr.mxu0 0.0
    %803 = vmatpush1.msra.mxu0 0.0
    %804 = vmatprep.subr.mxu0 0.0
    %805 = vmatpush1.msra.mxu0 0.0
    %806 = vmatprep.subr.mxu0 0.0
    %807 = vmatpush1.msra.mxu0 0.0
    %808 = vmatprep.subr.mxu0 0.0
    %809 = vmatpush1.msra.mxu0 0.0
    %810 = vmatprep.subr.mxu0 0.0
    %811 = vmatpush1.msra.mxu0 0.0
    %812 = vmatprep.subr.mxu0 0.0
    %813 = vmatpush1.msra.mxu0 0.0
    %814 = vmatprep.subr.mxu0 0.0
    %815 = vmatpush1.msra.mxu0 0.0
    %816 = vmatprep.subr.mxu0 0.0
    %817 = vmatpush1.msra.mxu0 0.0
    %818 = vmatprep.subr.mxu0 0.0
    %819 = vmatpush1.msra.mxu0 0.0
    %820 = vmatprep.subr.mxu0 0.0
    %821 = vmatpush1.msra.mxu0 0.0
    %822 = vmatprep.subr.mxu0 0.0
    %823 = vmatpush1.msra.mxu0 0.0
    %824 = vmatprep.subr.mxu0 0.0
    %825 = vmatpush1.msra.mxu0 0.0
    %826 = vmatprep.subr.mxu0 0.0
    %827 = vmatpush1.msra.mxu0 0.0
    %828 = vmatprep.subr.mxu0 0.0
    %829 = vmatpush1.msra.mxu0 %v793
    %830 = vmatprep.subr.mxu0 0.0
    %831 = vmatpush2.msra.mxu0 0.0
    %832 = vmatprep.subr.mxu0 0.0
    %833 = vmatpush2.msra.mxu0 0.0
    %834 = vmatprep.subr.mxu0 0.0
    %835 = vmatpush2.msra.mxu0 0.0
    %836 = vmatprep.subr.mxu0 0.0
    %837 = vmatpush2.msra.mxu0 0.0
    %838 = vmatprep.subr.mxu0 0.0
    %839 = vmatpush2.msra.mxu0 0.0
    %840 = vmatprep.subr.mxu0 0.0
    %841 = vmatpush2.msra.mxu0 0.0
    %842 = vmatprep.subr.mxu0 0.0
    %843 = vmatpush2.msra.mxu0 0.0
    %844 = vmatprep.subr.mxu0 0.0
    %845 = vmatpush2.msra.mxu0 0.0
    %846 = vmatprep.subr.mxu0 0.0
    %847 = vmatpush2.msra.mxu0 0.0
    %848 = vmatprep.subr.mxu0 0.0
    %849 = vmatpush2.msra.mxu0 0.0
    %850 = vmatprep.subr.mxu0 0.0
    %851 = vmatpush2.msra.mxu0 0.0
    %852 = vmatprep.subr.mxu0 0.0
    %853 = vmatpush2.msra.mxu0 0.0
    %854 = vmatprep.subr.mxu0 0.0
    %855 = vmatpush2.msra.mxu0 0.0
    %856 = vmatprep.subr.mxu0 0.0
    %857 = vmatpush2.msra.mxu0 0.0
    %858 = vmatprep.subr.mxu0 0.0
    %859 = vmatpush2.msra.mxu0 0.0
    %860 = vmatprep.subr.mxu0 0.0
    %861 = vmatpush2.msra.mxu0 0.0
    %862 = vmatprep.mubr.f32.mxu0 0.0
    %863 = vmatmul.mubr.f32.gmra.mxu0 %v796
    %v864 = vpop.f32.mrf.mxu0
    %v865 = vadd.f32 0.0, %v864
    %v866 = vpop.f32.mrf.mxu0
    %867 = vdwg.mxu0
    %869 = vrot.lane.b32.xlu0 %v865, 16
    %v870 = vpop.permute.xlu0 %869
    %v872 = vsel %vm203, %v700, %v870
    %v873 = vld [vmem:[%s5] sm:$0xf]
    %v874 = vld [vmem:[%s5 + $0x4] sm:$0xf]
    %v875 = vld [vmem:[%s5 + $0x8] sm:$0xf]
    %v876 = vld [vmem:[%s5 + $0xc] sm:$0xf]
    %v877 = vpack.c.bf16 %v872, %v536
    %v878 = vld [vmem:[%s6] sm:$0x1]
    %v880 = vlaneseq
    %v881 = vshrl.u32 %v880, 7
    %v882 = vsub.s32 0, %v881
    %v883 = vrot.slane %v878, %v882
    %v889 = vunpack.c.l.b16 %v873
    %v890 = vunpack.c.l.b16 %v874
    %v891 = vunpack.c.l.b16 %v875
    %v892 = vunpack.c.l.b16 %v876
    %v893 = vpack.c.b16 %v890, %v889
    %v894 = vpack.c.b16 %v892, %v891
    %v898 = vsel %vm87, %v877, 0
    %900 = vmatprep.subr.bf16.mxu0 0
    %901 = vmatpush1.bf16.msra.mxu0 0
    %902 = vmatprep.subr.bf16.mxu0 0
    %903 = vmatpush1.bf16.msra.mxu0 0
    %904 = vmatprep.subr.bf16.mxu0 0
    %905 = vmatpush1.bf16.msra.mxu0 0
    %906 = vmatprep.subr.bf16.mxu0 0
    %907 = vmatpush1.bf16.msra.mxu0 0
    %908 = vmatprep.subr.bf16.mxu0 0
    %909 = vmatpush1.bf16.msra.mxu0 0
    %910 = vmatprep.subr.bf16.mxu0 0
    %911 = vmatpush1.bf16.msra.mxu0 0
    %912 = vmatprep.subr.bf16.mxu0 0
    %913 = vmatpush1.bf16.msra.mxu0 %v894
    %914 = vmatprep.subr.bf16.mxu0 0
    %915 = vmatpush1.bf16.msra.mxu0 %v893
    %916 = vmatprep.subr.bf16.mxu0 0
    %917 = vmatpush2.bf16.msra.mxu0 0
    %918 = vmatprep.subr.bf16.mxu0 0
    %919 = vmatpush2.bf16.msra.mxu0 0
    %920 = vmatprep.subr.bf16.mxu0 0
    %921 = vmatpush2.bf16.msra.mxu0 0
    %922 = vmatprep.subr.bf16.mxu0 0
    %923 = vmatpush2.bf16.msra.mxu0 0
    %924 = vmatprep.subr.bf16.mxu0 0
    %925 = vmatpush2.bf16.msra.mxu0 0
    %926 = vmatprep.subr.bf16.mxu0 0
    %927 = vmatpush2.bf16.msra.mxu0 0
    %928 = vmatprep.subr.bf16.mxu0 0
    %929 = vmatpush2.bf16.msra.mxu0 0
    %930 = vmatprep.subr.bf16.mxu0 0
    %931 = vmatpush2.bf16.msra.mxu0 0
    %932 = vmatprep.mubr.bf16.mxu0 0
    %933 = vmatmul.mubr.bf16.gmra.mxu0 %v898
    %v934 = vpop.f32.mrf.mxu0
    %v935 = vadd.f32 %v883, %v934
    %v936 = vpop.f32.mrf.mxu0
    %v937 = vpop.f32.mrf.mxu0
    %v938 = vadd.f32 %v883, %v937
    %v939 = vpop.f32.mrf.mxu0
    %940 = vdwg.mxu0
    %v941 = vadd.f32 %v935, %v129
    %v942 = vadd.f32 %v938, %v130
    %v943 = vld [vmem:[%s7] sm:$0x1]
    %v944 = vld [vmem:[%s8] sm:$0x1]
    %v945 = vsel %vm87, %v941, 0.0
    %946 = vadd.xlane.f32.xlu0 %v945
    %v947 = vpop.xlane.xlu0 %946
    %v948 = vsel %vm87, %v942, 0.0
    %949 = vadd.xlane.f32.xlu0 %v948
    %v950 = vpop.xlane.xlu0 %949
    %v951 = vmul.f32 %v947, %v94
    %v952 = vmul.f32 %v950, %v94
    %v953 = vsub.f32 %v941, %v951
    %v954 = vsub.f32 %v942, %v952
    %v955 = vmul.f32 %v953, %v953
    %v956 = vmul.f32 %v954, %v954
    %v957 = vsel %vm87, %v955, 0.0
    %958 = vadd.xlane.f32.xlu0 %v957
    %v959 = vpop.xlane.xlu0 %958
    %v960 = vsel %vm87, %v956, 0.0
    %961 = vadd.xlane.f32.xlu0 %v960
    %v962 = vpop.xlane.xlu0 %961
    %v963 = vmul.f32 %v959, %v94
    %v964 = vmul.f32 %v962, %v94
    %v965 = vadd.f32 %v963, 1e-12
    %v966 = vadd.f32 %v964, 1e-12
    %v967 = vrsqrt.pop %v965
    %v968 = vrsqrt.pop %v966
    %v969 = vmul.f32 %v953, %v967
    %v970 = vmul.f32 %v954, %v968
    %v972 = vlaneseq
    %v973 = vshrl.u32 %v972, 7
    %v974 = vsub.s32 0, %v973
    %v975 = vrot.slane %v943, %v974
    %v977 = vmul.f32 %v969, %v975
    %v978 = vmul.f32 %v970, %v975
    %v980 = vlaneseq
    %v981 = vshrl.u32 %v980, 7
    %v982 = vsub.s32 0, %v981
    %v983 = vrot.slane %v944, %v982
    %v985 = vadd.f32 %v977, %v983
    %v986 = vadd.f32 %v978, %v983
    %v987 = vld [vmem:[%s9] sm:$0xf]
    %v988 = vld [vmem:[%s9 + $0x4] sm:$0xf]
    %v989 = vld [vmem:[%s9 + $0x8] sm:$0xf]
    %v990 = vld [vmem:[%s9 + $0xc] sm:$0xf]
    %v991 = vpack.c.bf16 %v986, %v985
    %v992 = vld [vmem:[%s10] sm:$0x1]
    %v994 = vlaneseq
    %v995 = vshrl.u32 %v994, 7
    %v996 = vsub.s32 0, %v995
    %v997 = vrot.slane %v992, %v996
    %v1003 = vunpack.c.l.b16 %v987
    %v1004 = vunpack.c.l.b16 %v988
    %v1005 = vunpack.c.l.b16 %v989
    %v1006 = vunpack.c.l.b16 %v990
    %v1007 = vpack.c.b16 %v1004, %v1003
    %v1008 = vpack.c.b16 %v1006, %v1005
    %v1012 = vsel %vm87, %v991, 0
    %1014 = vmatprep.subr.bf16.mxu0 0
    %1015 = vmatpush1.bf16.msra.mxu0 0
    %1016 = vmatprep.subr.bf16.mxu0 0
    %1017 = vmatpush1.bf16.msra.mxu0 0
    %1018 = vmatprep.subr.bf16.mxu0 0
    %1019 = vmatpush1.bf16.msra.mxu0 0
    %1020 = vmatprep.subr.bf16.mxu0 0
    %1021 = vmatpush1.bf16.msra.mxu0 0
    %1022 = vmatprep.subr.bf16.mxu0 0
    %1023 = vmatpush1.bf16.msra.mxu0 0
    %1024 = vmatprep.subr.bf16.mxu0 0
    %1025 = vmatpush1.bf16.msra.mxu0 0
    %1026 = vmatprep.subr.bf16.mxu0 0
    %1027 = vmatpush1.bf16.msra.mxu0 %v1008
    %1028 = vmatprep.subr.bf16.mxu0 0
    %1029 = vmatpush1.bf16.msra.mxu0 %v1007
    %1030 = vmatprep.subr.bf16.mxu0 0
    %1031 = vmatpush2.bf16.msra.mxu0 0
    %1032 = vmatprep.subr.bf16.mxu0 0
    %1033 = vmatpush2.bf16.msra.mxu0 0
    %1034 = vmatprep.subr.bf16.mxu0 0
    %1035 = vmatpush2.bf16.msra.mxu0 0
    %1036 = vmatprep.subr.bf16.mxu0 0
    %1037 = vmatpush2.bf16.msra.mxu0 0
    %1038 = vmatprep.subr.bf16.mxu0 0
    %1039 = vmatpush2.bf16.msra.mxu0 0
    %1040 = vmatprep.subr.bf16.mxu0 0
    %1041 = vmatpush2.bf16.msra.mxu0 0
    %1042 = vmatprep.subr.bf16.mxu0 0
    %1043 = vmatpush2.bf16.msra.mxu0 0
    %1044 = vmatprep.subr.bf16.mxu0 0
    %1045 = vmatpush2.bf16.msra.mxu0 0
    %1046 = vmatprep.mubr.bf16.mxu0 0
    %1047 = vmatmul.mubr.bf16.gmra.mxu0 %v1012
    %v1048 = vpop.f32.mrf.mxu0
    %v1049 = vadd.f32 %v997, %v1048
    %v1050 = vpop.f32.mrf.mxu0
    %v1051 = vpop.f32.mrf.mxu0
    %v1052 = vadd.f32 %v997, %v1051
    %v1053 = vpop.f32.mrf.mxu0
    %1054 = vdwg.mxu0
    %v1055 = vmul.f32 %v1049, 0.5
    %v1056 = vmul.f32 %v1052, 0.5
    %v1057 = vmul.f32 %v1049, 0.044715
    %v1058 = vmul.f32 %v1052, 0.044715
    %v1059 = vmul.f32 %v1057, %v1049
    %v1060 = vmul.f32 %v1058, %v1052
    %v1061 = vmul.f32 %v1059, %v1049
    %v1062 = vmul.f32 %v1060, %v1052
    %v1063 = vadd.f32 %v1049, %v1061
    %v1064 = vadd.f32 %v1052, %v1062
    %v1065 = vmul.f32 %v1063, 0.7978846
    %v1066 = vmul.f32 %v1064, 0.7978846
    %v1067 = vtanh.pop %v1065
    %v1068 = vtanh.pop %v1066
    %v1069 = vadd.f32 %v1067, 1.0
    %v1070 = vadd.f32 %v1068, 1.0
    %v1071 = vmul.f32 %v1055, %v1069
    %v1072 = vmul.f32 %v1056, %v1070
    %v1073 = vld [vmem:[%s11] sm:$0xf]
    %v1074 = vld [vmem:[%s11 + $0x4] sm:$0xf]
    %v1075 = vld [vmem:[%s11 + $0x8] sm:$0xf]
    %v1076 = vld [vmem:[%s11 + $0xc] sm:$0xf]
    %v1077 = vld [vmem:[%s11 + $0x10] sm:$0xf]
    %v1078 = vld [vmem:[%s11 + $0x14] sm:$0xf]
    %v1079 = vld [vmem:[%s11 + $0x18] sm:$0xf]
    %v1080 = vld [vmem:[%s11 + $0x1c] sm:$0xf]
    %v1081 = vpack.c.bf16 %v1072, %v1071
    %v1082 = vld [vmem:[%s12] sm:$0x1]
    %v1084 = vlaneseq
    %v1085 = vshrl.u32 %v1084, 7
    %v1086 = vsub.s32 0, %v1085
    %v1087 = vrot.slane %v1082, %v1086
    %v1097 = vunpack.c.l.b16 %v1073
    %v1098 = vunpack.c.l.b16 %v1074
    %v1099 = vunpack.c.l.b16 %v1075
    %v1100 = vunpack.c.l.b16 %v1076
    %v1101 = vunpack.c.l.b16 %v1077
    %v1102 = vunpack.c.l.b16 %v1078
    %v1103 = vunpack.c.l.b16 %v1079
    %v1104 = vunpack.c.l.b16 %v1080
    %v1105 = vpack.c.b16 %v1098, %v1097
    %v1106 = vpack.c.b16 %v1100, %v1099
    %v1107 = vpack.c.b16 %v1102, %v1101
    %v1108 = vpack.c.b16 %v1104, %v1103
    %vm1113 = vcmask 523264
    %v1115 = vsel %vm1113, %v1081, 0
    %1117 = vmatprep.subr.bf16.mxu0 0
    %1118 = vmatpush1.bf16.msra.mxu0 0
    %1119 = vmatprep.subr.bf16.mxu0 0
    %1120 = vmatpush1.bf16.msra.mxu0 0
    %1121 = vmatprep.subr.bf16.mxu0 0
    %1122 = vmatpush1.bf16.msra.mxu0 0
    %1123 = vmatprep.subr.bf16.mxu0 0
    %1124 = vmatpush1.bf16.msra.mxu0 0
    %1125 = vmatprep.subr.bf16.mxu0 0
    %1126 = vmatpush1.bf16.msra.mxu0 %v1108
    %1127 = vmatprep.subr.bf16.mxu0 0
    %1128 = vmatpush1.bf16.msra.mxu0 %v1107
    %1129 = vmatprep.subr.bf16.mxu0 0
    %1130 = vmatpush1.bf16.msra.mxu0 %v1106
    %1131 = vmatprep.subr.bf16.mxu0 0
    %1132 = vmatpush1.bf16.msra.mxu0 %v1105
    %1133 = vmatprep.subr.bf16.mxu0 0
    %1134 = vmatpush2.bf16.msra.mxu0 0
    %1135 = vmatprep.subr.bf16.mxu0 0
    %1136 = vmatpush2.bf16.msra.mxu0 0
    %1137 = vmatprep.subr.bf16.mxu0 0
    %1138 = vmatpush2.bf16.msra.mxu0 0
    %1139 = vmatprep.subr.bf16.mxu0 0
    %1140 = vmatpush2.bf16.msra.mxu0 0
    %1141 = vmatprep.subr.bf16.mxu0 0
    %1142 = vmatpush2.bf16.msra.mxu0 0
    %1143 = vmatprep.subr.bf16.mxu0 0
    %1144 = vmatpush2.bf16.msra.mxu0 0
    %1145 = vmatprep.subr.bf16.mxu0 0
    %1146 = vmatpush2.bf16.msra.mxu0 0
    %1147 = vmatprep.subr.bf16.mxu0 0
    %1148 = vmatpush2.bf16.msra.mxu0 0
    %1149 = vmatprep.mubr.bf16.mxu0 0
    %1150 = vmatmul.mubr.bf16.gmra.mxu0 %v1115
    %v1151 = vpop.f32.mrf.mxu0
    %v1152 = vadd.f32 %v1087, %v1151
    %v1153 = vpop.f32.mrf.mxu0
    %v1154 = vpop.f32.mrf.mxu0
    %v1155 = vadd.f32 %v1087, %v1154
    %v1156 = vpop.f32.mrf.mxu0
    %1157 = vdwg.mxu0
    %v1158 = vadd.f32 %v1152, %v985
    %v1159 = vadd.f32 %v1155, %v986
    %v1160 = vld [vmem:[%s13] sm:$0x1]
    %v1161 = vld [vmem:[%s14] sm:$0x1]
    %v1162 = vsel %vm87, %v1158, 0.0
    %1163 = vadd.xlane.f32.xlu0 %v1162
    %v1164 = vpop.xlane.xlu0 %1163
    %v1165 = vsel %vm87, %v1159, 0.0
    %1166 = vadd.xlane.f32.xlu0 %v1165
    %v1167 = vpop.xlane.xlu0 %1166
    %v1168 = vmul.f32 %v1164, %v94
    %v1169 = vmul.f32 %v1167, %v94
    %v1170 = vsub.f32 %v1158, %v1168
    %v1171 = vsub.f32 %v1159, %v1169
    %v1172 = vmul.f32 %v1170, %v1170
    %v1173 = vmul.f32 %v1171, %v1171
    %v1174 = vsel %vm87, %v1172, 0.0
    %1175 = vadd.xlane.f32.xlu0 %v1174
    %v1176 = vpop.xlane.xlu0 %1175
    %v1177 = vsel %vm87, %v1173, 0.0
    %1178 = vadd.xlane.f32.xlu0 %v1177
    %v1179 = vpop.xlane.xlu0 %1178
    %v1180 = vmul.f32 %v1176, %v94
    %v1181 = vmul.f32 %v1179, %v94
    %v1182 = vadd.f32 %v1180, 1e-12
    %v1183 = vadd.f32 %v1181, 1e-12
    %v1184 = vrsqrt.pop %v1182
    %v1185 = vrsqrt.pop %v1183
    %v1186 = vmul.f32 %v1170, %v1184
    %v1187 = vmul.f32 %v1171, %v1185
    %v1189 = vlaneseq
    %v1190 = vshrl.u32 %v1189, 7
    %v1191 = vsub.s32 0, %v1190
    %v1192 = vrot.slane %v1160, %v1191
    %v1194 = vmul.f32 %v1186, %v1192
    %v1195 = vmul.f32 %v1187, %v1192
    %v1197 = vlaneseq
    %v1198 = vshrl.u32 %v1197, 7
    %v1199 = vsub.s32 0, %v1198
    %v1200 = vrot.slane %v1161, %v1199
    %v1202 = vadd.f32 %v1194, %v1200
    %v1203 = vadd.f32 %v1195, %v1200
    %s1204 = scalar_lea.vmem %s3, 16
    %v1205 = vld [vmem:[%s1204] sm:$0xf]
    %v1206 = vld [vmem:[%s1204 + $0x4] sm:$0xf]
    %v1207 = vld [vmem:[%s1204 + $0x8] sm:$0xf]
    %v1208 = vld [vmem:[%s1204 + $0xc] sm:$0xf]
    %v1209 = vpack.c.bf16 %v1203, %v1202
    %s1210 = scalar_lea.vmem %s4, 1
    %v1211 = vld [vmem:[%s1210] sm:$0x1]
    %v1213 = vlaneseq
    %v1214 = vshrl.u32 %v1213, 7
    %v1215 = vsub.s32 0, %v1214
    %v1216 = vrot.slane %v1211, %v1215
    %v1222 = vunpack.c.l.b16 %v1205
    %v1223 = vunpack.c.l.b16 %v1206
    %v1224 = vunpack.c.l.b16 %v1207
    %v1225 = vunpack.c.l.b16 %v1208
    %v1226 = vpack.c.b16 %v1223, %v1222
    %v1227 = vpack.c.b16 %v1225, %v1224
    %v1231 = vsel %vm87, %v1209, 0
    %1233 = vmatprep.subr.bf16.mxu0 0
    %1234 = vmatpush1.bf16.msra.mxu0 0
    %1235 = vmatprep.subr.bf16.mxu0 0
    %1236 = vmatpush1.bf16.msra.mxu0 0
    %1237 = vmatprep.subr.bf16.mxu0 0
    %1238 = vmatpush1.bf16.msra.mxu0 0
    %1239 = vmatprep.subr.bf16.mxu0 0
    %1240 = vmatpush1.bf16.msra.mxu0 0
    %1241 = vmatprep.subr.bf16.mxu0 0
    %1242 = vmatpush1.bf16.msra.mxu0 0
    %1243 = vmatprep.subr.bf16.mxu0 0
    %1244 = vmatpush1.bf16.msra.mxu0 0
    %1245 = vmatprep.subr.bf16.mxu0 0
    %1246 = vmatpush1.bf16.msra.mxu0 %v1227
    %1247 = vmatprep.subr.bf16.mxu0 0
    %1248 = vmatpush1.bf16.msra.mxu0 %v1226
    %1249 = vmatprep.subr.bf16.mxu0 0
    %1250 = vmatpush2.bf16.msra.mxu0 0
    %1251 = vmatprep.subr.bf16.mxu0 0
    %1252 = vmatpush2.bf16.msra.mxu0 0
    %1253 = vmatprep.subr.bf16.mxu0 0
    %1254 = vmatpush2.bf16.msra.mxu0 0
    %1255 = vmatprep.subr.bf16.mxu0 0
    %1256 = vmatpush2.bf16.msra.mxu0 0
    %1257 = vmatprep.subr.bf16.mxu0 0
    %1258 = vmatpush2.bf16.msra.mxu0 0
    %1259 = vmatprep.subr.bf16.mxu0 0
    %1260 = vmatpush2.bf16.msra.mxu0 0
    %1261 = vmatprep.subr.bf16.mxu0 0
    %1262 = vmatpush2.bf16.msra.mxu0 0
    %1263 = vmatprep.subr.bf16.mxu0 0
    %1264 = vmatpush2.bf16.msra.mxu0 0
    %1265 = vmatprep.mubr.bf16.mxu0 0
    %1266 = vmatmul.mubr.bf16.gmra.mxu0 %v1231
    %v1267 = vpop.f32.mrf.mxu0
    %v1268 = vadd.f32 %v1216, %v1267
    %v1269 = vpop.f32.mrf.mxu0
    %v1270 = vpop.f32.mrf.mxu0
    %v1271 = vadd.f32 %v1216, %v1270
    %v1272 = vpop.f32.mrf.mxu0
    %1273 = vdwg.mxu0
    %v1274 = vmul.f32 %v1268, 0.25
    %1276 = vrot.lane.b32.xlu0 %v1268, 96
    %v1277 = vpop.permute.xlu0 %1276
    %v1279 = vsel %vm203, %v1274, 0
    %v1281 = vsel %vm203, %v1277, 0
    %1283 = vmatprep.subr.mxu0 0.0
    %1284 = vmatpush1.xpose.msra.mxu0 0.0
    %1285 = vmatprep.subr.mxu0 0.0
    %1286 = vmatpush1.xpose.msra.mxu0 0.0
    %1287 = vmatprep.subr.mxu0 0.0
    %1288 = vmatpush1.xpose.msra.mxu0 0.0
    %1289 = vmatprep.subr.mxu0 0.0
    %1290 = vmatpush1.xpose.msra.mxu0 0.0
    %1291 = vmatprep.subr.mxu0 0.0
    %1292 = vmatpush1.xpose.msra.mxu0 0.0
    %1293 = vmatprep.subr.mxu0 0.0
    %1294 = vmatpush1.xpose.msra.mxu0 0.0
    %1295 = vmatprep.subr.mxu0 0.0
    %1296 = vmatpush1.xpose.msra.mxu0 0.0
    %1297 = vmatprep.subr.mxu0 0.0
    %1298 = vmatpush1.xpose.msra.mxu0 0.0
    %1299 = vmatprep.subr.mxu0 0.0
    %1300 = vmatpush1.xpose.msra.mxu0 0.0
    %1301 = vmatprep.subr.mxu0 0.0
    %1302 = vmatpush1.xpose.msra.mxu0 0.0
    %1303 = vmatprep.subr.mxu0 0.0
    %1304 = vmatpush1.xpose.msra.mxu0 0.0
    %1305 = vmatprep.subr.mxu0 0.0
    %1306 = vmatpush1.xpose.msra.mxu0 0.0
    %1307 = vmatprep.subr.mxu0 0.0
    %1308 = vmatpush1.xpose.msra.mxu0 0.0
    %1309 = vmatprep.subr.mxu0 0.0
    %1310 = vmatpush1.xpose.msra.mxu0 0.0
    %1311 = vmatprep.subr.mxu0 0.0
    %1312 = vmatpush1.xpose.msra.mxu0 0.0
    %1313 = vmatprep.subr.mxu0 0.0
    %1314 = vmatpush1.xpose.msra.mxu0 %v1281
    %1315 = vmatprep.subr.mxu0 0.0
    %1316 = vmatpush2.xpose.msra.mxu0 0.0
    %1317 = vmatprep.subr.mxu0 0.0
    %1318 = vmatpush2.xpose.msra.mxu0 0.0
    %1319 = vmatprep.subr.mxu0 0.0
    %1320 = vmatpush2.xpose.msra.mxu0 0.0
    %1321 = vmatprep.subr.mxu0 0.0
    %1322 = vmatpush2.xpose.msra.mxu0 0.0
    %1323 = vmatprep.subr.mxu0 0.0
    %1324 = vmatpush2.xpose.msra.mxu0 0.0
    %1325 = vmatprep.subr.mxu0 0.0
    %1326 = vmatpush2.xpose.msra.mxu0 0.0
    %1327 = vmatprep.subr.mxu0 0.0
    %1328 = vmatpush2.xpose.msra.mxu0 0.0
    %1329 = vmatprep.subr.mxu0 0.0
    %1330 = vmatpush2.xpose.msra.mxu0 0.0
    %1331 = vmatprep.subr.mxu0 0.0
    %1332 = vmatpush2.xpose.msra.mxu0 0.0
    %1333 = vmatprep.subr.mxu0 0.0
    %1334 = vmatpush2.xpose.msra.mxu0 0.0
    %1335 = vmatprep.subr.mxu0 0.0
    %1336 = vmatpush2.xpose.msra.mxu0 0.0
    %1337 = vmatprep.subr.mxu0 0.0
    %1338 = vmatpush2.xpose.msra.mxu0 0.0
    %1339 = vmatprep.subr.mxu0 0.0
    %1340 = vmatpush2.xpose.msra.mxu0 0.0
    %1341 = vmatprep.subr.mxu0 0.0
    %1342 = vmatpush2.xpose.msra.mxu0 0.0
    %1343 = vmatprep.subr.mxu0 0.0
    %1344 = vmatpush2.xpose.msra.mxu0 0.0
    %1345 = vmatprep.subr.mxu0 0.0
    %1346 = vmatpush2.xpose.msra.mxu0 0.0
    %1347 = vmatprep.mubr.f32.mxu0 0.0
    %1348 = vmatmul.mubr.f32.gmra.mxu0 %v1279
    %v1349 = vpop.f32.mrf.mxu0
    %v1350 = vadd.f32 0.0, %v1349
    %v1351 = vpop.f32.mrf.mxu0
    %1352 = vdwg.mxu0
    %v1353 = vsel %vm279, %v1350, -inf
    %1354 = vmax.xlane.f32.xlu0 %v1353
    %v1355 = vpop.xlane.xlu0 %1354
    %v1356 = vsub.f32 %v1350, %v1355
    %v1357 = vmul.f32 %v1356, 1.442695
    %v1358 = vpow.pop %v1357
    %v1359 = vsel %vm279, %v1358, 0.0
    %1360 = vadd.xlane.f32.xlu0 %v1359
    %v1361 = vpop.xlane.xlu0 %1360
    %v1362 = vrcp.pop %v1361
    %v1363 = vmul.f32 %v1358, %v1362
    %1364 = vrot.lane.b32.xlu0 %v1268, 64
    %v1365 = vpop.permute.xlu0 %1364
    %v1368 = vsel %vm279, %v1363, 0
    %1370 = vmatprep.subr.mxu0 0.0
    %1371 = vmatpush1.msra.mxu0 0.0
    %1372 = vmatprep.subr.mxu0 0.0
    %1373 = vmatpush1.msra.mxu0 0.0
    %1374 = vmatprep.subr.mxu0 0.0
    %1375 = vmatpush1.msra.mxu0 0.0
    %1376 = vmatprep.subr.mxu0 0.0
    %1377 = vmatpush1.msra.mxu0 0.0
    %1378 = vmatprep.subr.mxu0 0.0
    %1379 = vmatpush1.msra.mxu0 0.0
    %1380 = vmatprep.subr.mxu0 0.0
    %1381 = vmatpush1.msra.mxu0 0.0
    %1382 = vmatprep.subr.mxu0 0.0
    %1383 = vmatpush1.msra.mxu0 0.0
    %1384 = vmatprep.subr.mxu0 0.0
    %1385 = vmatpush1.msra.mxu0 0.0
    %1386 = vmatprep.subr.mxu0 0.0
    %1387 = vmatpush1.msra.mxu0 0.0
    %1388 = vmatprep.subr.mxu0 0.0
    %1389 = vmatpush1.msra.mxu0 0.0
    %1390 = vmatprep.subr.mxu0 0.0
    %1391 = vmatpush1.msra.mxu0 0.0
    %1392 = vmatprep.subr.mxu0 0.0
    %1393 = vmatpush1.msra.mxu0 0.0
    %1394 = vmatprep.subr.mxu0 0.0
    %1395 = vmatpush1.msra.mxu0 0.0
    %1396 = vmatprep.subr.mxu0 0.0
    %1397 = vmatpush1.msra.mxu0 0.0
    %1398 = vmatprep.subr.mxu0 0.0
    %1399 = vmatpush1.msra.mxu0 0.0
    %1400 = vmatprep.subr.mxu0 0.0
    %1401 = vmatpush1.msra.mxu0 %v1365
    %1402 = vmatprep.subr.mxu0 0.0
    %1403 = vmatpush2.msra.mxu0 0.0
    %1404 = vmatprep.subr.mxu0 0.0
    %1405 = vmatpush2.msra.mxu0 0.0
    %1406 = vmatprep.subr.mxu0 0.0
    %1407 = vmatpush2.msra.mxu0 0.0
    %1408 = vmatprep.subr.mxu0 0.0
    %1409 = vmatpush2.msra.mxu0 0.0
    %1410 = vmatprep.subr.mxu0 0.0
    %1411 = vmatpush2.msra.mxu0 0.0
    %1412 = vmatprep.subr.mxu0 0.0
    %1413 = vmatpush2.msra.mxu0 0.0
    %1414 = vmatprep.subr.mxu0 0.0
    %1415 = vmatpush2.msra.mxu0 0.0
    %1416 = vmatprep.subr.mxu0 0.0
    %1417 = vmatpush2.msra.mxu0 0.0
    %1418 = vmatprep.subr.mxu0 0.0
    %1419 = vmatpush2.msra.mxu0 0.0
    %1420 = vmatprep.subr.mxu0 0.0
    %1421 = vmatpush2.msra.mxu0 0.0
    %1422 = vmatprep.subr.mxu0 0.0
    %1423 = vmatpush2.msra.mxu0 0.0
    %1424 = vmatprep.subr.mxu0 0.0
    %1425 = vmatpush2.msra.mxu0 0.0
    %1426 = vmatprep.subr.mxu0 0.0
    %1427 = vmatpush2.msra.mxu0 0.0
    %1428 = vmatprep.subr.mxu0 0.0
    %1429 = vmatpush2.msra.mxu0 0.0
    %1430 = vmatprep.subr.mxu0 0.0
    %1431 = vmatpush2.msra.mxu0 0.0
    %1432 = vmatprep.subr.mxu0 0.0
    %1433 = vmatpush2.msra.mxu0 0.0
    %1434 = vmatprep.mubr.f32.mxu0 0.0
    %1435 = vmatmul.mubr.f32.gmra.mxu0 %v1368
    %v1436 = vpop.f32.mrf.mxu0
    %v1437 = vadd.f32 0.0, %v1436
    %v1438 = vpop.f32.mrf.mxu0
    %1439 = vdwg.mxu0
    %1440 = vrot.lane.b32.xlu0 %v1274, 112
    %v1441 = vpop.permute.xlu0 %1440
    %1442 = vrot.lane.b32.xlu0 %v1268, 80
    %v1443 = vpop.permute.xlu0 %1442
    %v1444 = vsel %vm203, %v1441, 0
    %v1446 = vsel %vm203, %v1443, 0
    %1448 = vmatprep.subr.mxu0 0.0
    %1449 = vmatpush1.xpose.msra.mxu0 0.0
    %1450 = vmatprep.subr.mxu0 0.0
    %1451 = vmatpush1.xpose.msra.mxu0 0.0
    %1452 = vmatprep.subr.mxu0 0.0
    %1453 = vmatpush1.xpose.msra.mxu0 0.0
    %1454 = vmatprep.subr.mxu0 0.0
    %1455 = vmatpush1.xpose.msra.mxu0 0.0
    %1456 = vmatprep.subr.mxu0 0.0
    %1457 = vmatpush1.xpose.msra.mxu0 0.0
    %1458 = vmatprep.subr.mxu0 0.0
    %1459 = vmatpush1.xpose.msra.mxu0 0.0
    %1460 = vmatprep.subr.mxu0 0.0
    %1461 = vmatpush1.xpose.msra.mxu0 0.0
    %1462 = vmatprep.subr.mxu0 0.0
    %1463 = vmatpush1.xpose.msra.mxu0 0.0
    %1464 = vmatprep.subr.mxu0 0.0
    %1465 = vmatpush1.xpose.msra.mxu0 0.0
    %1466 = vmatprep.subr.mxu0 0.0
    %1467 = vmatpush1.xpose.msra.mxu0 0.0
    %1468 = vmatprep.subr.mxu0 0.0
    %1469 = vmatpush1.xpose.msra.mxu0 0.0
    %1470 = vmatprep.subr.mxu0 0.0
    %1471 = vmatpush1.xpose.msra.mxu0 0.0
    %1472 = vmatprep.subr.mxu0 0.0
    %1473 = vmatpush1.xpose.msra.mxu0 0.0
    %1474 = vmatprep.subr.mxu0 0.0
    %1475 = vmatpush1.xpose.msra.mxu0 0.0
    %1476 = vmatprep.subr.mxu0 0.0
    %1477 = vmatpush1.xpose.msra.mxu0 0.0
    %1478 = vmatprep.subr.mxu0 0.0
    %1479 = vmatpush1.xpose.msra.mxu0 %v1446
    %1480 = vmatprep.subr.mxu0 0.0
    %1481 = vmatpush2.xpose.msra.mxu0 0.0
    %1482 = vmatprep.subr.mxu0 0.0
    %1483 = vmatpush2.xpose.msra.mxu0 0.0
    %1484 = vmatprep.subr.mxu0 0.0
    %1485 = vmatpush2.xpose.msra.mxu0 0.0
    %1486 = vmatprep.subr.mxu0 0.0
    %1487 = vmatpush2.xpose.msra.mxu0 0.0
    %1488 = vmatprep.subr.mxu0 0.0
    %1489 = vmatpush2.xpose.msra.mxu0 0.0
    %1490 = vmatprep.subr.mxu0 0.0
    %1491 = vmatpush2.xpose.msra.mxu0 0.0
    %1492 = vmatprep.subr.mxu0 0.0
    %1493 = vmatpush2.xpose.msra.mxu0 0.0
    %1494 = vmatprep.subr.mxu0 0.0
    %1495 = vmatpush2.xpose.msra.mxu0 0.0
    %1496 = vmatprep.subr.mxu0 0.0
    %1497 = vmatpush2.xpose.msra.mxu0 0.0
    %1498 = vmatprep.subr.mxu0 0.0
    %1499 = vmatpush2.xpose.msra.mxu0 0.0
    %1500 = vmatprep.subr.mxu0 0.0
    %1501 = vmatpush2.xpose.msra.mxu0 0.0
    %1502 = vmatprep.subr.mxu0 0.0
    %1503 = vmatpush2.xpose.msra.mxu0 0.0
    %1504 = vmatprep.subr.mxu0 0.0
    %1505 = vmatpush2.xpose.msra.mxu0 0.0
    %1506 = vmatprep.subr.mxu0 0.0
    %1507 = vmatpush2.xpose.msra.mxu0 0.0
    %1508 = vmatprep.subr.mxu0 0.0
    %1509 = vmatpush2.xpose.msra.mxu0 0.0
    %1510 = vmatprep.subr.mxu0 0.0
    %1511 = vmatpush2.xpose.msra.mxu0 0.0
    %1512 = vmatprep.mubr.f32.mxu0 0.0
    %1513 = vmatmul.mubr.f32.gmra.mxu0 %v1444
    %v1514 = vpop.f32.mrf.mxu0
    %v1515 = vadd.f32 0.0, %v1514
    %v1516 = vpop.f32.mrf.mxu0
    %1517 = vdwg.mxu0
    %v1518 = vsel %vm279, %v1515, -inf
    %1519 = vmax.xlane.f32.xlu0 %v1518
    %v1520 = vpop.xlane.xlu0 %1519
    %v1521 = vsub.f32 %v1515, %v1520
    %v1522 = vmul.f32 %v1521, 1.442695
    %v1523 = vpow.pop %v1522
    %v1524 = vsel %vm279, %v1523, 0.0
    %1525 = vadd.xlane.f32.xlu0 %v1524
    %v1526 = vpop.xlane.xlu0 %1525
    %v1527 = vrcp.pop %v1526
    %v1528 = vmul.f32 %v1523, %v1527
    %1529 = vrot.lane.b32.xlu0 %v1268, 48
    %v1530 = vpop.permute.xlu0 %1529
    %v1533 = vsel %vm279, %v1528, 0
    %1535 = vmatprep.subr.mxu0 0.0
    %1536 = vmatpush1.msra.mxu0 0.0
    %1537 = vmatprep.subr.mxu0 0.0
    %1538 = vmatpush1.msra.mxu0 0.0
    %1539 = vmatprep.subr.mxu0 0.0
    %1540 = vmatpush1.msra.mxu0 0.0
    %1541 = vmatprep.subr.mxu0 0.0
    %1542 = vmatpush1.msra.mxu0 0.0
    %1543 = vmatprep.subr.mxu0 0.0
    %1544 = vmatpush1.msra.mxu0 0.0
    %1545 = vmatprep.subr.mxu0 0.0
    %1546 = vmatpush1.msra.mxu0 0.0
    %1547 = vmatprep.subr.mxu0 0.0
    %1548 = vmatpush1.msra.mxu0 0.0
    %1549 = vmatprep.subr.mxu0 0.0
    %1550 = vmatpush1.msra.mxu0 0.0
    %1551 = vmatprep.subr.mxu0 0.0
    %1552 = vmatpush1.msra.mxu0 0.0
    %1553 = vmatprep.subr.mxu0 0.0
    %1554 = vmatpush1.msra.mxu0 0.0
    %1555 = vmatprep.subr.mxu0 0.0
    %1556 = vmatpush1.msra.mxu0 0.0
    %1557 = vmatprep.subr.mxu0 0.0
    %1558 = vmatpush1.msra.mxu0 0.0
    %1559 = vmatprep.subr.mxu0 0.0
    %1560 = vmatpush1.msra.mxu0 0.0
    %1561 = vmatprep.subr.mxu0 0.0
    %1562 = vmatpush1.msra.mxu0 0.0
    %1563 = vmatprep.subr.mxu0 0.0
    %1564 = vmatpush1.msra.mxu0 0.0
    %1565 = vmatprep.subr.mxu0 0.0
    %1566 = vmatpush1.msra.mxu0 %v1530
    %1567 = vmatprep.subr.mxu0 0.0
    %1568 = vmatpush2.msra.mxu0 0.0
    %1569 = vmatprep.subr.mxu0 0.0
    %1570 = vmatpush2.msra.mxu0 0.0
    %1571 = vmatprep.subr.mxu0 0.0
    %1572 = vmatpush2.msra.mxu0 0.0
    %1573 = vmatprep.subr.mxu0 0.0
    %1574 = vmatpush2.msra.mxu0 0.0
    %1575 = vmatprep.subr.mxu0 0.0
    %1576 = vmatpush2.msra.mxu0 0.0
    %1577 = vmatprep.subr.mxu0 0.0
    %1578 = vmatpush2.msra.mxu0 0.0
    %1579 = vmatprep.subr.mxu0 0.0
    %1580 = vmatpush2.msra.mxu0 0.0
    %1581 = vmatprep.subr.mxu0 0.0
    %1582 = vmatpush2.msra.mxu0 0.0
    %1583 = vmatprep.subr.mxu0 0.0
    %1584 = vmatpush2.msra.mxu0 0.0
    %1585 = vmatprep.subr.mxu0 0.0
    %1586 = vmatpush2.msra.mxu0 0.0
    %1587 = vmatprep.subr.mxu0 0.0
    %1588 = vmatpush2.msra.mxu0 0.0
    %1589 = vmatprep.subr.mxu0 0.0
    %1590 = vmatpush2.msra.mxu0 0.0
    %1591 = vmatprep.subr.mxu0 0.0
    %1592 = vmatpush2.msra.mxu0 0.0
    %1593 = vmatprep.subr.mxu0 0.0
    %1594 = vmatpush2.msra.mxu0 0.0
    %1595 = vmatprep.subr.mxu0 0.0
    %1596 = vmatpush2.msra.mxu0 0.0
    %1597 = vmatprep.subr.mxu0 0.0
    %1598 = vmatpush2.msra.mxu0 0.0
    %1599 = vmatprep.mubr.f32.mxu0 0.0
    %1600 = vmatmul.mubr.f32.gmra.mxu0 %v1533
    %v1601 = vpop.f32.mrf.mxu0
    %v1602 = vadd.f32 0.0, %v1601
    %v1603 = vpop.f32.mrf.mxu0
    %1604 = vdwg.mxu0
    %1606 = vrot.lane.b32.xlu0 %v1602, 16
    %v1607 = vpop.permute.xlu0 %1606
    %v1609 = vsel %vm203, %v1437, %v1607
    %v1610 = vmul.f32 %v1271, 0.25
    %1612 = vrot.lane.b32.xlu0 %v1271, 96
    %v1613 = vpop.permute.xlu0 %1612
    %v1615 = vsel %vm203, %v1610, 0
    %v1617 = vsel %vm203, %v1613, 0
    %1619 = vmatprep.subr.mxu0 0.0
    %1620 = vmatpush1.xpose.msra.mxu0 0.0
    %1621 = vmatprep.subr.mxu0 0.0
    %1622 = vmatpush1.xpose.msra.mxu0 0.0
    %1623 = vmatprep.subr.mxu0 0.0
    %1624 = vmatpush1.xpose.msra.mxu0 0.0
    %1625 = vmatprep.subr.mxu0 0.0
    %1626 = vmatpush1.xpose.msra.mxu0 0.0
    %1627 = vmatprep.subr.mxu0 0.0
    %1628 = vmatpush1.xpose.msra.mxu0 0.0
    %1629 = vmatprep.subr.mxu0 0.0
    %1630 = vmatpush1.xpose.msra.mxu0 0.0
    %1631 = vmatprep.subr.mxu0 0.0
    %1632 = vmatpush1.xpose.msra.mxu0 0.0
    %1633 = vmatprep.subr.mxu0 0.0
    %1634 = vmatpush1.xpose.msra.mxu0 0.0
    %1635 = vmatprep.subr.mxu0 0.0
    %1636 = vmatpush1.xpose.msra.mxu0 0.0
    %1637 = vmatprep.subr.mxu0 0.0
    %1638 = vmatpush1.xpose.msra.mxu0 0.0
    %1639 = vmatprep.subr.mxu0 0.0
    %1640 = vmatpush1.xpose.msra.mxu0 0.0
    %1641 = vmatprep.subr.mxu0 0.0
    %1642 = vmatpush1.xpose.msra.mxu0 0.0
    %1643 = vmatprep.subr.mxu0 0.0
    %1644 = vmatpush1.xpose.msra.mxu0 0.0
    %1645 = vmatprep.subr.mxu0 0.0
    %1646 = vmatpush1.xpose.msra.mxu0 0.0
    %1647 = vmatprep.subr.mxu0 0.0
    %1648 = vmatpush1.xpose.msra.mxu0 0.0
    %1649 = vmatprep.subr.mxu0 0.0
    %1650 = vmatpush1.xpose.msra.mxu0 %v1617
    %1651 = vmatprep.subr.mxu0 0.0
    %1652 = vmatpush2.xpose.msra.mxu0 0.0
    %1653 = vmatprep.subr.mxu0 0.0
    %1654 = vmatpush2.xpose.msra.mxu0 0.0
    %1655 = vmatprep.subr.mxu0 0.0
    %1656 = vmatpush2.xpose.msra.mxu0 0.0
    %1657 = vmatprep.subr.mxu0 0.0
    %1658 = vmatpush2.xpose.msra.mxu0 0.0
    %1659 = vmatprep.subr.mxu0 0.0
    %1660 = vmatpush2.xpose.msra.mxu0 0.0
    %1661 = vmatprep.subr.mxu0 0.0
    %1662 = vmatpush2.xpose.msra.mxu0 0.0
    %1663 = vmatprep.subr.mxu0 0.0
    %1664 = vmatpush2.xpose.msra.mxu0 0.0
    %1665 = vmatprep.subr.mxu0 0.0
    %1666 = vmatpush2.xpose.msra.mxu0 0.0
    %1667 = vmatprep.subr.mxu0 0.0
    %1668 = vmatpush2.xpose.msra.mxu0 0.0
    %1669 = vmatprep.subr.mxu0 0.0
    %1670 = vmatpush2.xpose.msra.mxu0 0.0
    %1671 = vmatprep.subr.mxu0 0.0
    %1672 = vmatpush2.xpose.msra.mxu0 0.0
    %1673 = vmatprep.subr.mxu0 0.0
    %1674 = vmatpush2.xpose.msra.mxu0 0.0
    %1675 = vmatprep.subr.mxu0 0.0
    %1676 = vmatpush2.xpose.msra.mxu0 0.0
    %1677 = vmatprep.subr.mxu0 0.0
    %1678 = vmatpush2.xpose.msra.mxu0 0.0
    %1679 = vmatprep.subr.mxu0 0.0
    %1680 = vmatpush2.xpose.msra.mxu0 0.0
    %1681 = vmatprep.subr.mxu0 0.0
    %1682 = vmatpush2.xpose.msra.mxu0 0.0
    %1683 = vmatprep.mubr.f32.mxu0 0.0
    %1684 = vmatmul.mubr.f32.gmra.mxu0 %v1615
    %v1685 = vpop.f32.mrf.mxu0
    %v1686 = vadd.f32 0.0, %v1685
    %v1687 = vpop.f32.mrf.mxu0
    %1688 = vdwg.mxu0
    %v1689 = vsel %vm279, %v1686, -inf
    %1690 = vmax.xlane.f32.xlu0 %v1689
    %v1691 = vpop.xlane.xlu0 %1690
    %v1692 = vsub.f32 %v1686, %v1691
    %v1693 = vmul.f32 %v1692, 1.442695
    %v1694 = vpow.pop %v1693
    %v1695 = vsel %vm279, %v1694, 0.0
    %1696 = vadd.xlane.f32.xlu0 %v1695
    %v1697 = vpop.xlane.xlu0 %1696
    %v1698 = vrcp.pop %v1697
    %v1699 = vmul.f32 %v1694, %v1698
    %1700 = vrot.lane.b32.xlu0 %v1271, 64
    %v1701 = vpop.permute.xlu0 %1700
    %v1704 = vsel %vm279, %v1699, 0
    %1706 = vmatprep.subr.mxu0 0.0
    %1707 = vmatpush1.msra.mxu0 0.0
    %1708 = vmatprep.subr.mxu0 0.0
    %1709 = vmatpush1.msra.mxu0 0.0
    %1710 = vmatprep.subr.mxu0 0.0
    %1711 = vmatpush1.msra.mxu0 0.0
    %1712 = vmatprep.subr.mxu0 0.0
    %1713 = vmatpush1.msra.mxu0 0.0
    %1714 = vmatprep.subr.mxu0 0.0
    %1715 = vmatpush1.msra.mxu0 0.0
    %1716 = vmatprep.subr.mxu0 0.0
    %1717 = vmatpush1.msra.mxu0 0.0
    %1718 = vmatprep.subr.mxu0 0.0
    %1719 = vmatpush1.msra.mxu0 0.0
    %1720 = vmatprep.subr.mxu0 0.0
    %1721 = vmatpush1.msra.mxu0 0.0
    %1722 = vmatprep.subr.mxu0 0.0
    %1723 = vmatpush1.msra.mxu0 0.0
    %1724 = vmatprep.subr.mxu0 0.0
    %1725 = vmatpush1.msra.mxu0 0.0
    %1726 = vmatprep.subr.mxu0 0.0
    %1727 = vmatpush1.msra.mxu0 0.0
    %1728 = vmatprep.subr.mxu0 0.0
    %1729 = vmatpush1.msra.mxu0 0.0
    %1730 = vmatprep.subr.mxu0 0.0
    %1731 = vmatpush1.msra.mxu0 0.0
    %1732 = vmatprep.subr.mxu0 0.0
    %1733 = vmatpush1.msra.mxu0 0.0
    %1734 = vmatprep.subr.mxu0 0.0
    %1735 = vmatpush1.msra.mxu0 0.0
    %1736 = vmatprep.subr.mxu0 0.0
    %1737 = vmatpush1.msra.mxu0 %v1701
    %1738 = vmatprep.subr.mxu0 0.0
    %1739 = vmatpush2.msra.mxu0 0.0
    %1740 = vmatprep.subr.mxu0 0.0
    %1741 = vmatpush2.msra.mxu0 0.0
    %1742 = vmatprep.subr.mxu0 0.0
    %1743 = vmatpush2.msra.mxu0 0.0
    %1744 = vmatprep.subr.mxu0 0.0
    %1745 = vmatpush2.msra.mxu0 0.0
    %1746 = vmatprep.subr.mxu0 0.0
    %1747 = vmatpush2.msra.mxu0 0.0
    %1748 = vmatprep.subr.mxu0 0.0
    %1749 = vmatpush2.msra.mxu0 0.0
    %1750 = vmatprep.subr.mxu0 0.0
    %1751 = vmatpush2.msra.mxu0 0.0
    %1752 = vmatprep.subr.mxu0 0.0
    %1753 = vmatpush2.msra.mxu0 0.0
    %1754 = vmatprep.subr.mxu0 0.0
    %1755 = vmatpush2.msra.mxu0 0.0
    %1756 = vmatprep.subr.mxu0 0.0
    %1757 = vmatpush2.msra.mxu0 0.0
    %1758 = vmatprep.subr.mxu0 0.0
    %1759 = vmatpush2.msra.mxu0 0.0
    %1760 = vmatprep.subr.mxu0 0.0
    %1761 = vmatpush2.msra.mxu0 0.0
    %1762 = vmatprep.subr.mxu0 0.0
    %1763 = vmatpush2.msra.mxu0 0.0
    %1764 = vmatprep.subr.mxu0 0.0
    %1765 = vmatpush2.msra.mxu0 0.0
    %1766 = vmatprep.subr.mxu0 0.0
    %1767 = vmatpush2.msra.mxu0 0.0
    %1768 = vmatprep.subr.mxu0 0.0
    %1769 = vmatpush2.msra.mxu0 0.0
    %1770 = vmatprep.mubr.f32.mxu0 0.0
    %1771 = vmatmul.mubr.f32.gmra.mxu0 %v1704
    %v1772 = vpop.f32.mrf.mxu0
    %v1773 = vadd.f32 0.0, %v1772
    %v1774 = vpop.f32.mrf.mxu0
    %1775 = vdwg.mxu0
    %1776 = vrot.lane.b32.xlu0 %v1610, 112
    %v1777 = vpop.permute.xlu0 %1776
    %1778 = vrot.lane.b32.xlu0 %v1271, 80
    %v1779 = vpop.permute.xlu0 %1778
    %v1780 = vsel %vm203, %v1777, 0
    %v1782 = vsel %vm203, %v1779, 0
    %1784 = vmatprep.subr.mxu0 0.0
    %1785 = vmatpush1.xpose.msra.mxu0 0.0
    %1786 = vmatprep.subr.mxu0 0.0
    %1787 = vmatpush1.xpose.msra.mxu0 0.0
    %1788 = vmatprep.subr.mxu0 0.0
    %1789 = vmatpush1.xpose.msra.mxu0 0.0
    %1790 = vmatprep.subr.mxu0 0.0
    %1791 = vmatpush1.xpose.msra.mxu0 0.0
    %1792 = vmatprep.subr.mxu0 0.0
    %1793 = vmatpush1.xpose.msra.mxu0 0.0
    %1794 = vmatprep.subr.mxu0 0.0
    %1795 = vmatpush1.xpose.msra.mxu0 0.0
    %1796 = vmatprep.subr.mxu0 0.0
    %1797 = vmatpush1.xpose.msra.mxu0 0.0
    %1798 = vmatprep.subr.mxu0 0.0
    %1799 = vmatpush1.xpose.msra.mxu0 0.0
    %1800 = vmatprep.subr.mxu0 0.0
    %1801 = vmatpush1.xpose.msra.mxu0 0.0
    %1802 = vmatprep.subr.mxu0 0.0
    %1803 = vmatpush1.xpose.msra.mxu0 0.0
    %1804 = vmatprep.subr.mxu0 0.0
    %1805 = vmatpush1.xpose.msra.mxu0 0.0
    %1806 = vmatprep.subr.mxu0 0.0
    %1807 = vmatpush1.xpose.msra.mxu0 0.0
    %1808 = vmatprep.subr.mxu0 0.0
    %1809 = vmatpush1.xpose.msra.mxu0 0.0
    %1810 = vmatprep.subr.mxu0 0.0
    %1811 = vmatpush1.xpose.msra.mxu0 0.0
    %1812 = vmatprep.subr.mxu0 0.0
    %1813 = vmatpush1.xpose.msra.mxu0 0.0
    %1814 = vmatprep.subr.mxu0 0.0
    %1815 = vmatpush1.xpose.msra.mxu0 %v1782
    %1816 = vmatprep.subr.mxu0 0.0
    %1817 = vmatpush2.xpose.msra.mxu0 0.0
    %1818 = vmatprep.subr.mxu0 0.0
    %1819 = vmatpush2.xpose.msra.mxu0 0.0
    %1820 = vmatprep.subr.mxu0 0.0
    %1821 = vmatpush2.xpose.msra.mxu0 0.0
    %1822 = vmatprep.subr.mxu0 0.0
    %1823 = vmatpush2.xpose.msra.mxu0 0.0
    %1824 = vmatprep.subr.mxu0 0.0
    %1825 = vmatpush2.xpose.msra.mxu0 0.0
    %1826 = vmatprep.subr.mxu0 0.0
    %1827 = vmatpush2.xpose.msra.mxu0 0.0
    %1828 = vmatprep.subr.mxu0 0.0
    %1829 = vmatpush2.xpose.msra.mxu0 0.0
    %1830 = vmatprep.subr.mxu0 0.0
    %1831 = vmatpush2.xpose.msra.mxu0 0.0
    %1832 = vmatprep.subr.mxu0 0.0
    %1833 = vmatpush2.xpose.msra.mxu0 0.0
    %1834 = vmatprep.subr.mxu0 0.0
    %1835 = vmatpush2.xpose.msra.mxu0 0.0
    %1836 = vmatprep.subr.mxu0 0.0
    %1837 = vmatpush2.xpose.msra.mxu0 0.0
    %1838 = vmatprep.subr.mxu0 0.0
    %1839 = vmatpush2.xpose.msra.mxu0 0.0
    %1840 = vmatprep.subr.mxu0 0.0
    %1841 = vmatpush2.xpose.msra.mxu0 0.0
    %1842 = vmatprep.subr.mxu0 0.0
    %1843 = vmatpush2.xpose.msra.mxu0 0.0
    %1844 = vmatprep.subr.mxu0 0.0
    %1845 = vmatpush2.xpose.msra.mxu0 0.0
    %1846 = vmatprep.subr.mxu0 0.0
    %1847 = vmatpush2.xpose.msra.mxu0 0.0
    %1848 = vmatprep.mubr.f32.mxu0 0.0
    %1849 = vmatmul.mubr.f32.gmra.mxu0 %v1780
    %v1850 = vpop.f32.mrf.mxu0
    %v1851 = vadd.f32 0.0, %v1850
    %v1852 = vpop.f32.mrf.mxu0
    %1853 = vdwg.mxu0
    %v1854 = vsel %vm279, %v1851, -inf
    %1855 = vmax.xlane.f32.xlu0 %v1854
    %v1856 = vpop.xlane.xlu0 %1855
    %v1857 = vsub.f32 %v1851, %v1856
    %v1858 = vmul.f32 %v1857, 1.442695
    %v1859 = vpow.pop %v1858
    %v1860 = vsel %vm279, %v1859, 0.0
    %1861 = vadd.xlane.f32.xlu0 %v1860
    %v1862 = vpop.xlane.xlu0 %1861
    %v1863 = vrcp.pop %v1862
    %v1864 = vmul.f32 %v1859, %v1863
    %1865 = vrot.lane.b32.xlu0 %v1271, 48
    %v1866 = vpop.permute.xlu0 %1865
    %v1869 = vsel %vm279, %v1864, 0
    %1871 = vmatprep.subr.mxu0 0.0
    %1872 = vmatpush1.msra.mxu0 0.0
    %1873 = vmatprep.subr.mxu0 0.0
    %1874 = vmatpush1.msra.mxu0 0.0
    %1875 = vmatprep.subr.mxu0 0.0
    %1876 = vmatpush1.msra.mxu0 0.0
    %1877 = vmatprep.subr.mxu0 0.0
    %1878 = vmatpush1.msra.mxu0 0.0
    %1879 = vmatprep.subr.mxu0 0.0
    %1880 = vmatpush1.msra.mxu0 0.0
    %1881 = vmatprep.subr.mxu0 0.0
    %1882 = vmatpush1.msra.mxu0 0.0
    %1883 = vmatprep.subr.mxu0 0.0
    %1884 = vmatpush1.msra.mxu0 0.0
    %1885 = vmatprep.subr.mxu0 0.0
    %1886 = vmatpush1.msra.mxu0 0.0
    %1887 = vmatprep.subr.mxu0 0.0
    %1888 = vmatpush1.msra.mxu0 0.0
    %1889 = vmatprep.subr.mxu0 0.0
    %1890 = vmatpush1.msra.mxu0 0.0
    %1891 = vmatprep.subr.mxu0 0.0
    %1892 = vmatpush1.msra.mxu0 0.0
    %1893 = vmatprep.subr.mxu0 0.0
    %1894 = vmatpush1.msra.mxu0 0.0
    %1895 = vmatprep.subr.mxu0 0.0
    %1896 = vmatpush1.msra.mxu0 0.0
    %1897 = vmatprep.subr.mxu0 0.0
    %1898 = vmatpush1.msra.mxu0 0.0
    %1899 = vmatprep.subr.mxu0 0.0
    %1900 = vmatpush1.msra.mxu0 0.0
    %1901 = vmatprep.subr.mxu0 0.0
    %1902 = vmatpush1.msra.mxu0 %v1866
    %1903 = vmatprep.subr.mxu0 0.0
    %1904 = vmatpush2.msra.mxu0 0.0
    %1905 = vmatprep.subr.mxu0 0.0
    %1906 = vmatpush2.msra.mxu0 0.0
    %1907 = vmatprep.subr.mxu0 0.0
    %1908 = vmatpush2.msra.mxu0 0.0
    %1909 = vmatprep.subr.mxu0 0.0
    %1910 = vmatpush2.msra.mxu0 0.0
    %1911 = vmatprep.subr.mxu0 0.0
    %1912 = vmatpush2.msra.mxu0 0.0
    %1913 = vmatprep.subr.mxu0 0.0
    %1914 = vmatpush2.msra.mxu0 0.0
    %1915 = vmatprep.subr.mxu0 0.0
    %1916 = vmatpush2.msra.mxu0 0.0
    %1917 = vmatprep.subr.mxu0 0.0
    %1918 = vmatpush2.msra.mxu0 0.0
    %1919 = vmatprep.subr.mxu0 0.0
    %1920 = vmatpush2.msra.mxu0 0.0
    %1921 = vmatprep.subr.mxu0 0.0
    %1922 = vmatpush2.msra.mxu0 0.0
    %1923 = vmatprep.subr.mxu0 0.0
    %1924 = vmatpush2.msra.mxu0 0.0
    %1925 = vmatprep.subr.mxu0 0.0
    %1926 = vmatpush2.msra.mxu0 0.0
    %1927 = vmatprep.subr.mxu0 0.0
    %1928 = vmatpush2.msra.mxu0 0.0
    %1929 = vmatprep.subr.mxu0 0.0
    %1930 = vmatpush2.msra.mxu0 0.0
    %1931 = vmatprep.subr.mxu0 0.0
    %1932 = vmatpush2.msra.mxu0 0.0
    %1933 = vmatprep.subr.mxu0 0.0
    %1934 = vmatpush2.msra.mxu0 0.0
    %1935 = vmatprep.mubr.f32.mxu0 0.0
    %1936 = vmatmul.mubr.f32.gmra.mxu0 %v1869
    %v1937 = vpop.f32.mrf.mxu0
    %v1938 = vadd.f32 0.0, %v1937
    %v1939 = vpop.f32.mrf.mxu0
    %1940 = vdwg.mxu0
    %1942 = vrot.lane.b32.xlu0 %v1938, 16
    %v1943 = vpop.permute.xlu0 %1942
    %v1945 = vsel %vm203, %v1773, %v1943
    %s1946 = scalar_lea.vmem %s5, 16
    %v1947 = vld [vmem:[%s1946] sm:$0xf]
    %v1948 = vld [vmem:[%s1946 + $0x4] sm:$0xf]
    %v1949 = vld [vmem:[%s1946 + $0x8] sm:$0xf]
    %v1950 = vld [vmem:[%s1946 + $0xc] sm:$0xf]
    %v1951 = vpack.c.bf16 %v1945, %v1609
    %s1952 = scalar_lea.vmem %s6, 1
    %v1953 = vld [vmem:[%s1952] sm:$0x1]
    %v1955 = vlaneseq
    %v1956 = vshrl.u32 %v1955, 7
    %v1957 = vsub.s32 0, %v1956
    %v1958 = vrot.slane %v1953, %v1957
    %v1964 = vunpack.c.l.b16 %v1947
    %v1965 = vunpack.c.l.b16 %v1948
    %v1966 = vunpack.c.l.b16 %v1949
    %v1967 = vunpack.c.l.b16 %v1950
    %v1968 = vpack.c.b16 %v1965, %v1964
    %v1969 = vpack.c.b16 %v1967, %v1966
    %v1973 = vsel %vm87, %v1951, 0
    %1975 = vmatprep.subr.bf16.mxu0 0
    %1976 = vmatpush1.bf16.msra.mxu0 0
    %1977 = vmatprep.subr.bf16.mxu0 0
    %1978 = vmatpush1.bf16.msra.mxu0 0
    %1979 = vmatprep.subr.bf16.mxu0 0
    %1980 = vmatpush1.bf16.msra.mxu0 0
    %1981 = vmatprep.subr.bf16.mxu0 0
    %1982 = vmatpush1.bf16.msra.mxu0 0
    %1983 = vmatprep.subr.bf16.mxu0 0
    %1984 = vmatpush1.bf16.msra.mxu0 0
    %1985 = vmatprep.subr.bf16.mxu0 0
    %1986 = vmatpush1.bf16.msra.mxu0 0
    %1987 = vmatprep.subr.bf16.mxu0 0
    %1988 = vmatpush1.bf16.msra.mxu0 %v1969
    %1989 = vmatprep.subr.bf16.mxu0 0
    %1990 = vmatpush1.bf16.msra.mxu0 %v1968
    %1991 = vmatprep.subr.bf16.mxu0 0
    %1992 = vmatpush2.bf16.msra.mxu0 0
    %1993 = vmatprep.subr.bf16.mxu0 0
    %1994 = vmatpush2.bf16.msra.mxu0 0
    %1995 = vmatprep.subr.bf16.mxu0 0
    %1996 = vmatpush2.bf16.msra.mxu0 0
    %1997 = vmatprep.subr.bf16.mxu0 0
    %1998 = vmatpush2.bf16.msra.mxu0 0
    %1999 = vmatprep.subr.bf16.mxu0 0
    %2000 = vmatpush2.bf16.msra.mxu0 0
    %2001 = vmatprep.subr.bf16.mxu0 0
    %2002 = vmatpush2.bf16.msra.mxu0 0
    %2003 = vmatprep.subr.bf16.mxu0 0
    %2004 = vmatpush2.bf16.msra.mxu0 0
    %2005 = vmatprep.subr.bf16.mxu0 0
    %2006 = vmatpush2.bf16.msra.mxu0 0
    %2007 = vmatprep.mubr.bf16.mxu0 0
    %2008 = vmatmul.mubr.bf16.gmra.mxu0 %v1973
    %v2009 = vpop.f32.mrf.mxu0
    %v2010 = vadd.f32 %v1958, %v2009
    %v2011 = vpop.f32.mrf.mxu0
    %v2012 = vpop.f32.mrf.mxu0
    %v2013 = vadd.f32 %v1958, %v2012
    %v2014 = vpop.f32.mrf.mxu0
    %2015 = vdwg.mxu0
    %v2016 = vadd.f32 %v2010, %v1202
    %v2017 = vadd.f32 %v2013, %v1203
    %s2018 = scalar_lea.vmem %s7, 1
    %v2019 = vld [vmem:[%s2018] sm:$0x1]
    %s2020 = scalar_lea.vmem %s8, 1
    %v2021 = vld [vmem:[%s2020] sm:$0x1]
    %v2022 = vsel %vm87, %v2016, 0.0
    %2023 = vadd.xlane.f32.xlu0 %v2022
    %v2024 = vpop.xlane.xlu0 %2023
    %v2025 = vsel %vm87, %v2017, 0.0
    %2026 = vadd.xlane.f32.xlu0 %v2025
    %v2027 = vpop.xlane.xlu0 %2026
    %v2028 = vmul.f32 %v2024, %v94
    %v2029 = vmul.f32 %v2027, %v94
    %v2030 = vsub.f32 %v2016, %v2028
    %v2031 = vsub.f32 %v2017, %v2029
    %v2032 = vmul.f32 %v2030, %v2030
    %v2033 = vmul.f32 %v2031, %v2031
    %v2034 = vsel %vm87, %v2032, 0.0
    %2035 = vadd.xlane.f32.xlu0 %v2034
    %v2036 = vpop.xlane.xlu0 %2035
    %v2037 = vsel %vm87, %v2033, 0.0
    %2038 = vadd.xlane.f32.xlu0 %v2037
    %v2039 = vpop.xlane.xlu0 %2038
    %v2040 = vmul.f32 %v2036, %v94
    %v2041 = vmul.f32 %v2039, %v94
    %v2042 = vadd.f32 %v2040, 1e-12
    %v2043 = vadd.f32 %v2041, 1e-12
    %v2044 = vrsqrt.pop %v2042
    %v2045 = vrsqrt.pop %v2043
    %v2046 = vmul.f32 %v2030, %v2044
    %v2047 = vmul.f32 %v2031, %v2045
    %v2049 = vlaneseq
    %v2050 = vshrl.u32 %v2049, 7
    %v2051 = vsub.s32 0, %v2050
    %v2052 = vrot.slane %v2019, %v2051
    %v2054 = vmul.f32 %v2046, %v2052
    %v2055 = vmul.f32 %v2047, %v2052
    %v2057 = vlaneseq
    %v2058 = vshrl.u32 %v2057, 7
    %v2059 = vsub.s32 0, %v2058
    %v2060 = vrot.slane %v2021, %v2059
    %v2062 = vadd.f32 %v2054, %v2060
    %v2063 = vadd.f32 %v2055, %v2060
    %s2064 = scalar_lea.vmem %s9, 16
    %v2065 = vld [vmem:[%s2064] sm:$0xf]
    %v2066 = vld [vmem:[%s2064 + $0x4] sm:$0xf]
    %v2067 = vld [vmem:[%s2064 + $0x8] sm:$0xf]
    %v2068 = vld [vmem:[%s2064 + $0xc] sm:$0xf]
    %v2069 = vpack.c.bf16 %v2063, %v2062
    %s2070 = scalar_lea.vmem %s10, 1
    %v2071 = vld [vmem:[%s2070] sm:$0x1]
    %v2073 = vlaneseq
    %v2074 = vshrl.u32 %v2073, 7
    %v2075 = vsub.s32 0, %v2074
    %v2076 = vrot.slane %v2071, %v2075
    %v2082 = vunpack.c.l.b16 %v2065
    %v2083 = vunpack.c.l.b16 %v2066
    %v2084 = vunpack.c.l.b16 %v2067
    %v2085 = vunpack.c.l.b16 %v2068
    %v2086 = vpack.c.b16 %v2083, %v2082
    %v2087 = vpack.c.b16 %v2085, %v2084
    %v2091 = vsel %vm87, %v2069, 0
    %2093 = vmatprep.subr.bf16.mxu0 0
    %2094 = vmatpush1.bf16.msra.mxu0 0
    %2095 = vmatprep.subr.bf16.mxu0 0
    %2096 = vmatpush1.bf16.msra.mxu0 0
    %2097 = vmatprep.subr.bf16.mxu0 0
    %2098 = vmatpush1.bf16.msra.mxu0 0
    %2099 = vmatprep.subr.bf16.mxu0 0
    %2100 = vmatpush1.bf16.msra.mxu0 0
    %2101 = vmatprep.subr.bf16.mxu0 0
    %2102 = vmatpush1.bf16.msra.mxu0 0
    %2103 = vmatprep.subr.bf16.mxu0 0
    %2104 = vmatpush1.bf16.msra.mxu0 0
    %2105 = vmatprep.subr.bf16.mxu0 0
    %2106 = vmatpush1.bf16.msra.mxu0 %v2087
    %2107 = vmatprep.subr.bf16.mxu0 0
    %2108 = vmatpush1.bf16.msra.mxu0 %v2086
    %2109 = vmatprep.subr.bf16.mxu0 0
    %2110 = vmatpush2.bf16.msra.mxu0 0
    %2111 = vmatprep.subr.bf16.mxu0 0
    %2112 = vmatpush2.bf16.msra.mxu0 0
    %2113 = vmatprep.subr.bf16.mxu0 0
    %2114 = vmatpush2.bf16.msra.mxu0 0
    %2115 = vmatprep.subr.bf16.mxu0 0
    %2116 = vmatpush2.bf16.msra.mxu0 0
    %2117 = vmatprep.subr.bf16.mxu0 0
    %2118 = vmatpush2.bf16.msra.mxu0 0
    %2119 = vmatprep.subr.bf16.mxu0 0
    %2120 = vmatpush2.bf16.msra.mxu0 0
    %2121 = vmatprep.subr.bf16.mxu0 0
    %2122 = vmatpush2.bf16.msra.mxu0 0
    %2123 = vmatprep.subr.bf16.mxu0 0
    %2124 = vmatpush2.bf16.msra.mxu0 0
    %2125 = vmatprep.mubr.bf16.mxu0 0
    %2126 = vmatmul.mubr.bf16.gmra.mxu0 %v2091
    %v2127 = vpop.f32.mrf.mxu0
    %v2128 = vadd.f32 %v2076, %v2127
    %v2129 = vpop.f32.mrf.mxu0
    %v2130 = vpop.f32.mrf.mxu0
    %v2131 = vadd.f32 %v2076, %v2130
    %v2132 = vpop.f32.mrf.mxu0
    %2133 = vdwg.mxu0
    %v2134 = vmul.f32 %v2128, 0.5
    %v2135 = vmul.f32 %v2131, 0.5
    %v2136 = vmul.f32 %v2128, 0.044715
    %v2137 = vmul.f32 %v2131, 0.044715
    %v2138 = vmul.f32 %v2136, %v2128
    %v2139 = vmul.f32 %v2137, %v2131
    %v2140 = vmul.f32 %v2138, %v2128
    %v2141 = vmul.f32 %v2139, %v2131
    %v2142 = vadd.f32 %v2128, %v2140
    %v2143 = vadd.f32 %v2131, %v2141
    %v2144 = vmul.f32 %v2142, 0.7978846
    %v2145 = vmul.f32 %v2143, 0.7978846
    %v2146 = vtanh.pop %v2144
    %v2147 = vtanh.pop %v2145
    %v2148 = vadd.f32 %v2146, 1.0
    %v2149 = vadd.f32 %v2147, 1.0
    %v2150 = vmul.f32 %v2134, %v2148
    %v2151 = vmul.f32 %v2135, %v2149
    %s2152 = scalar_lea.vmem %s11, 32
    %v2153 = vld [vmem:[%s2152] sm:$0xf]
    %v2154 = vld [vmem:[%s2152 + $0x4] sm:$0xf]
    %v2155 = vld [vmem:[%s2152 + $0x8] sm:$0xf]
    %v2156 = vld [vmem:[%s2152 + $0xc] sm:$0xf]
    %v2157 = vld [vmem:[%s2152 + $0x10] sm:$0xf]
    %v2158 = vld [vmem:[%s2152 + $0x14] sm:$0xf]
    %v2159 = vld [vmem:[%s2152 + $0x18] sm:$0xf]
    %v2160 = vld [vmem:[%s2152 + $0x1c] sm:$0xf]
    %v2161 = vpack.c.bf16 %v2151, %v2150
    %s2162 = scalar_lea.vmem %s12, 1
    %v2163 = vld [vmem:[%s2162] sm:$0x1]
    %v2165 = vlaneseq
    %v2166 = vshrl.u32 %v2165, 7
    %v2167 = vsub.s32 0, %v2166
    %v2168 = vrot.slane %v2163, %v2167
    %v2178 = vunpack.c.l.b16 %v2153
    %v2179 = vunpack.c.l.b16 %v2154
    %v2180 = vunpack.c.l.b16 %v2155
    %v2181 = vunpack.c.l.b16 %v2156
    %v2182 = vunpack.c.l.b16 %v2157
    %v2183 = vunpack.c.l.b16 %v2158
    %v2184 = vunpack.c.l.b16 %v2159
    %v2185 = vunpack.c.l.b16 %v2160
    %v2186 = vpack.c.b16 %v2179, %v2178
    %v2187 = vpack.c.b16 %v2181, %v2180
    %v2188 = vpack.c.b16 %v2183, %v2182
    %v2189 = vpack.c.b16 %v2185, %v2184
    %v2195 = vsel %vm1113, %v2161, 0
    %2197 = vmatprep.subr.bf16.mxu0 0
    %2198 = vmatpush1.bf16.msra.mxu0 0
    %2199 = vmatprep.subr.bf16.mxu0 0
    %2200 = vmatpush1.bf16.msra.mxu0 0
    %2201 = vmatprep.subr.bf16.mxu0 0
    %2202 = vmatpush1.bf16.msra.mxu0 0
    %2203 = vmatprep.subr.bf16.mxu0 0
    %2204 = vmatpush1.bf16.msra.mxu0 0
    %2205 = vmatprep.subr.bf16.mxu0 0
    %2206 = vmatpush1.bf16.msra.mxu0 %v2189
    %2207 = vmatprep.subr.bf16.mxu0 0
    %2208 = vmatpush1.bf16.msra.mxu0 %v2188
    %2209 = vmatprep.subr.bf16.mxu0 0
    %2210 = vmatpush1.bf16.msra.mxu0 %v2187
    %2211 = vmatprep.subr.bf16.mxu0 0
    %2212 = vmatpush1.bf16.msra.mxu0 %v2186
    %2213 = vmatprep.subr.bf16.mxu0 0
    %2214 = vmatpush2.bf16.msra.mxu0 0
    %2215 = vmatprep.subr.bf16.mxu0 0
    %2216 = vmatpush2.bf16.msra.mxu0 0
    %2217 = vmatprep.subr.bf16.mxu0 0
    %2218 = vmatpush2.bf16.msra.mxu0 0
    %2219 = vmatprep.subr.bf16.mxu0 0
    %2220 = vmatpush2.bf16.msra.mxu0 0
    %2221 = vmatprep.subr.bf16.mxu0 0
    %2222 = vmatpush2.bf16.msra.mxu0 0
    %2223 = vmatprep.subr.bf16.mxu0 0
    %2224 = vmatpush2.bf16.msra.mxu0 0
    %2225 = vmatprep.subr.bf16.mxu0 0
    %2226 = vmatpush2.bf16.msra.mxu0 0
    %2227 = vmatprep.subr.bf16.mxu0 0
    %2228 = vmatpush2.bf16.msra.mxu0 0
    %2229 = vmatprep.mubr.bf16.mxu0 0
    %2230 = vmatmul.mubr.bf16.gmra.mxu0 %v2195
    %v2231 = vpop.f32.mrf.mxu0
    %v2232 = vadd.f32 %v2168, %v2231
    %v2233 = vpop.f32.mrf.mxu0
    %v2234 = vpop.f32.mrf.mxu0
    %v2235 = vadd.f32 %v2168, %v2234
    %v2236 = vpop.f32.mrf.mxu0
    %2237 = vdwg.mxu0
    %v2238 = vadd.f32 %v2232, %v2062
    %v2239 = vadd.f32 %v2235, %v2063
    %s2240 = scalar_lea.vmem %s13, 1
    %v2241 = vld [vmem:[%s2240] sm:$0x1]
    %s2242 = scalar_lea.vmem %s14, 1
    %v2243 = vld [vmem:[%s2242] sm:$0x1]
    %v2244 = vsel %vm87, %v2238, 0.0
    %2245 = vadd.xlane.f32.xlu0 %v2244
    %v2246 = vpop.xlane.xlu0 %2245
    %v2247 = vsel %vm87, %v2239, 0.0
    %2248 = vadd.xlane.f32.xlu0 %v2247
    %v2249 = vpop.xlane.xlu0 %2248
    %v2250 = vmul.f32 %v2246, %v94
    %v2251 = vmul.f32 %v2249, %v94
    %v2252 = vsub.f32 %v2238, %v2250
    %v2253 = vsub.f32 %v2239, %v2251
    %v2254 = vmul.f32 %v2252, %v2252
    %v2255 = vmul.f32 %v2253, %v2253
    %v2256 = vsel %vm87, %v2254, 0.0
    %2257 = vadd.xlane.f32.xlu0 %v2256
    %v2258 = vpop.xlane.xlu0 %2257
    %v2259 = vsel %vm87, %v2255, 0.0
    %2260 = vadd.xlane.f32.xlu0 %v2259
    %v2261 = vpop.xlane.xlu0 %2260
    %v2262 = vmul.f32 %v2258, %v94
    %v2263 = vmul.f32 %v2261, %v94
    %v2264 = vadd.f32 %v2262, 1e-12
    %v2265 = vadd.f32 %v2263, 1e-12
    %v2266 = vrsqrt.pop %v2264
    %v2267 = vrsqrt.pop %v2265
    %v2268 = vmul.f32 %v2252, %v2266
    %v2269 = vmul.f32 %v2253, %v2267
    %v2271 = vlaneseq
    %v2272 = vshrl.u32 %v2271, 7
    %v2273 = vsub.s32 0, %v2272
    %v2274 = vrot.slane %v2241, %v2273
    %v2276 = vmul.f32 %v2268, %v2274
    %v2277 = vmul.f32 %v2269, %v2274
    %v2279 = vlaneseq
    %v2280 = vshrl.u32 %v2279, 7
    %v2281 = vsub.s32 0, %v2280
    %v2282 = vrot.slane %v2243, %v2281
    %v2284 = vadd.f32 %v2276, %v2282
    %v2285 = vadd.f32 %v2277, %v2282
    %v2287 = vrot.slane %v2285, 7
    %vm2289 = vcmask 1040384
    %v2290 = vsel %vm2289, %v2284, %v2287
    %v2291 = vld [vmem:[%s15] sm:$0xf]
    %v2292 = vld [vmem:[%s15 + $0x4] sm:$0xf]
    %v2293 = vld [vmem:[%s15 + $0x8] sm:$0xf]
    %v2294 = vld [vmem:[%s15 + $0xc] sm:$0xf]
    %v2295 = vpack.c.bf16 %v2290, %v2290
    %v2296 = vld [vmem:[%s16] sm:$0x1]
    %v2298 = vlaneseq
    %v2299 = vshrl.u32 %v2298, 7
    %v2300 = vsub.s32 0, %v2299
    %v2301 = vrot.slane %v2296, %v2300
    %v2307 = vunpack.c.l.b16 %v2291
    %v2308 = vunpack.c.l.b16 %v2292
    %v2309 = vunpack.c.l.b16 %v2293
    %v2310 = vunpack.c.l.b16 %v2294
    %v2311 = vpack.c.b16 %v2308, %v2307
    %v2312 = vpack.c.b16 %v2310, %v2309
    %v2316 = vsel %vm87, %v2295, 0
    %2318 = vmatprep.subr.bf16.mxu0 0
    %2319 = vmatpush1.bf16.msra.mxu0 0
    %2320 = vmatprep.subr.bf16.mxu0 0
    %2321 = vmatpush1.bf16.msra.mxu0 0
    %2322 = vmatprep.subr.bf16.mxu0 0
    %2323 = vmatpush1.bf16.msra.mxu0 0
    %2324 = vmatprep.subr.bf16.mxu0 0
    %2325 = vmatpush1.bf16.msra.mxu0 0
    %2326 = vmatprep.subr.bf16.mxu0 0
    %2327 = vmatpush1.bf16.msra.mxu0 0
    %2328 = vmatprep.subr.bf16.mxu0 0
    %2329 = vmatpush1.bf16.msra.mxu0 0
    %2330 = vmatprep.subr.bf16.mxu0 0
    %2331 = vmatpush1.bf16.msra.mxu0 %v2312
    %2332 = vmatprep.subr.bf16.mxu0 0
    %2333 = vmatpush1.bf16.msra.mxu0 %v2311
    %2334 = vmatprep.subr.bf16.mxu0 0
    %2335 = vmatpush2.bf16.msra.mxu0 0
    %2336 = vmatprep.subr.bf16.mxu0 0
    %2337 = vmatpush2.bf16.msra.mxu0 0
    %2338 = vmatprep.subr.bf16.mxu0 0
    %2339 = vmatpush2.bf16.msra.mxu0 0
    %2340 = vmatprep.subr.bf16.mxu0 0
    %2341 = vmatpush2.bf16.msra.mxu0 0
    %2342 = vmatprep.subr.bf16.mxu0 0
    %2343 = vmatpush2.bf16.msra.mxu0 0
    %2344 = vmatprep.subr.bf16.mxu0 0
    %2345 = vmatpush2.bf16.msra.mxu0 0
    %2346 = vmatprep.subr.bf16.mxu0 0
    %2347 = vmatpush2.bf16.msra.mxu0 0
    %2348 = vmatprep.subr.bf16.mxu0 0
    %2349 = vmatpush2.bf16.msra.mxu0 0
    %2350 = vmatprep.mubr.bf16.mxu0 0
    %2351 = vmatmul.mubr.bf16.gmra.mxu0 %v2316
    %v2352 = vpop.f32.mrf.mxu0
    %v2353 = vadd.f32 %v2301, %v2352
    %v2354 = vpop.f32.mrf.mxu0
    %v2355 = vpop.f32.mrf.mxu0
    %v2356 = vpop.f32.mrf.mxu0
    %2357 = vdwg.mxu0
    %v2358 = vtanh.pop %v2353
    %v2359 = vld [vmem:[%s17] sm:$0xff]
    %v2360 = vld [vmem:[%s17 + $0x8] sm:$0xff]
    %v2361 = vld [vmem:[%s17 + $0x10] sm:$0xff]
    %v2362 = vld [vmem:[%s17 + $0x18] sm:$0xff]
    %v2363 = vld [vmem:[%s18] sm:$0x1]
    %v2365 = vlaneseq
    %v2366 = vshrl.u32 %v2365, 7
    %v2367 = vsub.s32 0, %v2366
    %v2368 = vrot.slane %v2363, %v2367
    %v2371 = vsel %vm87, %v2358, 0
    %2373 = vmatprep.subr.mxu0 0.0
    %2374 = vmatpush1.msra.mxu0 0.0
    %2375 = vmatprep.subr.mxu0 0.0
    %2376 = vmatpush1.msra.mxu0 0.0
    %2377 = vmatprep.subr.mxu0 0.0
    %2378 = vmatpush1.msra.mxu0 0.0
    %2379 = vmatprep.subr.mxu0 0.0
    %2380 = vmatpush1.msra.mxu0 0.0
    %2381 = vmatprep.subr.mxu0 0.0
    %2382 = vmatpush1.msra.mxu0 0.0
    %2383 = vmatprep.subr.mxu0 0.0
    %2384 = vmatpush1.msra.mxu0 0.0
    %2385 = vmatprep.subr.mxu0 0.0
    %2386 = vmatpush1.msra.mxu0 0.0
    %2387 = vmatprep.subr.mxu0 0.0
    %2388 = vmatpush1.msra.mxu0 0.0
    %2389 = vmatprep.subr.mxu0 0.0
    %2390 = vmatpush1.msra.mxu0 0.0
    %2391 = vmatprep.subr.mxu0 0.0
    %2392 = vmatpush1.msra.mxu0 0.0
    %2393 = vmatprep.subr.mxu0 0.0
    %2394 = vmatpush1.msra.mxu0 0.0
    %2395 = vmatprep.subr.mxu0 0.0
    %2396 = vmatpush1.msra.mxu0 0.0
    %2397 = vmatprep.subr.mxu0 0.0
    %2398 = vmatpush1.msra.mxu0 %v2362
    %2399 = vmatprep.subr.mxu0 0.0
    %2400 = vmatpush1.msra.mxu0 %v2361
    %2401 = vmatprep.subr.mxu0 0.0
    %2402 = vmatpush1.msra.mxu0 %v2360
    %2403 = vmatprep.subr.mxu0 0.0
    %2404 = vmatpush1.msra.mxu0 %v2359
    %2405 = vmatprep.subr.mxu0 0.0
    %2406 = vmatpush2.msra.mxu0 0.0
    %2407 = vmatprep.subr.mxu0 0.0
    %2408 = vmatpush2.msra.mxu0 0.0
    %2409 = vmatprep.subr.mxu0 0.0
    %2410 = vmatpush2.msra.mxu0 0.0
    %2411 = vmatprep.subr.mxu0 0.0
    %2412 = vmatpush2.msra.mxu0 0.0
    %2413 = vmatprep.subr.mxu0 0.0
    %2414 = vmatpush2.msra.mxu0 0.0
    %2415 = vmatprep.subr.mxu0 0.0
    %2416 = vmatpush2.msra.mxu0 0.0
    %2417 = vmatprep.subr.mxu0 0.0
    %2418 = vmatpush2.msra.mxu0 0.0
    %2419 = vmatprep.subr.mxu0 0.0
    %2420 = vmatpush2.msra.mxu0 0.0
    %2421 = vmatprep.subr.mxu0 0.0
    %2422 = vmatpush2.msra.mxu0 0.0
    %2423 = vmatprep.subr.mxu0 0.0
    %2424 = vmatpush2.msra.mxu0 0.0
    %2425 = vmatprep.subr.mxu0 0.0
    %2426 = vmatpush2.msra.mxu0 0.0
    %2427 = vmatprep.subr.mxu0 0.0
    %2428 = vmatpush2.msra.mxu0 0.0
    %2429 = vmatprep.subr.mxu0 0.0
    %2430 = vmatpush2.msra.mxu0 0.0
    %2431 = vmatprep.subr.mxu0 0.0
    %2432 = vmatpush2.msra.mxu0 0.0
    %2433 = vmatprep.subr.mxu0 0.0
    %2434 = vmatpush2.msra.mxu0 0.0
    %2435 = vmatprep.subr.mxu0 0.0
    %2436 = vmatpush2.msra.mxu0 0.0
    %2437 = vmatprep.mubr.f32.mxu0 0.0
    %2438 = vmatmul.mubr.f32.gmra.mxu0 %v2371
    %v2439 = vpop.f32.mrf.mxu0
    %v2440 = vadd.f32 %v2368, %v2439
    %v2441 = vpop.f32.mrf.mxu0
    %2442 = vdwg.mxu0
    %vm2443 = vcmask 9216
    %2444 = vst.msk [vmem:[#allocation6] sm:$0x3] %vm2443, %v2440
    %v2445 = vlaneseq
    %v2446 = vand.u32 %v2445, 127
    %vm2447 = vcmask 8192
    %v2448 = vsel %vm2447, %v2440, -inf
    %2449 = vmax.xlane.f32.xlu0 %v2448
    %v2450 = vpop.xlane.xlu0 %2449
    %v2451 = vsub.f32 %v2440, %v2450
    %v2452 = vmul.f32 %v2451, 1.442695
    %v2453 = vpow.pop %v2452
    %v2454 = vsel %vm2447, %v2453, 0.0
    %2455 = vadd.xlane.f32.xlu0 %v2454
    %v2456 = vpop.xlane.xlu0 %2455
    %v2457 = vlog2.pop %v2456
    %v2458 = vmul.f32 %v2457, 0.6931472
    %v2459 = vadd.f32 %v2458, %v2450
    %s2460 = sld [smem:[#allocation2]]
    %v2461 = vstv %s2460
    %vm2462 = vcmp.eq.s32.totalorder %v2446, %v2461
    %v2463 = vsel %vm2462, 1, 0
    %v2464 = vcvt.s32.f32 %v2463
    %v2465 = vmul.f32 %v2440, %v2464
    %v2466 = vsel %vm2447, %v2465, 0.0
    %2467 = vadd.xlane.f32.xlu0 %v2466
    %v2468 = vpop.xlane.xlu0 %2467
    %v2469 = vsub.f32 %v2459, %v2468
    %v2470 = vadd.f32 %v2469, 0.0
    %vm2471 = vcmask 9217
    %v2472 = vsel %vm2471, %v2440, -inf
    %2473 = vmax.xlane.f32.xlu0 %v2472
    %v2474 = vpop.xlane.xlu0 %2473
    %v2475 = vsub.f32 %v2440, %v2474
    %v2476 = vmul.f32 %v2475, 1.442695
    %v2477 = vpow.pop %v2476
    %v2478 = vsel %vm2471, %v2477, 0.0
    %2479 = vadd.xlane.f32.xlu0 %v2478
    %v2480 = vpop.xlane.xlu0 %2479
    %v2481 = vlog2.pop %v2480
    %v2482 = vmul.f32 %v2481, 0.6931472
    %v2483 = vadd.f32 %v2482, %v2474
    %s2484 = sld [smem:[#allocation2 + $0x1]]
    %v2485 = vstv %s2484
    %vm2486 = vcmp.eq.s32.totalorder %v2446, %v2485
    %v2487 = vsel %vm2486, 1, 0
    %v2488 = vcvt.s32.f32 %v2487
    %v2489 = vmul.f32 %v2440, %v2488
    %v2490 = vsel %vm2471, %v2489, 0.0
    %2491 = vadd.xlane.f32.xlu0 %v2490
    %v2492 = vpop.xlane.xlu0 %2491
    %v2493 = vsub.f32 %v2483, %v2492
    %v2495 = vrot.slane %v2493, 1
    %v2497 = vadd.f32 %v2470, %v2495
    %v2498 = vmul.f32 %v2497, 0.5
    %vm2499 = vcmask 0
    %2500 = vst.msk [vmem:[#allocation5] sm:$0x1] %vm2499, %v2498
    // Predicated region
    $region86: #{bert_forward.1} parent=1 // pred_check
      _
    $region87: #{bert_forward.1} parent=1 // pred_check_branch
      %2502 = sbr.rel (0) target = $region89
    $region88: #{bert_forward.1} parent=1 // pred_region
      %s2504 = ssub.s32 16, 16
      %2505 = vsyncadd [#allocation3], %s2504
      %s2507 = sshll.u32 [#allocation5], 4
      %s2508 = int_to_ptr.vmem [resolvable:$true] %s2507
      %2510 = dma.vmem_to_hbm [thread:$0]  %s2508, 16, %s20, [#allocation3]
    $region89: #{bert_forward.1} parent=1 // pred_fallthru
      _
    // Predicated region
    $region90: #{bert_forward.1} parent=1 // pred_check
      _
    $region91: #{bert_forward.1} parent=1 // pred_check_branch
      %2512 = sbr.rel (0) target = $region93
    $region92: #{bert_forward.1} parent=1 // pred_region
      %s2514 = ssub.s32 32, 32
      %2515 = vsyncadd [#allocation7], %s2514
      %s2517 = sshll.u32 [#allocation6], 4
      %s2518 = int_to_ptr.vmem [resolvable:$true] %s2517
      %2520 = dma.vmem_to_hbm [thread:$0]  %s2518, 32, %s21, [#allocation7]
    $region93: #{bert_forward.1} parent=1 // pred_fallthru
      _
    // Predicated region
    $region94: #{bert_forward.1} parent=1 // pred_check
      _
    $region95: #{bert_forward.1} parent=1 // pred_check_branch
      %2522 = sbr.rel (0) target = $region97
    $region96: #{bert_forward.1} parent=1 // pred_region
      %2523 = dma.done [#allocation3], 16
    $region97: #{bert_forward.1} parent=1 // pred_fallthru
      _
    // Predicated region
    $region98: #{bert_forward.1} parent=1 // pred_check
      _
    $region99: #{bert_forward.1} parent=1 // pred_check_branch
      %2525 = sbr.rel (0) target = $region101
    $region100: #{bert_forward.1} parent=1 // pred_region
      %2526 = dma.done [#allocation7], 32
    $region101: #{bert_forward.1} parent=1 // pred_fallthru
      _
    %2527 = vsyncpa [#allocation3], 1
    %2528 = vsyncpa [#allocation7], 1
    %2529 = vsyncpa [#allocation4], 1

</llo_original>
